<compile_context>
chip_gen: v6e
topology: v6e:2x2x1
jax: 0.10.0
libtpu: 0.0.40
codegen_flags: <defaults>
</compile_context>

<pallas_src>
import functools
import math

import jax
import jax.numpy as jnp
from jax.experimental import pallas as pl
from jax.experimental.pallas import tpu as pltpu

# ----------------------------- model configuration -----------------------------
BATCH = 2
SET_SIZE = 2
TEXT_LEN = 8
EMB_DIM = 32          # hidden_size
NUM_LAYERS = 2
NUM_HEADS = 2
HEAD_DIM = EMB_DIM // NUM_HEADS
INTERMEDIATE = 64
VOCAB = 100
MAX_POS = 40
CHANNELS = 3
IMG = 16
PATCH = 8
NUM_PATCHES = (IMG // PATCH) ** 2          # 4
VIS_SEQ = NUM_PATCHES + 1                  # cls + patches per image
TOTAL_SEQ = TEXT_LEN + SET_SIZE * VIS_SEQ  # 18
LN_EPS = 1e-12


# ----------------------------------- kernels -----------------------------------

def _ln(x, g, b, eps):
    mu = jnp.mean(x, axis=-1, keepdims=True)
    xc = x - mu
    var = jnp.mean(xc * xc, axis=-1, keepdims=True)
    return xc * jax.lax.rsqrt(var + eps) * g + b


def _gelu_tanh(x):
    # TODO(synk): tanh approximation of GELU (HF ViLT uses exact erf GELU).
    c = math.sqrt(2.0 / math.pi)
    return 0.5 * x * (1.0 + jnp.tanh(c * (x + 0.044715 * x * x * x)))


def _linear_kernel(x_ref, w_ref, b_ref, o_ref):
    """Whole-matrix linear: x (M,K) @ w (K,N) + b (1,N) in f32."""
    o_ref[...] = jnp.dot(x_ref[...], w_ref[...],
                         preferred_element_type=jnp.float32) + b_ref[...]


def _model_kernel(emb_ref, bias_ref,
                  tg_ref, tb_ref, t0_ref,
                  ln1_g, ln1_b, qkv_w, qkv_b, o_w, o_b,
                  ln2_g, ln2_b, fc1_w, fc1_b, fc2_w, fc2_b,
                  fg_ref, fb_ref, pw_ref, pb_ref,
                  seq_ref, pooled_ref,
                  *, num_layers, num_heads, head_dim, text_len, eps):
    """Fused ViLT stack for one batch element: text-LN + all encoder layers
    + final LN + pooler.  Per-layer weights are stacked on a leading axis."""
    d_model = num_heads * head_dim
    raw = emb_ref[0].astype(jnp.float32)            # (S, D): rows[:T] are pre-LN text
    bias = bias_ref[0]                              # (1, S) additive key mask

    # ---- text embedding tail: LN(word+type+pos) + token_type_embeddings(0) ----
    text = _ln(raw[:text_len], tg_ref[...], tb_ref[...], eps) + t0_ref[...]
    h = jnp.concatenate([text, raw[text_len:]], axis=0)     # (S, D)

    def mm(a, w_bf16):
        # bf16 MXU operands (weights pre-cast in the wrapper), f32 accumulation.
        return jnp.dot(a.astype(jnp.bfloat16), w_bf16,
                       preferred_element_type=jnp.float32)

    scale = 1.0 / math.sqrt(head_dim)
    for l in range(num_layers):                               # static unroll
        # ---- self-attention block (pre-LN) ----
        x = _ln(h, ln1_g[l], ln1_b[l], eps)
        qkv = mm(x, qkv_w[l]) + qkv_b[l]                      # (S, 3D)
        ctx_parts = []
        for hd in range(num_heads):                           # static unroll
            q = qkv[:, hd * head_dim:(hd + 1) * head_dim]
            k = qkv[:, d_model + hd * head_dim:d_model + (hd + 1) * head_dim]
            v = qkv[:, 2 * d_model + hd * head_dim:2 * d_model + (hd + 1) * head_dim]
            s = jax.lax.dot_general(
                q.astype(jnp.bfloat16), k.astype(jnp.bfloat16),
                (((1,), (1,)), ((), ())),
                preferred_element_type=jnp.float32) * scale + bias   # (S, S)
            m = jnp.max(s, axis=-1, keepdims=True)
            p = jnp.exp(s - m)
            denom = jnp.sum(p, axis=-1, keepdims=True)
            p = p * pl.reciprocal(denom, approx=True)
            ctx_parts.append(
                jnp.dot(p.astype(jnp.bfloat16), v.astype(jnp.bfloat16),
                        preferred_element_type=jnp.float32))          # (S, Dh)
        ctx = jnp.concatenate(ctx_parts, axis=-1)                     # (S, D)
        h = h + mm(ctx, o_w[l]) + o_b[l]                              # residual

        # ---- MLP block (pre-LN) ----
        y = _ln(h, ln2_g[l], ln2_b[l], eps)
        y = _gelu_tanh(mm(y, fc1_w[l]) + fc1_b[l])
        h = h + mm(y, fc2_w[l]) + fc2_b[l]                            # residual

    # ---- final LayerNorm + pooler ----
    ln_out = _ln(h, fg_ref[...], fb_ref[...], eps)
    seq_ref[0] = ln_out
    cls_row = ln_out[0:1, :]                                          # (1, D)
    pooled_ref[0] = jnp.tanh(jnp.dot(cls_row, pw_ref[...],
                                     preferred_element_type=jnp.float32) + pb_ref[...])


# --------------------------------- pallas wrappers ------------------------------

def pallas_linear(x, w, b):
    M, K = x.shape
    N = w.shape[1]
    return pl.pallas_call(
        _linear_kernel,
        grid=(1,),
        in_specs=[pl.BlockSpec((M, K), lambda i: (0, 0)),
                  pl.BlockSpec((K, N), lambda i: (0, 0)),
                  pl.BlockSpec((1, N), lambda i: (0, 0))],
        out_specs=pl.BlockSpec((M, N), lambda i: (0, 0)),
        out_shape=jax.ShapeDtypeStruct((M, N), jnp.float32),
    )(x.astype(jnp.float32), w, b)


def pallas_vilt_stack(emb, bias, p):
    """One fused pallas_call over the full transformer stack, grid over batch."""
    B, S, D = emb.shape
    L, I = NUM_LAYERS, INTERMEDIATE

    def cspec(shape):
        zeros = (0,) * len(shape)
        return pl.BlockSpec(shape, lambda b, z=zeros: z)   # grid-invariant weight

    # Pre-cast matmul weights to bf16 (halves DMA, removes in-kernel casts).
    qkv_w = p["L_qkv_w"].astype(jnp.bfloat16)
    o_w = p["L_o_w"].astype(jnp.bfloat16)
    fc1_w = p["L_fc1_w"].astype(jnp.bfloat16)
    fc2_w = p["L_fc2_w"].astype(jnp.bfloat16)

    kernel = functools.partial(_model_kernel, num_layers=L, num_heads=NUM_HEADS,
                               head_dim=HEAD_DIM, text_len=TEXT_LEN, eps=LN_EPS)
    return pl.pallas_call(
        kernel,
        grid=(B,),
        in_specs=[
            pl.BlockSpec((1, S, D), lambda b: (b, 0, 0)),     # embeddings
            pl.BlockSpec((1, 1, S), lambda b: (b, 0, 0)),     # additive mask
            cspec((1, D)), cspec((1, D)), cspec((1, D)),      # text LN g/b, type_emb[0]
            cspec((L, 1, D)), cspec((L, 1, D)),               # ln1
            cspec((L, D, 3 * D)), cspec((L, 1, 3 * D)),       # fused qkv
            cspec((L, D, D)), cspec((L, 1, D)),               # o proj
            cspec((L, 1, D)), cspec((L, 1, D)),               # ln2
            cspec((L, D, I)), cspec((L, 1, I)),               # fc1
            cspec((L, I, D)), cspec((L, 1, D)),               # fc2
            cspec((1, D)), cspec((1, D)),                     # final LN
            cspec((D, D)), cspec((1, D)),                     # pooler
        ],
        out_specs=(pl.BlockSpec((1, S, D), lambda b: (b, 0, 0)),
                   pl.BlockSpec((1, 1, D), lambda b: (b, 0, 0))),
        out_shape=(jax.ShapeDtypeStruct((B, S, D), jnp.float32),
                   jax.ShapeDtypeStruct((B, 1, D), jnp.float32)),
        compiler_params=pltpu.CompilerParams(dimension_semantics=("parallel",)),
    )(emb, bias,
      p["text_ln_g"], p["text_ln_b"], p["type_emb"][0:1],
      p["L_ln1_g"], p["L_ln1_b"], qkv_w, p["L_qkv_b"],
      o_w, p["L_o_b"], p["L_ln2_g"], p["L_ln2_b"],
      fc1_w, p["L_fc1_b"], fc2_w, p["L_fc2_b"],
      p["final_ln_g"], p["final_ln_b"], p["pool_w"], p["pool_b"])


# -------------------------------- parameter init --------------------------------

def init_params(key):
    keys = iter(jax.random.split(key, 32))

    def nrm(shape, std=0.02):
        return (std * jax.random.normal(next(keys), shape)).astype(jnp.float32)

    D, I, L = EMB_DIM, INTERMEDIATE, NUM_LAYERS
    p = {
        # text embeddings
        "word_emb": nrm((VOCAB, D)),
        "text_pos_emb": nrm((MAX_POS, D)),
        "type_emb": nrm((2, D)),
        "text_ln_g": jnp.ones((1, D), jnp.float32),
        "text_ln_b": jnp.zeros((1, D), jnp.float32),
        # visual embeddings (patch conv weight in PyTorch layout (D, C, p, p))
        "patch_w": nrm((D, CHANNELS, PATCH, PATCH)),
        "patch_b": jnp.zeros((1, D), jnp.float32),
        "cls_token": nrm((1, 1, D)),
        "vis_pos_emb": nrm((1, VIS_SEQ, D)),
        # image-level positional embedding: nn.Parameter(torch.zeros(set, seq, emb))
        "img_pos_emb": jnp.zeros((SET_SIZE, VIS_SEQ, D), jnp.float32),
        # final LN + pooler
        "final_ln_g": jnp.ones((1, D), jnp.float32),
        "final_ln_b": jnp.zeros((1, D), jnp.float32),
        "pool_w": nrm((D, D)),
        "pool_b": jnp.zeros((1, D), jnp.float32),
        # stacked per-layer encoder weights (leading dim = NUM_LAYERS)
        "L_ln1_g": jnp.ones((L, 1, D), jnp.float32),
        "L_ln1_b": jnp.zeros((L, 1, D), jnp.float32),
        "L_qkv_w": nrm((L, D, 3 * D)),
        "L_qkv_b": jnp.zeros((L, 1, 3 * D), jnp.float32),
        "L_o_w": nrm((L, D, D)),
        "L_o_b": jnp.zeros((L, 1, D), jnp.float32),
        "L_ln2_g": jnp.ones((L, 1, D), jnp.float32),
        "L_ln2_b": jnp.zeros((L, 1, D), jnp.float32),
        "L_fc1_w": nrm((L, D, I)),
        "L_fc1_b": jnp.zeros((L, 1, I), jnp.float32),
        "L_fc2_w": nrm((L, I, D)),
        "L_fc2_b": jnp.zeros((L, 1, D), jnp.float32),
    }
    return p


# ------------------------------------ forward -----------------------------------

def multiview_vilt_forward(params, input_ids, attention_mask, token_type_ids,
                           pixel_values, pixel_mask):
    # MultiviewViltModel.forward calls self.model(input_ids, token_type_ids,
    # attention_mask, ...): attention_mask/token_type_ids are swapped. Replicate.
    am = token_type_ids      # what ViltModel / ViltSetEmbeddings see as attention_mask
    tti = attention_mask     # what they see as token_type_ids

    B, T = input_ids.shape
    D = EMB_DIM

    # ---------------- ViltSetEmbeddings: text path (pre-LN sum; LN is fused) ----
    we = jnp.take(params["word_emb"], input_ids, axis=0)              # (B, T, D)
    tte = jnp.take(params["type_emb"], tti, axis=0)                   # (B, T, D)
    pos = params["text_pos_emb"][:T][None]                            # (1, T, D)
    text_sum = we + tte + pos                                         # (B, T, D)

    # ---------------- ViltSetEmbeddings: visual path ----------------
    Bp, S_set, C, H, W = pixel_values.shape
    nph, npw = H // PATCH, W // PATCH
    nP = nph * npw
    x = pixel_values.reshape(Bp * S_set, C, nph, PATCH, npw, PATCH)
    x = x.transpose(0, 2, 4, 1, 3, 5).reshape(Bp * S_set * nP, C * PATCH * PATCH)
    w_patch = params["patch_w"].reshape(D, C * PATCH * PATCH).T       # conv == matmul
    patches = pallas_linear(x, w_patch, params["patch_b"])            # (B*set*nP, D)
    patches = patches.reshape(Bp * S_set, nP, D)
    cls = jnp.broadcast_to(params["cls_token"], (Bp * S_set, 1, D))
    vis = jnp.concatenate([cls, patches], axis=1)                     # (B*set, Sv, D)
    # patch pos emb + token_type_embeddings(ones) row; XLA fuses these adds.
    vis = vis + params["vis_pos_emb"] + params["type_emb"][1][None, None]
    vis = vis.reshape(Bp, S_set, VIS_SEQ, D) + params["img_pos_emb"][None]
    vis = vis.reshape(Bp, S_set * VIS_SEQ, D)
    vis_mask = jnp.ones((Bp, S_set * VIS_SEQ), dtype=am.dtype)

    embeddings = jnp.concatenate([text_sum, vis], axis=1)             # (B, 18, D)
    masks = jnp.concatenate([am, vis_mask], axis=1)                   # (B, 18)

    # ---------------- ViltModel: fused encoder stack ----------------
    # Pad the sequence to a sublane multiple (18 -> 24). Padded keys carry
    # mask=0 -> additive bias = finfo.min; padded query rows are dropped below.
    S = embeddings.shape[1]
    pad = (-S) % 8
    embeddings = jnp.pad(embeddings, ((0, 0), (0, pad), (0, 0)))
    masks = jnp.pad(masks, ((0, 0), (0, pad)))
    bias = ((1.0 - masks.astype(jnp.float32))
            * jnp.finfo(jnp.float32).min)[:, None, :]                 # (B, 1, S_pad)

    seq_pad, pooled = pallas_vilt_stack(embeddings.astype(jnp.float32), bias, params)
    sequence_output = seq_pad[:, :S, :]                               # drop padding
    pooled_output = pooled[:, 0, :]
    return sequence_output, pooled_output


# ------------------------------------- main --------------------------------------

if __name__ == "__main__":
    key = jax.random.PRNGKey(0)
    kp, k_ids, k_pix = jax.random.split(key, 3)
    params = init_params(kp)

    input_ids = jax.random.randint(k_ids, (BATCH, TEXT_LEN), 0, VOCAB, dtype=jnp.int32)
    attention_mask = jnp.ones((BATCH, TEXT_LEN), dtype=jnp.int32)
    token_type_ids = jnp.zeros((BATCH, TEXT_LEN), dtype=jnp.int32)
    pixel_values = jax.random.normal(k_pix, (BATCH, SET_SIZE, CHANNELS, IMG, IMG),
                                     dtype=jnp.float32)
    pixel_mask = jnp.ones((BATCH, SET_SIZE, IMG, IMG), dtype=jnp.int32)

    fwd = jax.jit(multiview_vilt_forward)
    seq_out, pooled = fwd(params, input_ids, attention_mask, token_type_ids,
                          pixel_values, pixel_mask)
    jax.block_until_ready((seq_out, pooled))

    assert seq_out.shape == (BATCH, TOTAL_SEQ, EMB_DIM), seq_out.shape
    assert pooled.shape == (BATCH, EMB_DIM), pooled.shape
    assert bool(jnp.isfinite(seq_out).all()) and bool(jnp.isfinite(pooled).all())
    print("KERNEL_OK")
</pallas_src>

<mosaic_0001>
module attributes {stable_mosaic.version = 11 : i64} {
  func.func @_linear_kernel(%arg0: i32, %arg1: memref<16x192xf32, #tpu.memory_space<vmem>>, %arg2: memref<192x32xf32, #tpu.memory_space<vmem>>, %arg3: memref<1x32xf32, #tpu.memory_space<vmem>>, %arg4: memref<16x32xf32, #tpu.memory_space<vmem>>) attributes {dimension_semantics = [#tpu.dimension_semantics<arbitrary>], iteration_bounds = array<i64: 1>, scalar_prefetch = 0 : i64, scratch_operands = 0 : i64, tpu.core_type = #tpu.core_type<tc>, window_params = [{pipeline_mode = #tpu.pipeline_mode<synchronous>, transform_indices = @transform_0, window_bounds = array<i64: 16, 192>}, {pipeline_mode = #tpu.pipeline_mode<synchronous>, transform_indices = @transform_1, window_bounds = array<i64: 192, 32>}, {pipeline_mode = #tpu.pipeline_mode<synchronous>, transform_indices = @transform_2, window_bounds = array<i64: 1, 32>}, {pipeline_mode = #tpu.pipeline_mode<synchronous>, transform_indices = @transform_3, window_bounds = array<i64: 16, 32>}]} {
    %c0 = arith.constant 0 : index
    %c0_0 = arith.constant 0 : index
    %0 = vector.load %arg1[%c0, %c0_0] : memref<16x192xf32, #tpu.memory_space<vmem>>, vector<16x192xf32>
    %c0_1 = arith.constant 0 : index
    %c0_2 = arith.constant 0 : index
    %1 = vector.load %arg2[%c0_1, %c0_2] : memref<192x32xf32, #tpu.memory_space<vmem>>, vector<192x32xf32>
    %cst = arith.constant dense<0.000000e+00> : vector<16x32xf32>
    %2 = tpu.matmul %0, %1, %cst {dimension_numbers = #tpu.dot_dimension_numbers<[1], [0], [0], [1], [0, 0, 1, 1], [], []>} : vector<16x192xf32>, vector<192x32xf32>, vector<16x32xf32> -> vector<16x32xf32>
    %c0_3 = arith.constant 0 : index
    %c0_4 = arith.constant 0 : index
    %3 = vector.load %arg3[%c0_3, %c0_4] : memref<1x32xf32, #tpu.memory_space<vmem>>, vector<1x32xf32>
    %4 = vector.broadcast %3 : vector<1x32xf32> to vector<16x32xf32>
    %5 = arith.addf %2, %4 : vector<16x32xf32>
    %c0_5 = arith.constant 0 : index
    %c0_6 = arith.constant 0 : index
    %6 = vector.load %arg4[%c0_5, %c0_6] : memref<16x32xf32, #tpu.memory_space<vmem>>, vector<16x32xf32>
    tpu.vector_store %arg4[%c0_5, %c0_6], %5 {strides = array<i32>} : memref<16x32xf32, #tpu.memory_space<vmem>>, vector<16x32xf32>,
    return
  }
  func.func @transform_0(%arg0: i32) -> (i32, i32) {
    %c0_i32 = arith.constant 0 : i32
    %c0_i32_0 = arith.constant 0 : i32
    %c0_i32_1 = arith.constant 0 : i32
    return %c0_i32, %c0_i32_0 : i32, i32
  }
  func.func @transform_1(%arg0: i32) -> (i32, i32) {
    %c0_i32 = arith.constant 0 : i32
    %c0_i32_0 = arith.constant 0 : i32
    %c0_i32_1 = arith.constant 0 : i32
    return %c0_i32, %c0_i32_0 : i32, i32
  }
  func.func @transform_2(%arg0: i32) -> (i32, i32) {
    %c0_i32 = arith.constant 0 : i32
    %c0_i32_0 = arith.constant 0 : i32
    %c0_i32_1 = arith.constant 0 : i32
    return %c0_i32, %c0_i32_0 : i32, i32
  }
  func.func @transform_3(%arg0: i32) -> (i32, i32) {
    %c0_i32 = arith.constant 0 : i32
    %c0_i32_0 = arith.constant 0 : i32
    %c0_i32_1 = arith.constant 0 : i32
    return %c0_i32, %c0_i32_0 : i32, i32
  }
}

module attributes {stable_mosaic.version = 11 : i64} {
  func.func @_model_kernel(%arg0: i32, %arg1: memref<1x24x32xf32, #tpu.memory_space<vmem>>, %arg2: memref<1x1x24xf32, #tpu.memory_space<vmem>>, %arg3: memref<1x32xf32, #tpu.memory_space<vmem>>, %arg4: memref<1x32xf32, #tpu.memory_space<vmem>>, %arg5: memref<1x32xf32, #tpu.memory_space<vmem>>, %arg6: memref<2x1x32xf32, #tpu.memory_space<vmem>>, %arg7: memref<2x1x32xf32, #tpu.memory_space<vmem>>, %arg8: memref<2x32x96xbf16, #tpu.memory_space<vmem>>, %arg9: memref<2x1x96xf32, #tpu.memory_space<vmem>>, %arg10: memref<2x32x32xbf16, #tpu.memory_space<vmem>>, %arg11: memref<2x1x32xf32, #tpu.memory_space<vmem>>, %arg12: memref<2x1x32xf32, #tpu.memory_space<vmem>>, %arg13: memref<2x1x32xf32, #tpu.memory_space<vmem>>, %arg14: memref<2x32x64xbf16, #tpu.memory_space<vmem>>, %arg15: memref<2x1x64xf32, #tpu.memory_space<vmem>>, %arg16: memref<2x64x32xbf16, #tpu.memory_space<vmem>>, %arg17: memref<2x1x32xf32, #tpu.memory_space<vmem>>, %arg18: memref<1x32xf32, #tpu.memory_space<vmem>>, %arg19: memref<1x32xf32, #tpu.memory_space<vmem>>, %arg20: memref<32x32xf32, #tpu.memory_space<vmem>>, %arg21: memref<1x32xf32, #tpu.memory_space<vmem>>, %arg22: memref<1x24x32xf32, #tpu.memory_space<vmem>>, %arg23: memref<1x1x32xf32, #tpu.memory_space<vmem>>) attributes {dimension_semantics = [#tpu.dimension_semantics<parallel>], iteration_bounds = array<i64: 2>, scalar_prefetch = 0 : i64, scratch_operands = 0 : i64, tpu.core_type = #tpu.core_type<tc>, window_params = [{transform_indices = @transform_0, window_bounds = array<i64: 1, 24, 32>}, {transform_indices = @transform_1, window_bounds = array<i64: 1, 1, 24>}, {pipeline_mode = #tpu.pipeline_mode<synchronous>, transform_indices = @transform_2, window_bounds = array<i64: 1, 32>}, {pipeline_mode = #tpu.pipeline_mode<synchronous>, transform_indices = @transform_3, window_bounds = array<i64: 1, 32>}, {pipeline_mode = #tpu.pipeline_mode<synchronous>, transform_indices = @transform_4, window_bounds = array<i64: 1, 32>}, {pipeline_mode = #tpu.pipeline_mode<synchronous>, transform_indices = @transform_5, window_bounds = array<i64: 2, 1, 32>}, {pipeline_mode = #tpu.pipeline_mode<synchronous>, transform_indices = @transform_6, window_bounds = array<i64: 2, 1, 32>}, {pipeline_mode = #tpu.pipeline_mode<synchronous>, transform_indices = @transform_7, window_bounds = array<i64: 2, 32, 96>}, {pipeline_mode = #tpu.pipeline_mode<synchronous>, transform_indices = @transform_8, window_bounds = array<i64: 2, 1, 96>}, {pipeline_mode = #tpu.pipeline_mode<synchronous>, transform_indices = @transform_9, window_bounds = array<i64: 2, 32, 32>}, {pipeline_mode = #tpu.pipeline_mode<synchronous>, transform_indices = @transform_10, window_bounds = array<i64: 2, 1, 32>}, {pipeline_mode = #tpu.pipeline_mode<synchronous>, transform_indices = @transform_11, window_bounds = array<i64: 2, 1, 32>}, {pipeline_mode = #tpu.pipeline_mode<synchronous>, transform_indices = @transform_12, window_bounds = array<i64: 2, 1, 32>}, {pipeline_mode = #tpu.pipeline_mode<synchronous>, transform_indices = @transform_13, window_bounds = array<i64: 2, 32, 64>}, {pipeline_mode = #tpu.pipeline_mode<synchronous>, transform_indices = @transform_14, window_bounds = array<i64: 2, 1, 64>}, {pipeline_mode = #tpu.pipeline_mode<synchronous>, transform_indices = @transform_15, window_bounds = array<i64: 2, 64, 32>}, {pipeline_mode = #tpu.pipeline_mode<synchronous>, transform_indices = @transform_16, window_bounds = array<i64: 2, 1, 32>}, {pipeline_mode = #tpu.pipeline_mode<synchronous>, transform_indices = @transform_17, window_bounds = array<i64: 1, 32>}, {pipeline_mode = #tpu.pipeline_mode<synchronous>, transform_indices = @transform_18, window_bounds = array<i64: 1, 32>}, {pipeline_mode = #tpu.pipeline_mode<synchronous>, transform_indices = @transform_19, window_bounds = array<i64: 32, 32>}, {pipeline_mode = #tpu.pipeline_mode<synchronous>, transform_indices = @transform_20, window_bounds = array<i64: 1, 32>}, {transform_indices = @transform_21, window_bounds = array<i64: 1, 24, 32>}, {transform_indices = @transform_22, window_bounds = array<i64: 1, 1, 32>}]} {
    %c0 = arith.constant 0 : index
    %c0_0 = arith.constant 0 : index
    %c0_1 = arith.constant 0 : index
    %0 = vector.load %arg1[%c0, %c0_0, %c0_1] : memref<1x24x32xf32, #tpu.memory_space<vmem>>, vector<1x24x32xf32>
    %1 = vector.shape_cast %0 : vector<1x24x32xf32> to vector<24x32xf32>
    %c0_2 = arith.constant 0 : index
    %c0_3 = arith.constant 0 : index
    %c0_4 = arith.constant 0 : index
    %2 = vector.load %arg2[%c0_2, %c0_3, %c0_4] : memref<1x1x24xf32, #tpu.memory_space<vmem>>, vector<1x1x24xf32>
    %3 = vector.shape_cast %2 : vector<1x1x24xf32> to vector<1x24xf32>
    %4 = vector.extract_strided_slice %1 {offsets = [0, 0], sizes = [8, 32], strides = [1, 1]} : vector<24x32xf32> to vector<8x32xf32>
    %c0_5 = arith.constant 0 : index
    %c0_6 = arith.constant 0 : index
    %5 = vector.load %arg3[%c0_5, %c0_6] : memref<1x32xf32, #tpu.memory_space<vmem>>, vector<1x32xf32>
    %c0_7 = arith.constant 0 : index
    %c0_8 = arith.constant 0 : index
    %6 = vector.load %arg4[%c0_7, %c0_8] : memref<1x32xf32, #tpu.memory_space<vmem>>, vector<1x32xf32>
    %cst = arith.constant dense<0.000000e+00> : vector<8xf32>
    %7 = vector.multi_reduction <add>, %4, %cst [1] : vector<8x32xf32> to vector<8xf32>
    %8 = vector.shape_cast %7 : vector<8xf32> to vector<8x1xf32>
    %cst_9 = arith.constant 3.200000e+01 : f32
    %9 = vector.broadcast %cst_9 : f32 to vector<8x1xf32>
    %10 = arith.divf %8, %9 : vector<8x1xf32>
    %11 = vector.broadcast %10 : vector<8x1xf32> to vector<8x32xf32>
    %12 = arith.subf %4, %11 : vector<8x32xf32>
    %13 = arith.mulf %12, %12 : vector<8x32xf32>
    %cst_10 = arith.constant dense<0.000000e+00> : vector<8xf32>
    %14 = vector.multi_reduction <add>, %13, %cst_10 [1] : vector<8x32xf32> to vector<8xf32>
    %15 = vector.shape_cast %14 : vector<8xf32> to vector<8x1xf32>
    %cst_11 = arith.constant 3.200000e+01 : f32
    %16 = vector.broadcast %cst_11 : f32 to vector<8x1xf32>
    %17 = arith.divf %15, %16 : vector<8x1xf32>
    %cst_12 = arith.constant 9.99999996E-13 : f32
    %18 = vector.broadcast %cst_12 : f32 to vector<8x1xf32>
    %19 = arith.addf %17, %18 : vector<8x1xf32>
    %20 = math.rsqrt %19 : vector<8x1xf32>
    %21 = vector.broadcast %20 : vector<8x1xf32> to vector<8x32xf32>
    %22 = arith.mulf %12, %21 : vector<8x32xf32>
    %23 = vector.broadcast %5 : vector<1x32xf32> to vector<8x32xf32>
    %24 = arith.mulf %22, %23 : vector<8x32xf32>
    %25 = vector.broadcast %6 : vector<1x32xf32> to vector<8x32xf32>
    %26 = arith.addf %24, %25 : vector<8x32xf32>
    %c0_13 = arith.constant 0 : index
    %c0_14 = arith.constant 0 : index
    %27 = vector.load %arg5[%c0_13, %c0_14] : memref<1x32xf32, #tpu.memory_space<vmem>>, vector<1x32xf32>
    %28 = vector.broadcast %27 : vector<1x32xf32> to vector<8x32xf32>
    %29 = arith.addf %26, %28 : vector<8x32xf32>
    %30 = vector.extract_strided_slice %1 {offsets = [8, 0], sizes = [16, 32], strides = [1, 1]} : vector<24x32xf32> to vector<16x32xf32>
    %31 = tpu.concatenate %29, %30 in 0 : vector<8x32xf32>, vector<16x32xf32> -> vector<24x32xf32>
    %c0_15 = arith.constant 0 : index
    %c0_16 = arith.constant 0 : index
    %c0_17 = arith.constant 0 : index
    %32 = vector.load %arg6[%c0_15, %c0_16, %c0_17] : memref<2x1x32xf32, #tpu.memory_space<vmem>>, vector<1x1x32xf32>
    %33 = vector.shape_cast %32 : vector<1x1x32xf32> to vector<1x32xf32>
    %c0_18 = arith.constant 0 : index
    %c0_19 = arith.constant 0 : index
    %c0_20 = arith.constant 0 : index
    %34 = vector.load %arg7[%c0_18, %c0_19, %c0_20] : memref<2x1x32xf32, #tpu.memory_space<vmem>>, vector<1x1x32xf32>
    %35 = vector.shape_cast %34 : vector<1x1x32xf32> to vector<1x32xf32>
    %cst_21 = arith.constant dense<0.000000e+00> : vector<24xf32>
    %36 = vector.multi_reduction <add>, %31, %cst_21 [1] : vector<24x32xf32> to vector<24xf32>
    %37 = vector.shape_cast %36 : vector<24xf32> to vector<24x1xf32>
    %cst_22 = arith.constant 3.200000e+01 : f32
    %38 = vector.broadcast %cst_22 : f32 to vector<24x1xf32>
    %39 = arith.divf %37, %38 : vector<24x1xf32>
    %40 = vector.broadcast %39 : vector<24x1xf32> to vector<24x32xf32>
    %41 = arith.subf %31, %40 : vector<24x32xf32>
    %42 = arith.mulf %41, %41 : vector<24x32xf32>
    %cst_23 = arith.constant dense<0.000000e+00> : vector<24xf32>
    %43 = vector.multi_reduction <add>, %42, %cst_23 [1] : vector<24x32xf32> to vector<24xf32>
    %44 = vector.shape_cast %43 : vector<24xf32> to vector<24x1xf32>
    %cst_24 = arith.constant 3.200000e+01 : f32
    %45 = vector.broadcast %cst_24 : f32 to vector<24x1xf32>
    %46 = arith.divf %44, %45 : vector<24x1xf32>
    %cst_25 = arith.constant 9.99999996E-13 : f32
    %47 = vector.broadcast %cst_25 : f32 to vector<24x1xf32>
    %48 = arith.addf %46, %47 : vector<24x1xf32>
    %49 = math.rsqrt %48 : vector<24x1xf32>
    %50 = vector.broadcast %49 : vector<24x1xf32> to vector<24x32xf32>
    %51 = arith.mulf %41, %50 : vector<24x32xf32>
    %52 = vector.broadcast %33 : vector<1x32xf32> to vector<24x32xf32>
    %53 = arith.mulf %51, %52 : vector<24x32xf32>
    %54 = vector.broadcast %35 : vector<1x32xf32> to vector<24x32xf32>
    %55 = arith.addf %53, %54 : vector<24x32xf32>
    %c0_26 = arith.constant 0 : index
    %c0_27 = arith.constant 0 : index
    %c0_28 = arith.constant 0 : index
    %56 = vector.load %arg8[%c0_26, %c0_27, %c0_28] : memref<2x32x96xbf16, #tpu.memory_space<vmem>>, vector<1x32x96xbf16>
    %57 = vector.shape_cast %56 : vector<1x32x96xbf16> to vector<32x96xbf16>
    %58 = arith.truncf %55 : vector<24x32xf32> to vector<24x32xbf16>
    %cst_29 = arith.constant dense<0.000000e+00> : vector<24x96xf32>
    %59 = tpu.matmul %58, %57, %cst_29 {dimension_numbers = #tpu.dot_dimension_numbers<[1], [0], [0], [1], [0, 0, 1, 1], [], []>} : vector<24x32xbf16>, vector<32x96xbf16>, vector<24x96xf32> -> vector<24x96xf32>
    %c0_30 = arith.constant 0 : index
    %c0_31 = arith.constant 0 : index
    %c0_32 = arith.constant 0 : index
    %60 = vector.load %arg9[%c0_30, %c0_31, %c0_32] : memref<2x1x96xf32, #tpu.memory_space<vmem>>, vector<1x1x96xf32>
    %61 = vector.shape_cast %60 : vector<1x1x96xf32> to vector<1x96xf32>
    %62 = vector.broadcast %61 : vector<1x96xf32> to vector<24x96xf32>
    %63 = arith.addf %59, %62 : vector<24x96xf32>
    %64 = vector.extract_strided_slice %63 {offsets = [0, 0], sizes = [24, 16], strides = [1, 1]} : vector<24x96xf32> to vector<24x16xf32>
    %65 = vector.extract_strided_slice %63 {offsets = [0, 32], sizes = [24, 16], strides = [1, 1]} : vector<24x96xf32> to vector<24x16xf32>
    %66 = vector.extract_strided_slice %63 {offsets = [0, 64], sizes = [24, 16], strides = [1, 1]} : vector<24x96xf32> to vector<24x16xf32>
    %67 = arith.truncf %64 : vector<24x16xf32> to vector<24x16xbf16>
    %68 = arith.truncf %65 : vector<24x16xf32> to vector<24x16xbf16>
    %cst_33 = arith.constant dense<0.000000e+00> : vector<24x24xf32>
    %69 = tpu.matmul %67, %68, %cst_33 {dimension_numbers = #tpu.dot_dimension_numbers<[1], [1], [0], [0], [0, 0, 1, 0], [], []>} : vector<24x16xbf16>, vector<24x16xbf16>, vector<24x24xf32> -> vector<24x24xf32>
    %cst_34 = arith.constant 2.500000e-01 : f32
    %70 = vector.broadcast %cst_34 : f32 to vector<24x24xf32>
    %71 = arith.mulf %69, %70 : vector<24x24xf32>
    %72 = vector.broadcast %3 : vector<1x24xf32> to vector<24x24xf32>
    %73 = arith.addf %71, %72 : vector<24x24xf32>
    %cst_35 = arith.constant dense<0xFF800000> : vector<24xf32>
    %74 = vector.multi_reduction <maximumf>, %73, %cst_35 [1] : vector<24x24xf32> to vector<24xf32>
    %75 = vector.shape_cast %74 : vector<24xf32> to vector<24x1xf32>
    %76 = vector.broadcast %75 : vector<24x1xf32> to vector<24x24xf32>
    %77 = arith.subf %73, %76 : vector<24x24xf32>
    %78 = math.exp %77 : vector<24x24xf32>
    %cst_36 = arith.constant dense<0.000000e+00> : vector<24xf32>
    %79 = vector.multi_reduction <add>, %78, %cst_36 [1] : vector<24x24xf32> to vector<24xf32>
    %80 = vector.shape_cast %79 : vector<24xf32> to vector<24x1xf32>
    %81 = tpu.reciprocal %80 {approx = true} : vector<24x1xf32> -> vector<24x1xf32>
    %82 = vector.broadcast %81 : vector<24x1xf32> to vector<24x24xf32>
    %83 = arith.mulf %78, %82 : vector<24x24xf32>
    %84 = arith.truncf %83 : vector<24x24xf32> to vector<24x24xbf16>
    %85 = arith.truncf %66 : vector<24x16xf32> to vector<24x16xbf16>
    %cst_37 = arith.constant dense<0.000000e+00> : vector<24x16xf32>
    %86 = tpu.matmul %84, %85, %cst_37 {dimension_numbers = #tpu.dot_dimension_numbers<[1], [0], [0], [1], [0, 0, 1, 1], [], []>} : vector<24x24xbf16>, vector<24x16xbf16>, vector<24x16xf32> -> vector<24x16xf32>
    %87 = vector.extract_strided_slice %63 {offsets = [0, 16], sizes = [24, 16], strides = [1, 1]} : vector<24x96xf32> to vector<24x16xf32>
    %88 = vector.extract_strided_slice %63 {offsets = [0, 48], sizes = [24, 16], strides = [1, 1]} : vector<24x96xf32> to vector<24x16xf32>
    %89 = vector.extract_strided_slice %63 {offsets = [0, 80], sizes = [24, 16], strides = [1, 1]} : vector<24x96xf32> to vector<24x16xf32>
    %90 = arith.truncf %87 : vector<24x16xf32> to vector<24x16xbf16>
    %91 = arith.truncf %88 : vector<24x16xf32> to vector<24x16xbf16>
    %cst_38 = arith.constant dense<0.000000e+00> : vector<24x24xf32>
    %92 = tpu.matmul %90, %91, %cst_38 {dimension_numbers = #tpu.dot_dimension_numbers<[1], [1], [0], [0], [0, 0, 1, 0], [], []>} : vector<24x16xbf16>, vector<24x16xbf16>, vector<24x24xf32> -> vector<24x24xf32>
    %cst_39 = arith.constant 2.500000e-01 : f32
    %93 = vector.broadcast %cst_39 : f32 to vector<24x24xf32>
    %94 = arith.mulf %92, %93 : vector<24x24xf32>
    %95 = vector.broadcast %3 : vector<1x24xf32> to vector<24x24xf32>
    %96 = arith.addf %94, %95 : vector<24x24xf32>
    %cst_40 = arith.constant dense<0xFF800000> : vector<24xf32>
    %97 = vector.multi_reduction <maximumf>, %96, %cst_40 [1] : vector<24x24xf32> to vector<24xf32>
    %98 = vector.shape_cast %97 : vector<24xf32> to vector<24x1xf32>
    %99 = vector.broadcast %98 : vector<24x1xf32> to vector<24x24xf32>
    %100 = arith.subf %96, %99 : vector<24x24xf32>
    %101 = math.exp %100 : vector<24x24xf32>
    %cst_41 = arith.constant dense<0.000000e+00> : vector<24xf32>
    %102 = vector.multi_reduction <add>, %101, %cst_41 [1] : vector<24x24xf32> to vector<24xf32>
    %103 = vector.shape_cast %102 : vector<24xf32> to vector<24x1xf32>
    %104 = tpu.reciprocal %103 {approx = true} : vector<24x1xf32> -> vector<24x1xf32>
    %105 = vector.broadcast %104 : vector<24x1xf32> to vector<24x24xf32>
    %106 = arith.mulf %101, %105 : vector<24x24xf32>
    %107 = arith.truncf %106 : vector<24x24xf32> to vector<24x24xbf16>
    %108 = arith.truncf %89 : vector<24x16xf32> to vector<24x16xbf16>
    %cst_42 = arith.constant dense<0.000000e+00> : vector<24x16xf32>
    %109 = tpu.matmul %107, %108, %cst_42 {dimension_numbers = #tpu.dot_dimension_numbers<[1], [0], [0], [1], [0, 0, 1, 1], [], []>} : vector<24x24xbf16>, vector<24x16xbf16>, vector<24x16xf32> -> vector<24x16xf32>
    %110 = tpu.concatenate %86, %109 in 1 : vector<24x16xf32>, vector<24x16xf32> -> vector<24x32xf32>
    %c0_43 = arith.constant 0 : index
    %c0_44 = arith.constant 0 : index
    %c0_45 = arith.constant 0 : index
    %111 = vector.load %arg10[%c0_43, %c0_44, %c0_45] : memref<2x32x32xbf16, #tpu.memory_space<vmem>>, vector<1x32x32xbf16>
    %112 = vector.shape_cast %111 : vector<1x32x32xbf16> to vector<32x32xbf16>
    %113 = arith.truncf %110 : vector<24x32xf32> to vector<24x32xbf16>
    %cst_46 = arith.constant dense<0.000000e+00> : vector<24x32xf32>
    %114 = tpu.matmul %113, %112, %cst_46 {dimension_numbers = #tpu.dot_dimension_numbers<[1], [0], [0], [1], [0, 0, 1, 1], [], []>} : vector<24x32xbf16>, vector<32x32xbf16>, vector<24x32xf32> -> vector<24x32xf32>
    %115 = arith.addf %31, %114 : vector<24x32xf32>
    %c0_47 = arith.constant 0 : index
    %c0_48 = arith.constant 0 : index
    %c0_49 = arith.constant 0 : index
    %116 = vector.load %arg11[%c0_47, %c0_48, %c0_49] : memref<2x1x32xf32, #tpu.memory_space<vmem>>, vector<1x1x32xf32>
    %117 = vector.shape_cast %116 : vector<1x1x32xf32> to vector<1x32xf32>
    %118 = vector.broadcast %117 : vector<1x32xf32> to vector<24x32xf32>
    %119 = arith.addf %115, %118 : vector<24x32xf32>
    %c0_50 = arith.constant 0 : index
    %c0_51 = arith.constant 0 : index
    %c0_52 = arith.constant 0 : index
    %120 = vector.load %arg12[%c0_50, %c0_51, %c0_52] : memref<2x1x32xf32, #tpu.memory_space<vmem>>, vector<1x1x32xf32>
    %121 = vector.shape_cast %120 : vector<1x1x32xf32> to vector<1x32xf32>
    %c0_53 = arith.constant 0 : index
    %c0_54 = arith.constant 0 : index
    %c0_55 = arith.constant 0 : index
    %122 = vector.load %arg13[%c0_53, %c0_54, %c0_55] : memref<2x1x32xf32, #tpu.memory_space<vmem>>, vector<1x1x32xf32>
    %123 = vector.shape_cast %122 : vector<1x1x32xf32> to vector<1x32xf32>
    %cst_56 = arith.constant dense<0.000000e+00> : vector<24xf32>
    %124 = vector.multi_reduction <add>, %119, %cst_56 [1] : vector<24x32xf32> to vector<24xf32>
    %125 = vector.shape_cast %124 : vector<24xf32> to vector<24x1xf32>
    %cst_57 = arith.constant 3.200000e+01 : f32
    %126 = vector.broadcast %cst_57 : f32 to vector<24x1xf32>
    %127 = arith.divf %125, %126 : vector<24x1xf32>
    %128 = vector.broadcast %127 : vector<24x1xf32> to vector<24x32xf32>
    %129 = arith.subf %119, %128 : vector<24x32xf32>
    %130 = arith.mulf %129, %129 : vector<24x32xf32>
    %cst_58 = arith.constant dense<0.000000e+00> : vector<24xf32>
    %131 = vector.multi_reduction <add>, %130, %cst_58 [1] : vector<24x32xf32> to vector<24xf32>
    %132 = vector.shape_cast %131 : vector<24xf32> to vector<24x1xf32>
    %cst_59 = arith.constant 3.200000e+01 : f32
    %133 = vector.broadcast %cst_59 : f32 to vector<24x1xf32>
    %134 = arith.divf %132, %133 : vector<24x1xf32>
    %cst_60 = arith.constant 9.99999996E-13 : f32
    %135 = vector.broadcast %cst_60 : f32 to vector<24x1xf32>
    %136 = arith.addf %134, %135 : vector<24x1xf32>
    %137 = math.rsqrt %136 : vector<24x1xf32>
    %138 = vector.broadcast %137 : vector<24x1xf32> to vector<24x32xf32>
    %139 = arith.mulf %129, %138 : vector<24x32xf32>
    %140 = vector.broadcast %121 : vector<1x32xf32> to vector<24x32xf32>
    %141 = arith.mulf %139, %140 : vector<24x32xf32>
    %142 = vector.broadcast %123 : vector<1x32xf32> to vector<24x32xf32>
    %143 = arith.addf %141, %142 : vector<24x32xf32>
    %c0_61 = arith.constant 0 : index
    %c0_62 = arith.constant 0 : index
    %c0_63 = arith.constant 0 : index
    %144 = vector.load %arg14[%c0_61, %c0_62, %c0_63] : memref<2x32x64xbf16, #tpu.memory_space<vmem>>, vector<1x32x64xbf16>
    %145 = vector.shape_cast %144 : vector<1x32x64xbf16> to vector<32x64xbf16>
    %146 = arith.truncf %143 : vector<24x32xf32> to vector<24x32xbf16>
    %cst_64 = arith.constant dense<0.000000e+00> : vector<24x64xf32>
    %147 = tpu.matmul %146, %145, %cst_64 {dimension_numbers = #tpu.dot_dimension_numbers<[1], [0], [0], [1], [0, 0, 1, 1], [], []>} : vector<24x32xbf16>, vector<32x64xbf16>, vector<24x64xf32> -> vector<24x64xf32>
    %c0_65 = arith.constant 0 : index
    %c0_66 = arith.constant 0 : index
    %c0_67 = arith.constant 0 : index
    %148 = vector.load %arg15[%c0_65, %c0_66, %c0_67] : memref<2x1x64xf32, #tpu.memory_space<vmem>>, vector<1x1x64xf32>
    %149 = vector.shape_cast %148 : vector<1x1x64xf32> to vector<1x64xf32>
    %150 = vector.broadcast %149 : vector<1x64xf32> to vector<24x64xf32>
    %151 = arith.addf %147, %150 : vector<24x64xf32>
    %cst_68 = arith.constant 5.000000e-01 : f32
    %152 = vector.broadcast %cst_68 : f32 to vector<24x64xf32>
    %153 = arith.mulf %152, %151 : vector<24x64xf32>
    %cst_69 = arith.constant 4.471500e-02 : f32
    %154 = vector.broadcast %cst_69 : f32 to vector<24x64xf32>
    %155 = arith.mulf %154, %151 : vector<24x64xf32>
    %156 = arith.mulf %155, %151 : vector<24x64xf32>
    %157 = arith.mulf %156, %151 : vector<24x64xf32>
    %158 = arith.addf %151, %157 : vector<24x64xf32>
    %cst_70 = arith.constant 0.797884583 : f32
    %159 = vector.broadcast %cst_70 : f32 to vector<24x64xf32>
    %160 = arith.mulf %159, %158 : vector<24x64xf32>
    %161 = math.tanh %160 : vector<24x64xf32>
    %cst_71 = arith.constant 1.000000e+00 : f32
    %162 = vector.broadcast %cst_71 : f32 to vector<24x64xf32>
    %163 = arith.addf %162, %161 : vector<24x64xf32>
    %164 = arith.mulf %153, %163 : vector<24x64xf32>
    %c0_72 = arith.constant 0 : index
    %c0_73 = arith.constant 0 : index
    %c0_74 = arith.constant 0 : index
    %165 = vector.load %arg16[%c0_72, %c0_73, %c0_74] : memref<2x64x32xbf16, #tpu.memory_space<vmem>>, vector<1x64x32xbf16>
    %166 = vector.shape_cast %165 : vector<1x64x32xbf16> to vector<64x32xbf16>
    %167 = arith.truncf %164 : vector<24x64xf32> to vector<24x64xbf16>
    %cst_75 = arith.constant dense<0.000000e+00> : vector<24x32xf32>
    %168 = tpu.matmul %167, %166, %cst_75 {dimension_numbers = #tpu.dot_dimension_numbers<[1], [0], [0], [1], [0, 0, 1, 1], [], []>} : vector<24x64xbf16>, vector<64x32xbf16>, vector<24x32xf32> -> vector<24x32xf32>
    %169 = arith.addf %119, %168 : vector<24x32xf32>
    %c0_76 = arith.constant 0 : index
    %c0_77 = arith.constant 0 : index
    %c0_78 = arith.constant 0 : index
    %170 = vector.load %arg17[%c0_76, %c0_77, %c0_78] : memref<2x1x32xf32, #tpu.memory_space<vmem>>, vector<1x1x32xf32>
    %171 = vector.shape_cast %170 : vector<1x1x32xf32> to vector<1x32xf32>
    %172 = vector.broadcast %171 : vector<1x32xf32> to vector<24x32xf32>
    %173 = arith.addf %169, %172 : vector<24x32xf32>
    %c1 = arith.constant 1 : index
    %c0_79 = arith.constant 0 : index
    %c0_80 = arith.constant 0 : index
    %174 = vector.load %arg6[%c1, %c0_79, %c0_80] : memref<2x1x32xf32, #tpu.memory_space<vmem>>, vector<1x1x32xf32>
    %175 = vector.shape_cast %174 : vector<1x1x32xf32> to vector<1x32xf32>
    %c1_81 = arith.constant 1 : index
    %c0_82 = arith.constant 0 : index
    %c0_83 = arith.constant 0 : index
    %176 = vector.load %arg7[%c1_81, %c0_82, %c0_83] : memref<2x1x32xf32, #tpu.memory_space<vmem>>, vector<1x1x32xf32>
    %177 = vector.shape_cast %176 : vector<1x1x32xf32> to vector<1x32xf32>
    %cst_84 = arith.constant dense<0.000000e+00> : vector<24xf32>
    %178 = vector.multi_reduction <add>, %173, %cst_84 [1] : vector<24x32xf32> to vector<24xf32>
    %179 = vector.shape_cast %178 : vector<24xf32> to vector<24x1xf32>
    %cst_85 = arith.constant 3.200000e+01 : f32
    %180 = vector.broadcast %cst_85 : f32 to vector<24x1xf32>
    %181 = arith.divf %179, %180 : vector<24x1xf32>
    %182 = vector.broadcast %181 : vector<24x1xf32> to vector<24x32xf32>
    %183 = arith.subf %173, %182 : vector<24x32xf32>
    %184 = arith.mulf %183, %183 : vector<24x32xf32>
    %cst_86 = arith.constant dense<0.000000e+00> : vector<24xf32>
    %185 = vector.multi_reduction <add>, %184, %cst_86 [1] : vector<24x32xf32> to vector<24xf32>
    %186 = vector.shape_cast %185 : vector<24xf32> to vector<24x1xf32>
    %cst_87 = arith.constant 3.200000e+01 : f32
    %187 = vector.broadcast %cst_87 : f32 to vector<24x1xf32>
    %188 = arith.divf %186, %187 : vector<24x1xf32>
    %cst_88 = arith.constant 9.99999996E-13 : f32
    %189 = vector.broadcast %cst_88 : f32 to vector<24x1xf32>
    %190 = arith.addf %188, %189 : vector<24x1xf32>
    %191 = math.rsqrt %190 : vector<24x1xf32>
    %192 = vector.broadcast %191 : vector<24x1xf32> to vector<24x32xf32>
    %193 = arith.mulf %183, %192 : vector<24x32xf32>
    %194 = vector.broadcast %175 : vector<1x32xf32> to vector<24x32xf32>
    %195 = arith.mulf %193, %194 : vector<24x32xf32>
    %196 = vector.broadcast %177 : vector<1x32xf32> to vector<24x32xf32>
    %197 = arith.addf %195, %196 : vector<24x32xf32>
    %c1_89 = arith.constant 1 : index
    %c0_90 = arith.constant 0 : index
    %c0_91 = arith.constant 0 : index
    %198 = vector.load %arg8[%c1_89, %c0_90, %c0_91] : memref<2x32x96xbf16, #tpu.memory_space<vmem>>, vector<1x32x96xbf16>
    %199 = vector.shape_cast %198 : vector<1x32x96xbf16> to vector<32x96xbf16>
    %200 = arith.truncf %197 : vector<24x32xf32> to vector<24x32xbf16>
    %cst_92 = arith.constant dense<0.000000e+00> : vector<24x96xf32>
    %201 = tpu.matmul %200, %199, %cst_92 {dimension_numbers = #tpu.dot_dimension_numbers<[1], [0], [0], [1], [0, 0, 1, 1], [], []>} : vector<24x32xbf16>, vector<32x96xbf16>, vector<24x96xf32> -> vector<24x96xf32>
    %c1_93 = arith.constant 1 : index
    %c0_94 = arith.constant 0 : index
    %c0_95 = arith.constant 0 : index
    %202 = vector.load %arg9[%c1_93, %c0_94, %c0_95] : memref<2x1x96xf32, #tpu.memory_space<vmem>>, vector<1x1x96xf32>
    %203 = vector.shape_cast %202 : vector<1x1x96xf32> to vector<1x96xf32>
    %204 = vector.broadcast %203 : vector<1x96xf32> to vector<24x96xf32>
    %205 = arith.addf %201, %204 : vector<24x96xf32>
    %206 = vector.extract_strided_slice %205 {offsets = [0, 0], sizes = [24, 16], strides = [1, 1]} : vector<24x96xf32> to vector<24x16xf32>
    %207 = vector.extract_strided_slice %205 {offsets = [0, 32], sizes = [24, 16], strides = [1, 1]} : vector<24x96xf32> to vector<24x16xf32>
    %208 = vector.extract_strided_slice %205 {offsets = [0, 64], sizes = [24, 16], strides = [1, 1]} : vector<24x96xf32> to vector<24x16xf32>
    %209 = arith.truncf %206 : vector<24x16xf32> to vector<24x16xbf16>
    %210 = arith.truncf %207 : vector<24x16xf32> to vector<24x16xbf16>
    %cst_96 = arith.constant dense<0.000000e+00> : vector<24x24xf32>
    %211 = tpu.matmul %209, %210, %cst_96 {dimension_numbers = #tpu.dot_dimension_numbers<[1], [1], [0], [0], [0, 0, 1, 0], [], []>} : vector<24x16xbf16>, vector<24x16xbf16>, vector<24x24xf32> -> vector<24x24xf32>
    %cst_97 = arith.constant 2.500000e-01 : f32
    %212 = vector.broadcast %cst_97 : f32 to vector<24x24xf32>
    %213 = arith.mulf %211, %212 : vector<24x24xf32>
    %214 = vector.broadcast %3 : vector<1x24xf32> to vector<24x24xf32>
    %215 = arith.addf %213, %214 : vector<24x24xf32>
    %cst_98 = arith.constant dense<0xFF800000> : vector<24xf32>
    %216 = vector.multi_reduction <maximumf>, %215, %cst_98 [1] : vector<24x24xf32> to vector<24xf32>
    %217 = vector.shape_cast %216 : vector<24xf32> to vector<24x1xf32>
    %218 = vector.broadcast %217 : vector<24x1xf32> to vector<24x24xf32>
    %219 = arith.subf %215, %218 : vector<24x24xf32>
    %220 = math.exp %219 : vector<24x24xf32>
    %cst_99 = arith.constant dense<0.000000e+00> : vector<24xf32>
    %221 = vector.multi_reduction <add>, %220, %cst_99 [1] : vector<24x24xf32> to vector<24xf32>
    %222 = vector.shape_cast %221 : vector<24xf32> to vector<24x1xf32>
    %223 = tpu.reciprocal %222 {approx = true} : vector<24x1xf32> -> vector<24x1xf32>
    %224 = vector.broadcast %223 : vector<24x1xf32> to vector<24x24xf32>
    %225 = arith.mulf %220, %224 : vector<24x24xf32>
    %226 = arith.truncf %225 : vector<24x24xf32> to vector<24x24xbf16>
    %227 = arith.truncf %208 : vector<24x16xf32> to vector<24x16xbf16>
    %cst_100 = arith.constant dense<0.000000e+00> : vector<24x16xf32>
    %228 = tpu.matmul %226, %227, %cst_100 {dimension_numbers = #tpu.dot_dimension_numbers<[1], [0], [0], [1], [0, 0, 1, 1], [], []>} : vector<24x24xbf16>, vector<24x16xbf16>, vector<24x16xf32> -> vector<24x16xf32>
    %229 = vector.extract_strided_slice %205 {offsets = [0, 16], sizes = [24, 16], strides = [1, 1]} : vector<24x96xf32> to vector<24x16xf32>
    %230 = vector.extract_strided_slice %205 {offsets = [0, 48], sizes = [24, 16], strides = [1, 1]} : vector<24x96xf32> to vector<24x16xf32>
    %231 = vector.extract_strided_slice %205 {offsets = [0, 80], sizes = [24, 16], strides = [1, 1]} : vector<24x96xf32> to vector<24x16xf32>
    %232 = arith.truncf %229 : vector<24x16xf32> to vector<24x16xbf16>
    %233 = arith.truncf %230 : vector<24x16xf32> to vector<24x16xbf16>
    %cst_101 = arith.constant dense<0.000000e+00> : vector<24x24xf32>
    %234 = tpu.matmul %232, %233, %cst_101 {dimension_numbers = #tpu.dot_dimension_numbers<[1], [1], [0], [0], [0, 0, 1, 0], [], []>} : vector<24x16xbf16>, vector<24x16xbf16>, vector<24x24xf32> -> vector<24x24xf32>
    %cst_102 = arith.constant 2.500000e-01 : f32
    %235 = vector.broadcast %cst_102 : f32 to vector<24x24xf32>
    %236 = arith.mulf %234, %235 : vector<24x24xf32>
    %237 = vector.broadcast %3 : vector<1x24xf32> to vector<24x24xf32>
    %238 = arith.addf %236, %237 : vector<24x24xf32>
    %cst_103 = arith.constant dense<0xFF800000> : vector<24xf32>
    %239 = vector.multi_reduction <maximumf>, %238, %cst_103 [1] : vector<24x24xf32> to vector<24xf32>
    %240 = vector.shape_cast %239 : vector<24xf32> to vector<24x1xf32>
    %241 = vector.broadcast %240 : vector<24x1xf32> to vector<24x24xf32>
    %242 = arith.subf %238, %241 : vector<24x24xf32>
    %243 = math.exp %242 : vector<24x24xf32>
    %cst_104 = arith.constant dense<0.000000e+00> : vector<24xf32>
    %244 = vector.multi_reduction <add>, %243, %cst_104 [1] : vector<24x24xf32> to vector<24xf32>
    %245 = vector.shape_cast %244 : vector<24xf32> to vector<24x1xf32>
    %246 = tpu.reciprocal %245 {approx = true} : vector<24x1xf32> -> vector<24x1xf32>
    %247 = vector.broadcast %246 : vector<24x1xf32> to vector<24x24xf32>
    %248 = arith.mulf %243, %247 : vector<24x24xf32>
    %249 = arith.truncf %248 : vector<24x24xf32> to vector<24x24xbf16>
    %250 = arith.truncf %231 : vector<24x16xf32> to vector<24x16xbf16>
    %cst_105 = arith.constant dense<0.000000e+00> : vector<24x16xf32>
    %251 = tpu.matmul %249, %250, %cst_105 {dimension_numbers = #tpu.dot_dimension_numbers<[1], [0], [0], [1], [0, 0, 1, 1], [], []>} : vector<24x24xbf16>, vector<24x16xbf16>, vector<24x16xf32> -> vector<24x16xf32>
    %252 = tpu.concatenate %228, %251 in 1 : vector<24x16xf32>, vector<24x16xf32> -> vector<24x32xf32>
    %c1_106 = arith.constant 1 : index
    %c0_107 = arith.constant 0 : index
    %c0_108 = arith.constant 0 : index
    %253 = vector.load %arg10[%c1_106, %c0_107, %c0_108] : memref<2x32x32xbf16, #tpu.memory_space<vmem>>, vector<1x32x32xbf16>
    %254 = vector.shape_cast %253 : vector<1x32x32xbf16> to vector<32x32xbf16>
    %255 = arith.truncf %252 : vector<24x32xf32> to vector<24x32xbf16>
    %cst_109 = arith.constant dense<0.000000e+00> : vector<24x32xf32>
    %256 = tpu.matmul %255, %254, %cst_109 {dimension_numbers = #tpu.dot_dimension_numbers<[1], [0], [0], [1], [0, 0, 1, 1], [], []>} : vector<24x32xbf16>, vector<32x32xbf16>, vector<24x32xf32> -> vector<24x32xf32>
    %257 = arith.addf %173, %256 : vector<24x32xf32>
    %c1_110 = arith.constant 1 : index
    %c0_111 = arith.constant 0 : index
    %c0_112 = arith.constant 0 : index
    %258 = vector.load %arg11[%c1_110, %c0_111, %c0_112] : memref<2x1x32xf32, #tpu.memory_space<vmem>>, vector<1x1x32xf32>
    %259 = vector.shape_cast %258 : vector<1x1x32xf32> to vector<1x32xf32>
    %260 = vector.broadcast %259 : vector<1x32xf32> to vector<24x32xf32>
    %261 = arith.addf %257, %260 : vector<24x32xf32>
    %c1_113 = arith.constant 1 : index
    %c0_114 = arith.constant 0 : index
    %c0_115 = arith.constant 0 : index
    %262 = vector.load %arg12[%c1_113, %c0_114, %c0_115] : memref<2x1x32xf32, #tpu.memory_space<vmem>>, vector<1x1x32xf32>
    %263 = vector.shape_cast %262 : vector<1x1x32xf32> to vector<1x32xf32>
    %c1_116 = arith.constant 1 : index
    %c0_117 = arith.constant 0 : index
    %c0_118 = arith.constant 0 : index
    %264 = vector.load %arg13[%c1_116, %c0_117, %c0_118] : memref<2x1x32xf32, #tpu.memory_space<vmem>>, vector<1x1x32xf32>
    %265 = vector.shape_cast %264 : vector<1x1x32xf32> to vector<1x32xf32>
    %cst_119 = arith.constant dense<0.000000e+00> : vector<24xf32>
    %266 = vector.multi_reduction <add>, %261, %cst_119 [1] : vector<24x32xf32> to vector<24xf32>
    %267 = vector.shape_cast %266 : vector<24xf32> to vector<24x1xf32>
    %cst_120 = arith.constant 3.200000e+01 : f32
    %268 = vector.broadcast %cst_120 : f32 to vector<24x1xf32>
    %269 = arith.divf %267, %268 : vector<24x1xf32>
    %270 = vector.broadcast %269 : vector<24x1xf32> to vector<24x32xf32>
    %271 = arith.subf %261, %270 : vector<24x32xf32>
    %272 = arith.mulf %271, %271 : vector<24x32xf32>
    %cst_121 = arith.constant dense<0.000000e+00> : vector<24xf32>
    %273 = vector.multi_reduction <add>, %272, %cst_121 [1] : vector<24x32xf32> to vector<24xf32>
    %274 = vector.shape_cast %273 : vector<24xf32> to vector<24x1xf32>
    %cst_122 = arith.constant 3.200000e+01 : f32
    %275 = vector.broadcast %cst_122 : f32 to vector<24x1xf32>
    %276 = arith.divf %274, %275 : vector<24x1xf32>
    %cst_123 = arith.constant 9.99999996E-13 : f32
    %277 = vector.broadcast %cst_123 : f32 to vector<24x1xf32>
    %278 = arith.addf %276, %277 : vector<24x1xf32>
    %279 = math.rsqrt %278 : vector<24x1xf32>
    %280 = vector.broadcast %279 : vector<24x1xf32> to vector<24x32xf32>
    %281 = arith.mulf %271, %280 : vector<24x32xf32>
    %282 = vector.broadcast %263 : vector<1x32xf32> to vector<24x32xf32>
    %283 = arith.mulf %281, %282 : vector<24x32xf32>
    %284 = vector.broadcast %265 : vector<1x32xf32> to vector<24x32xf32>
    %285 = arith.addf %283, %284 : vector<24x32xf32>
    %c1_124 = arith.constant 1 : index
    %c0_125 = arith.constant 0 : index
    %c0_126 = arith.constant 0 : index
    %286 = vector.load %arg14[%c1_124, %c0_125, %c0_126] : memref<2x32x64xbf16, #tpu.memory_space<vmem>>, vector<1x32x64xbf16>
    %287 = vector.shape_cast %286 : vector<1x32x64xbf16> to vector<32x64xbf16>
    %288 = arith.truncf %285 : vector<24x32xf32> to vector<24x32xbf16>
    %cst_127 = arith.constant dense<0.000000e+00> : vector<24x64xf32>
    %289 = tpu.matmul %288, %287, %cst_127 {dimension_numbers = #tpu.dot_dimension_numbers<[1], [0], [0], [1], [0, 0, 1, 1], [], []>} : vector<24x32xbf16>, vector<32x64xbf16>, vector<24x64xf32> -> vector<24x64xf32>
    %c1_128 = arith.constant 1 : index
    %c0_129 = arith.constant 0 : index
    %c0_130 = arith.constant 0 : index
    %290 = vector.load %arg15[%c1_128, %c0_129, %c0_130] : memref<2x1x64xf32, #tpu.memory_space<vmem>>, vector<1x1x64xf32>
    %291 = vector.shape_cast %290 : vector<1x1x64xf32> to vector<1x64xf32>
    %292 = vector.broadcast %291 : vector<1x64xf32> to vector<24x64xf32>
    %293 = arith.addf %289, %292 : vector<24x64xf32>
    %cst_131 = arith.constant 5.000000e-01 : f32
    %294 = vector.broadcast %cst_131 : f32 to vector<24x64xf32>
    %295 = arith.mulf %294, %293 : vector<24x64xf32>
    %cst_132 = arith.constant 4.471500e-02 : f32
    %296 = vector.broadcast %cst_132 : f32 to vector<24x64xf32>
    %297 = arith.mulf %296, %293 : vector<24x64xf32>
    %298 = arith.mulf %297, %293 : vector<24x64xf32>
    %299 = arith.mulf %298, %293 : vector<24x64xf32>
    %300 = arith.addf %293, %299 : vector<24x64xf32>
    %cst_133 = arith.constant 0.797884583 : f32
    %301 = vector.broadcast %cst_133 : f32 to vector<24x64xf32>
    %302 = arith.mulf %301, %300 : vector<24x64xf32>
    %303 = math.tanh %302 : vector<24x64xf32>
    %cst_134 = arith.constant 1.000000e+00 : f32
    %304 = vector.broadcast %cst_134 : f32 to vector<24x64xf32>
    %305 = arith.addf %304, %303 : vector<24x64xf32>
    %306 = arith.mulf %295, %305 : vector<24x64xf32>
    %c1_135 = arith.constant 1 : index
    %c0_136 = arith.constant 0 : index
    %c0_137 = arith.constant 0 : index
    %307 = vector.load %arg16[%c1_135, %c0_136, %c0_137] : memref<2x64x32xbf16, #tpu.memory_space<vmem>>, vector<1x64x32xbf16>
    %308 = vector.shape_cast %307 : vector<1x64x32xbf16> to vector<64x32xbf16>
    %309 = arith.truncf %306 : vector<24x64xf32> to vector<24x64xbf16>
    %cst_138 = arith.constant dense<0.000000e+00> : vector<24x32xf32>
    %310 = tpu.matmul %309, %308, %cst_138 {dimension_numbers = #tpu.dot_dimension_numbers<[1], [0], [0], [1], [0, 0, 1, 1], [], []>} : vector<24x64xbf16>, vector<64x32xbf16>, vector<24x32xf32> -> vector<24x32xf32>
    %311 = arith.addf %261, %310 : vector<24x32xf32>
    %c1_139 = arith.constant 1 : index
    %c0_140 = arith.constant 0 : index
    %c0_141 = arith.constant 0 : index
    %312 = vector.load %arg17[%c1_139, %c0_140, %c0_141] : memref<2x1x32xf32, #tpu.memory_space<vmem>>, vector<1x1x32xf32>
    %313 = vector.shape_cast %312 : vector<1x1x32xf32> to vector<1x32xf32>
    %314 = vector.broadcast %313 : vector<1x32xf32> to vector<24x32xf32>
    %315 = arith.addf %311, %314 : vector<24x32xf32>
    %c0_142 = arith.constant 0 : index
    %c0_143 = arith.constant 0 : index
    %316 = vector.load %arg18[%c0_142, %c0_143] : memref<1x32xf32, #tpu.memory_space<vmem>>, vector<1x32xf32>
    %c0_144 = arith.constant 0 : index
    %c0_145 = arith.constant 0 : index
    %317 = vector.load %arg19[%c0_144, %c0_145] : memref<1x32xf32, #tpu.memory_space<vmem>>, vector<1x32xf32>
    %cst_146 = arith.constant dense<0.000000e+00> : vector<24xf32>
    %318 = vector.multi_reduction <add>, %315, %cst_146 [1] : vector<24x32xf32> to vector<24xf32>
    %319 = vector.shape_cast %318 : vector<24xf32> to vector<24x1xf32>
    %cst_147 = arith.constant 3.200000e+01 : f32
    %320 = vector.broadcast %cst_147 : f32 to vector<24x1xf32>
    %321 = arith.divf %319, %320 : vector<24x1xf32>
    %322 = vector.broadcast %321 : vector<24x1xf32> to vector<24x32xf32>
    %323 = arith.subf %315, %322 : vector<24x32xf32>
    %324 = arith.mulf %323, %323 : vector<24x32xf32>
    %cst_148 = arith.constant dense<0.000000e+00> : vector<24xf32>
    %325 = vector.multi_reduction <add>, %324, %cst_148 [1] : vector<24x32xf32> to vector<24xf32>
    %326 = vector.shape_cast %325 : vector<24xf32> to vector<24x1xf32>
    %cst_149 = arith.constant 3.200000e+01 : f32
    %327 = vector.broadcast %cst_149 : f32 to vector<24x1xf32>
    %328 = arith.divf %326, %327 : vector<24x1xf32>
    %cst_150 = arith.constant 9.99999996E-13 : f32
    %329 = vector.broadcast %cst_150 : f32 to vector<24x1xf32>
    %330 = arith.addf %328, %329 : vector<24x1xf32>
    %331 = math.rsqrt %330 : vector<24x1xf32>
    %332 = vector.broadcast %331 : vector<24x1xf32> to vector<24x32xf32>
    %333 = arith.mulf %323, %332 : vector<24x32xf32>
    %334 = vector.broadcast %316 : vector<1x32xf32> to vector<24x32xf32>
    %335 = arith.mulf %333, %334 : vector<24x32xf32>
    %336 = vector.broadcast %317 : vector<1x32xf32> to vector<24x32xf32>
    %337 = arith.addf %335, %336 : vector<24x32xf32>
    %c0_151 = arith.constant 0 : index
    %c0_152 = arith.constant 0 : index
    %c0_153 = arith.constant 0 : index
    %338 = vector.load %arg22[%c0_151, %c0_152, %c0_153] : memref<1x24x32xf32, #tpu.memory_space<vmem>>, vector<1x24x32xf32>
    %339 = vector.shape_cast %338 : vector<1x24x32xf32> to vector<24x32xf32>
    %340 = vector.shape_cast %337 : vector<24x32xf32> to vector<1x24x32xf32>
    tpu.vector_store %arg22[%c0_151, %c0_152, %c0_153], %340 {strides = array<i32>} : memref<1x24x32xf32, #tpu.memory_space<vmem>>, vector<1x24x32xf32>,
    %341 = vector.extract_strided_slice %337 {offsets = [0, 0], sizes = [1, 32], strides = [1, 1]} : vector<24x32xf32> to vector<1x32xf32>
    %c0_154 = arith.constant 0 : index
    %c0_155 = arith.constant 0 : index
    %342 = vector.load %arg20[%c0_154, %c0_155] : memref<32x32xf32, #tpu.memory_space<vmem>>, vector<32x32xf32>
    %cst_156 = arith.constant dense<0.000000e+00> : vector<1x32xf32>
    %343 = tpu.matmul %341, %342, %cst_156 {dimension_numbers = #tpu.dot_dimension_numbers<[1], [0], [0], [1], [0, 0, 1, 1], [], []>} : vector<1x32xf32>, vector<32x32xf32>, vector<1x32xf32> -> vector<1x32xf32>
    %c0_157 = arith.constant 0 : index
    %c0_158 = arith.constant 0 : index
    %344 = vector.load %arg21[%c0_157, %c0_158] : memref<1x32xf32, #tpu.memory_space<vmem>>, vector<1x32xf32>
    %345 = arith.addf %343, %344 : vector<1x32xf32>
    %346 = math.tanh %345 : vector<1x32xf32>
    %c0_159 = arith.constant 0 : index
    %c0_160 = arith.constant 0 : index
    %c0_161 = arith.constant 0 : index
    %347 = vector.load %arg23[%c0_159, %c0_160, %c0_161] : memref<1x1x32xf32, #tpu.memory_space<vmem>>, vector<1x1x32xf32>
    %348 = vector.shape_cast %347 : vector<1x1x32xf32> to vector<1x32xf32>
    %349 = vector.shape_cast %346 : vector<1x32xf32> to vector<1x1x32xf32>
    tpu.vector_store %arg23[%c0_159, %c0_160, %c0_161], %349 {strides = array<i32>} : memref<1x1x32xf32, #tpu.memory_space<vmem>>, vector<1x1x32xf32>,
    return
  }
  func.func @transform_0(%arg0: i32) -> (i32, i32, i32) {
    %c0_i32 = arith.constant 0 : i32
    %c0_i32_0 = arith.constant 0 : i32
    %c0_i32_1 = arith.constant 0 : i32
    return %arg0, %c0_i32, %c0_i32_0 : i32, i32, i32
  }
  func.func @transform_1(%arg0: i32) -> (i32, i32, i32) {
    %c0_i32 = arith.constant 0 : i32
    %c0_i32_0 = arith.constant 0 : i32
    %c0_i32_1 = arith.constant 0 : i32
    return %arg0, %c0_i32, %c0_i32_0 : i32, i32, i32
  }
  func.func @transform_2(%arg0: i32) -> (i32, i32) {
    %c0_i32 = arith.constant 0 : i32
    %c0_i32_0 = arith.constant 0 : i32
    %c0_i32_1 = arith.constant 0 : i32
    return %c0_i32, %c0_i32_0 : i32, i32
  }
  func.func @transform_3(%arg0: i32) -> (i32, i32) {
    %c0_i32 = arith.constant 0 : i32
    %c0_i32_0 = arith.constant 0 : i32
    %c0_i32_1 = arith.constant 0 : i32
    return %c0_i32, %c0_i32_0 : i32, i32
  }
  func.func @transform_4(%arg0: i32) -> (i32, i32) {
    %c0_i32 = arith.constant 0 : i32
    %c0_i32_0 = arith.constant 0 : i32
    %c0_i32_1 = arith.constant 0 : i32
    return %c0_i32, %c0_i32_0 : i32, i32
  }
  func.func @transform_5(%arg0: i32) -> (i32, i32, i32) {
    %c0_i32 = arith.constant 0 : i32
    %c0_i32_0 = arith.constant 0 : i32
    %c0_i32_1 = arith.constant 0 : i32
    %c0_i32_2 = arith.constant 0 : i32
    return %c0_i32, %c0_i32_0, %c0_i32_1 : i32, i32, i32
  }
  func.func @transform_6(%arg0: i32) -> (i32, i32, i32) {
    %c0_i32 = arith.constant 0 : i32
    %c0_i32_0 = arith.constant 0 : i32
    %c0_i32_1 = arith.constant 0 : i32
    %c0_i32_2 = arith.constant 0 : i32
    return %c0_i32, %c0_i32_0, %c0_i32_1 : i32, i32, i32
  }
  func.func @transform_7(%arg0: i32) -> (i32, i32, i32) {
    %c0_i32 = arith.constant 0 : i32
    %c0_i32_0 = arith.constant 0 : i32
    %c0_i32_1 = arith.constant 0 : i32
    %c0_i32_2 = arith.constant 0 : i32
    return %c0_i32, %c0_i32_0, %c0_i32_1 : i32, i32, i32
  }
  func.func @transform_8(%arg0: i32) -> (i32, i32, i32) {
    %c0_i32 = arith.constant 0 : i32
    %c0_i32_0 = arith.constant 0 : i32
    %c0_i32_1 = arith.constant 0 : i32
    %c0_i32_2 = arith.constant 0 : i32
    return %c0_i32, %c0_i32_0, %c0_i32_1 : i32, i32, i32
  }
  func.func @transform_9(%arg0: i32) -> (i32, i32, i32) {
    %c0_i32 = arith.constant 0 : i32
    %c0_i32_0 = arith.constant 0 : i32
    %c0_i32_1 = arith.constant 0 : i32
    %c0_i32_2 = arith.constant 0 : i32
    return %c0_i32, %c0_i32_0, %c0_i32_1 : i32, i32, i32
  }
  func.func @transform_10(%arg0: i32) -> (i32, i32, i32) {
    %c0_i32 = arith.constant 0 : i32
    %c0_i32_0 = arith.constant 0 : i32
    %c0_i32_1 = arith.constant 0 : i32
    %c0_i32_2 = arith.constant 0 : i32
    return %c0_i32, %c0_i32_0, %c0_i32_1 : i32, i32, i32
  }
  func.func @transform_11(%arg0: i32) -> (i32, i32, i32) {
    %c0_i32 = arith.constant 0 : i32
    %c0_i32_0 = arith.constant 0 : i32
    %c0_i32_1 = arith.constant 0 : i32
    %c0_i32_2 = arith.constant 0 : i32
    return %c0_i32, %c0_i32_0, %c0_i32_1 : i32, i32, i32
  }
  func.func @transform_12(%arg0: i32) -> (i32, i32, i32) {
    %c0_i32 = arith.constant 0 : i32
    %c0_i32_0 = arith.constant 0 : i32
    %c0_i32_1 = arith.constant 0 : i32
    %c0_i32_2 = arith.constant 0 : i32
    return %c0_i32, %c0_i32_0, %c0_i32_1 : i32, i32, i32
  }
  func.func @transform_13(%arg0: i32) -> (i32, i32, i32) {
    %c0_i32 = arith.constant 0 : i32
    %c0_i32_0 = arith.constant 0 : i32
    %c0_i32_1 = arith.constant 0 : i32
    %c0_i32_2 = arith.constant 0 : i32
    return %c0_i32, %c0_i32_0, %c0_i32_1 : i32, i32, i32
  }
  func.func @transform_14(%arg0: i32) -> (i32, i32, i32) {
    %c0_i32 = arith.constant 0 : i32
    %c0_i32_0 = arith.constant 0 : i32
    %c0_i32_1 = arith.constant 0 : i32
    %c0_i32_2 = arith.constant 0 : i32
    return %c0_i32, %c0_i32_0, %c0_i32_1 : i32, i32, i32
  }
  func.func @transform_15(%arg0: i32) -> (i32, i32, i32) {
    %c0_i32 = arith.constant 0 : i32
    %c0_i32_0 = arith.constant 0 : i32
    %c0_i32_1 = arith.constant 0 : i32
    %c0_i32_2 = arith.constant 0 : i32
    return %c0_i32, %c0_i32_0, %c0_i32_1 : i32, i32, i32
  }
  func.func @transform_16(%arg0: i32) -> (i32, i32, i32) {
    %c0_i32 = arith.constant 0 : i32
    %c0_i32_0 = arith.constant 0 : i32
    %c0_i32_1 = arith.constant 0 : i32
    %c0_i32_2 = arith.constant 0 : i32
    return %c0_i32, %c0_i32_0, %c0_i32_1 : i32, i32, i32
  }
  func.func @transform_17(%arg0: i32) -> (i32, i32) {
    %c0_i32 = arith.constant 0 : i32
    %c0_i32_0 = arith.constant 0 : i32
    %c0_i32_1 = arith.constant 0 : i32
    return %c0_i32, %c0_i32_0 : i32, i32
  }
  func.func @transform_18(%arg0: i32) -> (i32, i32) {
    %c0_i32 = arith.constant 0 : i32
    %c0_i32_0 = arith.constant 0 : i32
    %c0_i32_1 = arith.constant 0 : i32
    return %c0_i32, %c0_i32_0 : i32, i32
  }
  func.func @transform_19(%arg0: i32) -> (i32, i32) {
    %c0_i32 = arith.constant 0 : i32
    %c0_i32_0 = arith.constant 0 : i32
    %c0_i32_1 = arith.constant 0 : i32
    return %c0_i32, %c0_i32_0 : i32, i32
  }
  func.func @transform_20(%arg0: i32) -> (i32, i32) {
    %c0_i32 = arith.constant 0 : i32
    %c0_i32_0 = arith.constant 0 : i32
    %c0_i32_1 = arith.constant 0 : i32
    return %c0_i32, %c0_i32_0 : i32, i32
  }
  func.func @transform_21(%arg0: i32) -> (i32, i32, i32) {
    %c0_i32 = arith.constant 0 : i32
    %c0_i32_0 = arith.constant 0 : i32
    %c0_i32_1 = arith.constant 0 : i32
    return %arg0, %c0_i32, %c0_i32_0 : i32, i32, i32
  }
  func.func @transform_22(%arg0: i32) -> (i32, i32, i32) {
    %c0_i32 = arith.constant 0 : i32
    %c0_i32_0 = arith.constant 0 : i32
    %c0_i32_1 = arith.constant 0 : i32
    return %arg0, %c0_i32, %c0_i32_0 : i32, i32, i32
  }
}

</mosaic_0001>

<llo_original>
// kernel: multiview_vilt_forward.2
$region0: #{multiview_vilt_forward.2}
  #allocation0 [shape = 'u32[]', space=smem, size = 0x4, offset = 0x4, fixed_abs, tag = 'smem constant byte address 0x4 - core index']
  #allocation1 [shape = 'u32[144,128]{1,0:T(1,128)}', space=vmem, size = 0x12000, scoped, tag = 'internal scratch']
  %s0 = inlined_call_operand.vmem [shape: f32[16,192], index: 0, kind: input, shape index: {}]
  %s1 = inlined_call_operand.vmem [shape: f32[192,32], index: 1, kind: input, shape index: {}]
  %s2 = inlined_call_operand.vmem [shape: f32[1,32], index: 2, kind: input, shape index: {}]
  %s3 = inlined_call_operand.vmem [shape: f32[16,32], index: 3, kind: output, shape index: {}]
  %s4 = sld [smem:[#allocation0]]
  $region22: #{multiview_vilt_forward.2} parent=0
    _
  %s6 = ssub.s32 1, %s4
  %s7 = scalar_select 0, %s6, %s4
  // Predicated region
  $region2: #{multiview_vilt_forward.2} parent=0 // pred_check
    _
  $region3: #{multiview_vilt_forward.2} parent=0 // pred_check_branch
    %9 = sbr.rel (0) target = $region5
  $region4: #{multiview_vilt_forward.2} parent=0 // pred_region
    _
  $region5: #{multiview_vilt_forward.2} parent=0 // pred_fallthru
    _
  // Predicated region
  $region6: #{multiview_vilt_forward.2} parent=0 // pred_check
    _
  $region7: #{multiview_vilt_forward.2} parent=0 // pred_check_branch
    %11 = sbr.rel (0) target = $region9
  $region8: #{multiview_vilt_forward.2} parent=0 // pred_region
    _
  $region9: #{multiview_vilt_forward.2} parent=0 // pred_fallthru
    _
  // Predicated region
  $region10: #{multiview_vilt_forward.2} parent=0 // pred_check
    _
  $region11: #{multiview_vilt_forward.2} parent=0 // pred_check_branch
    %13 = sbr.rel (0) target = $region13
  $region12: #{multiview_vilt_forward.2} parent=0 // pred_region
    _
  $region13: #{multiview_vilt_forward.2} parent=0 // pred_fallthru
    _
  %v14 = vld [vmem:[%s0] sm:$0xff]
  %v15 = vld [vmem:[%s0 + $0x8] sm:$0xff]
  %v16 = vld [vmem:[%s0 + $0x10] sm:$0xff]
  %v17 = vld [vmem:[%s0 + $0x18] sm:$0xff]
  %v18 = vld [vmem:[%s1] sm:$0xff]
  %v19 = vld [vmem:[%s1 + $0x8] sm:$0xff]
  %v20 = vld [vmem:[%s1 + $0x10] sm:$0xff]
  %v21 = vld [vmem:[%s1 + $0x18] sm:$0xff]
  %v22 = vld [vmem:[%s1 + $0x20] sm:$0xff]
  %v23 = vld [vmem:[%s1 + $0x28] sm:$0xff]
  %v24 = vld [vmem:[%s1 + $0x30] sm:$0xff]
  %v25 = vld [vmem:[%s1 + $0x38] sm:$0xff]
  %v26 = vld [vmem:[%s1 + $0x40] sm:$0xff]
  %v27 = vld [vmem:[%s1 + $0x48] sm:$0xff]
  %v28 = vld [vmem:[%s1 + $0x50] sm:$0xff]
  %v29 = vld [vmem:[%s1 + $0x58] sm:$0xff]
  %v30 = vld [vmem:[%s1 + $0x60] sm:$0xff]
  %v31 = vld [vmem:[%s1 + $0x68] sm:$0xff]
  %v32 = vld [vmem:[%s1 + $0x70] sm:$0xff]
  %v33 = vld [vmem:[%s1 + $0x78] sm:$0xff]
  %v34 = vld [vmem:[%s1 + $0x80] sm:$0xff]
  %v35 = vld [vmem:[%s1 + $0x88] sm:$0xff]
  %v36 = vld [vmem:[%s1 + $0x90] sm:$0xff]
  %v37 = vld [vmem:[%s1 + $0x98] sm:$0xff]
  %v38 = vld [vmem:[%s1 + $0xa0] sm:$0xff]
  %v39 = vld [vmem:[%s1 + $0xa8] sm:$0xff]
  %v40 = vld [vmem:[%s1 + $0xb0] sm:$0xff]
  %v41 = vld [vmem:[%s1 + $0xb8] sm:$0xff]
  %v42 = vld [vmem:[%s2] sm:$0x1]
  %v44 = vlaneseq
  %v45 = vshrl.u32 %v44, 7
  %v46 = vsub.s32 0, %v45
  %v47 = vrot.slane %v42, %v46
  %vm49 = vcmask 523264
  %v51 = vsel %vm49, %v15, 0
  %v54 = vsel %vm49, %v17, 0
  %56 = vmatprep.subr.mxu0 0.0
  %57 = vmatpush1.msra.mxu0 %v33
  %58 = vmatprep.subr.mxu0 0.0
  %59 = vmatpush1.msra.mxu0 %v32
  %60 = vmatprep.subr.mxu0 0.0
  %61 = vmatpush1.msra.mxu0 %v31
  %62 = vmatprep.subr.mxu0 0.0
  %63 = vmatpush1.msra.mxu0 %v30
  %64 = vmatprep.subr.mxu0 0.0
  %65 = vmatpush1.msra.mxu0 %v29
  %66 = vmatprep.subr.mxu0 0.0
  %67 = vmatpush1.msra.mxu0 %v28
  %68 = vmatprep.subr.mxu0 0.0
  %69 = vmatpush1.msra.mxu0 %v27
  %70 = vmatprep.subr.mxu0 0.0
  %71 = vmatpush1.msra.mxu0 %v26
  %72 = vmatprep.subr.mxu0 0.0
  %73 = vmatpush1.msra.mxu0 %v25
  %74 = vmatprep.subr.mxu0 0.0
  %75 = vmatpush1.msra.mxu0 %v24
  %76 = vmatprep.subr.mxu0 0.0
  %77 = vmatpush1.msra.mxu0 %v23
  %78 = vmatprep.subr.mxu0 0.0
  %79 = vmatpush1.msra.mxu0 %v22
  %80 = vmatprep.subr.mxu0 0.0
  %81 = vmatpush1.msra.mxu0 %v21
  %82 = vmatprep.subr.mxu0 0.0
  %83 = vmatpush1.msra.mxu0 %v20
  %84 = vmatprep.subr.mxu0 0.0
  %85 = vmatpush1.msra.mxu0 %v19
  %86 = vmatprep.subr.mxu0 0.0
  %87 = vmatpush1.msra.mxu0 %v18
  %88 = vmatprep.subr.mxu0 0.0
  %89 = vmatpush2.msra.mxu0 0.0
  %90 = vmatprep.subr.mxu0 0.0
  %91 = vmatpush2.msra.mxu0 0.0
  %92 = vmatprep.subr.mxu0 0.0
  %93 = vmatpush2.msra.mxu0 0.0
  %94 = vmatprep.subr.mxu0 0.0
  %95 = vmatpush2.msra.mxu0 0.0
  %96 = vmatprep.subr.mxu0 0.0
  %97 = vmatpush2.msra.mxu0 0.0
  %98 = vmatprep.subr.mxu0 0.0
  %99 = vmatpush2.msra.mxu0 0.0
  %100 = vmatprep.subr.mxu0 0.0
  %101 = vmatpush2.msra.mxu0 0.0
  %102 = vmatprep.subr.mxu0 0.0
  %103 = vmatpush2.msra.mxu0 0.0
  %104 = vmatprep.subr.mxu0 0.0
  %105 = vmatpush2.msra.mxu0 %v41
  %106 = vmatprep.subr.mxu0 0.0
  %107 = vmatpush2.msra.mxu0 %v40
  %108 = vmatprep.subr.mxu0 0.0
  %109 = vmatpush2.msra.mxu0 %v39
  %110 = vmatprep.subr.mxu0 0.0
  %111 = vmatpush2.msra.mxu0 %v38
  %112 = vmatprep.subr.mxu0 0.0
  %113 = vmatpush2.msra.mxu0 %v37
  %114 = vmatprep.subr.mxu0 0.0
  %115 = vmatpush2.msra.mxu0 %v36
  %116 = vmatprep.subr.mxu0 0.0
  %117 = vmatpush2.msra.mxu0 %v35
  %118 = vmatprep.subr.mxu0 0.0
  %119 = vmatpush2.msra.mxu0 %v34
  %120 = vmatprep.mubr.f32.mxu0 %v51
  %121 = vmatmul.mubr.f32.gmra.mxu0 %v14
  %v122 = vpop.f32.mrf.mxu0
  %v123 = vadd.f32 %v47, %v122
  %v124 = vpop.f32.mrf.mxu0
  %125 = vmatprep.mubr.f32.mxu0 %v54
  %126 = vmatmul.mubr.f32.gmra.mxu0 %v16
  %v127 = vpop.f32.mrf.mxu0
  %v128 = vadd.f32 %v47, %v127
  %v129 = vpop.f32.mrf.mxu0
  %130 = vdwg.mxu0
  %vm131 = vcmask 261120
  %132 = vst.msk [vmem:[%s3] sm:$0xff] %vm131, %v123
  %133 = vst.msk [vmem:[%s3 + $0x8] sm:$0xff] %vm131, %v128
  // Predicated region
  $region14: #{multiview_vilt_forward.2} parent=0 // pred_check
    _
  $region15: #{multiview_vilt_forward.2} parent=0 // pred_check_branch
    %135 = sbr.rel (0) target = $region17
  $region16: #{multiview_vilt_forward.2} parent=0 // pred_region
    _
  $region17: #{multiview_vilt_forward.2} parent=0 // pred_fallthru
    _
  // Predicated region
  $region18: #{multiview_vilt_forward.2} parent=0 // pred_check
    _
  $region19: #{multiview_vilt_forward.2} parent=0 // pred_check_branch
    %137 = sbr.rel (0) target = $region21
  $region20: #{multiview_vilt_forward.2} parent=0 // pred_region
    _
  $region21: #{multiview_vilt_forward.2} parent=0 // pred_fallthru
    _

// kernel: multiview_vilt_forward.3
$region0: #{multiview_vilt_forward.3}
  #allocation0 [shape = 'u32[]', space=smem, size = 0x4, offset = 0x4, fixed_abs, tag = 'smem constant byte address 0x4 - core index']
  #allocation1 [shape = 'u32[144,128]{1,0:T(1,128)}', space=vmem, size = 0x12000, scoped, tag = 'internal scratch']
  %s0 = inlined_call_operand.vmem [shape: f32[2,24,32], index: 0, kind: input, shape index: {}]
  %s1 = inlined_call_operand.vmem [shape: f32[2,1,24], index: 1, kind: input, shape index: {}]
  %s2 = inlined_call_operand.vmem [shape: f32[1,32], index: 2, kind: input, shape index: {}]
  %s3 = inlined_call_operand.vmem [shape: f32[1,32], index: 3, kind: input, shape index: {}]
  %s4 = inlined_call_operand.vmem [shape: f32[1,32], index: 4, kind: input, shape index: {}]
  %s5 = inlined_call_operand.vmem [shape: f32[2,1,32], index: 5, kind: input, shape index: {}]
  %s6 = inlined_call_operand.vmem [shape: f32[2,1,32], index: 6, kind: input, shape index: {}]
  %s7 = inlined_call_operand.vmem [shape: bf16[2,32,96], index: 7, kind: input, shape index: {}]
  %s8 = inlined_call_operand.vmem [shape: f32[2,1,96], index: 8, kind: input, shape index: {}]
  %s9 = inlined_call_operand.vmem [shape: bf16[2,32,32], index: 9, kind: input, shape index: {}]
  %s10 = inlined_call_operand.vmem [shape: f32[2,1,32], index: 10, kind: input, shape index: {}]
  %s11 = inlined_call_operand.vmem [shape: f32[2,1,32], index: 11, kind: input, shape index: {}]
  %s12 = inlined_call_operand.vmem [shape: f32[2,1,32], index: 12, kind: input, shape index: {}]
  %s13 = inlined_call_operand.vmem [shape: bf16[2,32,64], index: 13, kind: input, shape index: {}]
  %s14 = inlined_call_operand.vmem [shape: f32[2,1,64], index: 14, kind: input, shape index: {}]
  %s15 = inlined_call_operand.vmem [shape: bf16[2,64,32], index: 15, kind: input, shape index: {}]
  %s16 = inlined_call_operand.vmem [shape: f32[2,1,32], index: 16, kind: input, shape index: {}]
  %s17 = inlined_call_operand.vmem [shape: f32[1,32], index: 17, kind: input, shape index: {}]
  %s18 = inlined_call_operand.vmem [shape: f32[1,32], index: 18, kind: input, shape index: {}]
  %s19 = inlined_call_operand.vmem [shape: f32[32,32], index: 19, kind: input, shape index: {}]
  %s20 = inlined_call_operand.vmem [shape: f32[1,32], index: 20, kind: input, shape index: {}]
  %s21 = inlined_call_operand.vmem [shape: f32[2,24,32], index: 21, kind: output, shape index: {0}]
  %s22 = inlined_call_operand.hbm [shape: f32[2,1,32], index: 22, kind: output, shape index: {1}]
  %23 = xla_tuple %s21, %s22
  %s24 = sld [smem:[#allocation0]]
  $region125: #{multiview_vilt_forward.3} parent=0
    _
  %s26 = ssub.s32 1, %s24
  %s27 = scalar_select 0, %s26, %s24
  $region1: #{multiview_vilt_forward.3} parent=0
    #allocation2 [shape = 'u8[1024]{0}', space=vmem, size = 0x400, scoped, tag = 'output window, operand 1']
    #allocation3 [shape = 's32[2]{0}', space=sflag, size = 0x8, scoped, tag = 'scoped memory for multiview_vilt_forward.3']
    %28 = vsyncpa [#allocation3], 0
    %s29 = scalar_lea.sflag [#allocation3], 1
    %30 = vsyncpa %s29, 0
    loop: start=0, step=1, limit=4
    $region2: #{multiview_vilt_forward.3} parent=1 // loop_pre_header
      _
    $region3: #{multiview_vilt_forward.3} parent=1 // loop_header
      %s32 = sphi 0, %s36
      %p33 = scmp.ge.s32.totalorder %s32, 4
      %s42 = sphi 0, %s44
      %s45 = sphi 0, %s42
      %s46 = sphi 0, %s45
      %s62 = sphi 0, %s46
      %s68 = sphi 0, %s70
      %s71 = sphi 0, %s68
      %s72 = sphi 0, %s71
      %s88 = sphi 0, %s72
      %s92 = sphi 0, %s92
      %s94 = sphi 0, %s92
      %s95 = sphi 0, %s94
      %s109 = sphi 0, %s95
      %s113 = sphi 0, %s113
      %s115 = sphi 0, %s113
      %s116 = sphi 0, %s115
      %s130 = sphi 0, %s116
      %s134 = sphi 0, %s134
      %s136 = sphi 0, %s134
      %s137 = sphi 0, %s136
      %s151 = sphi 0, %s137
      %s155 = sphi 0, %s155
      %s157 = sphi 0, %s155
      %s158 = sphi 0, %s157
      %s172 = sphi 0, %s158
      %s176 = sphi 0, %s176
      %s178 = sphi 0, %s176
      %s179 = sphi 0, %s178
      %s193 = sphi 0, %s179
      %s197 = sphi 0, %s197
      %s199 = sphi 0, %s197
      %s200 = sphi 0, %s199
      %s214 = sphi 0, %s200
      %s218 = sphi 0, %s218
      %s220 = sphi 0, %s218
      %s221 = sphi 0, %s220
      %s235 = sphi 0, %s221
      %s239 = sphi 0, %s239
      %s241 = sphi 0, %s239
      %s242 = sphi 0, %s241
      %s256 = sphi 0, %s242
      %s260 = sphi 0, %s260
      %s262 = sphi 0, %s260
      %s263 = sphi 0, %s262
      %s277 = sphi 0, %s263
      %s281 = sphi 0, %s281
      %s283 = sphi 0, %s281
      %s284 = sphi 0, %s283
      %s298 = sphi 0, %s284
      %s302 = sphi 0, %s302
      %s304 = sphi 0, %s302
      %s305 = sphi 0, %s304
      %s319 = sphi 0, %s305
      %s323 = sphi 0, %s323
      %s325 = sphi 0, %s323
      %s326 = sphi 0, %s325
      %s340 = sphi 0, %s326
      %s344 = sphi 0, %s344
      %s346 = sphi 0, %s344
      %s347 = sphi 0, %s346
      %s361 = sphi 0, %s347
      %s365 = sphi 0, %s365
      %s367 = sphi 0, %s365
      %s368 = sphi 0, %s367
      %s382 = sphi 0, %s368
      %s386 = sphi 0, %s386
      %s388 = sphi 0, %s386
      %s389 = sphi 0, %s388
      %s403 = sphi 0, %s389
      %s407 = sphi 0, %s407
      %s409 = sphi 0, %s407
      %s410 = sphi 0, %s409
      %s424 = sphi 0, %s410
      %s428 = sphi 0, %s428
      %s430 = sphi 0, %s428
      %s431 = sphi 0, %s430
      %s445 = sphi 0, %s431
      %s449 = sphi 0, %s449
      %s451 = sphi 0, %s449
      %s452 = sphi 0, %s451
      %s466 = sphi 0, %s452
      %s470 = sphi 0, %s470
      %s472 = sphi 0, %s470
      %s473 = sphi 0, %s472
      %s487 = sphi 0, %s473
      %s493 = sphi 0, %s495
      %s496 = sphi 0, %s493
      %s497 = sphi 0, %s496
      %s513 = sphi 0, %s497
      %s519 = sphi 0, %s521
      %s522 = sphi 0, %s519
      %s523 = sphi 0, %s522
      %s539 = sphi 0, %s523
    $region4: #{multiview_vilt_forward.3} parent=1 // loop_header_branch
      %35 = sbr.rel (%p33) target = $region8
    $region5: #{multiview_vilt_forward.3} parent=1 // loop_body
      %s37 = ssub.s32 %s32, 1
      %s38 = ssub.s32 %s32, 2
      %s39 = sadd.s32 %s32, 1
      %s40 = ssub.s32 %s32, %s39
      %p41 = scmp.eq.s32.totalorder %s40, 0
      %s43 = sadd.s32 %s42, 1
      %s44 = scalar_select %p41, %s42, %s43
      %p47 = pneg %p41
      %p48 = scmp.eq.s32.totalorder %s32, 1
      %p49 = por %p47, %p48
      %p50 = scmp.ne.s32.totalorder %s42, %s45
      %p51 = scmp.eq.s32.totalorder %s32, 0
      %p52 = por %p50, %p51
      %p53 = scmp.ne.s32.totalorder %s42, %s45
      %p54 = scmp.eq.s32.totalorder %s37, 1
      %p55 = por %p53, %p54
      %p56 = scmp.ne.s32.totalorder %s45, %s46
      %p57 = scmp.eq.s32.totalorder %s37, 0
      %p58 = por %p56, %p57
      %p59 = scmp.ne.s32.totalorder %s45, %s46
      %p60 = scmp.eq.s32.totalorder %s38, 1
      %p61 = por %p59, %p60
      %p63 = scmp.ne.s32.totalorder %s46, %s62
      %p64 = scmp.eq.s32.totalorder %s38, 0
      %p65 = por %p63, %p64
      %s66 = ssub.s32 %s32, %s39
      %p67 = scmp.eq.s32.totalorder %s66, 0
      %s69 = sadd.s32 %s68, 1
      %s70 = scalar_select %p67, %s68, %s69
      %p73 = pneg %p67
      %p74 = scmp.eq.s32.totalorder %s32, 1
      %p75 = por %p73, %p74
      %p76 = scmp.ne.s32.totalorder %s68, %s71
      %p77 = scmp.eq.s32.totalorder %s32, 0
      %p78 = por %p76, %p77
      %p79 = scmp.ne.s32.totalorder %s68, %s71
      %p80 = scmp.eq.s32.totalorder %s37, 1
      %p81 = por %p79, %p80
      %p82 = scmp.ne.s32.totalorder %s71, %s72
      %p83 = scmp.eq.s32.totalorder %s37, 0
      %p84 = por %p82, %p83
      %p85 = scmp.ne.s32.totalorder %s71, %s72
      %p86 = scmp.eq.s32.totalorder %s38, 1
      %p87 = por %p85, %p86
      %p89 = scmp.ne.s32.totalorder %s72, %s88
      %p90 = scmp.eq.s32.totalorder %s38, 0
      %p91 = por %p89, %p90
      %s93 = sadd.s32 %s92, 1
      %p96 = scmp.eq.s32.totalorder %s32, 1
      %p97 = scmp.ne.s32.totalorder %s92, %s94
      %p98 = scmp.eq.s32.totalorder %s32, 0
      %p99 = por %p97, %p98
      %p100 = scmp.ne.s32.totalorder %s92, %s94
      %p101 = scmp.eq.s32.totalorder %s37, 1
      %p102 = por %p100, %p101
      %p103 = scmp.ne.s32.totalorder %s94, %s95
      %p104 = scmp.eq.s32.totalorder %s37, 0
      %p105 = por %p103, %p104
      %p106 = scmp.ne.s32.totalorder %s94, %s95
      %p107 = scmp.eq.s32.totalorder %s38, 1
      %p108 = por %p106, %p107
      %p110 = scmp.ne.s32.totalorder %s95, %s109
      %p111 = scmp.eq.s32.totalorder %s38, 0
      %p112 = por %p110, %p111
      %s114 = sadd.s32 %s113, 1
      %p117 = scmp.eq.s32.totalorder %s32, 1
      %p118 = scmp.ne.s32.totalorder %s113, %s115
      %p119 = scmp.eq.s32.totalorder %s32, 0
      %p120 = por %p118, %p119
      %p121 = scmp.ne.s32.totalorder %s113, %s115
      %p122 = scmp.eq.s32.totalorder %s37, 1
      %p123 = por %p121, %p122
      %p124 = scmp.ne.s32.totalorder %s115, %s116
      %p125 = scmp.eq.s32.totalorder %s37, 0
      %p126 = por %p124, %p125
      %p127 = scmp.ne.s32.totalorder %s115, %s116
      %p128 = scmp.eq.s32.totalorder %s38, 1
      %p129 = por %p127, %p128
      %p131 = scmp.ne.s32.totalorder %s116, %s130
      %p132 = scmp.eq.s32.totalorder %s38, 0
      %p133 = por %p131, %p132
      %s135 = sadd.s32 %s134, 1
      %p138 = scmp.eq.s32.totalorder %s32, 1
      %p139 = scmp.ne.s32.totalorder %s134, %s136
      %p140 = scmp.eq.s32.totalorder %s32, 0
      %p141 = por %p139, %p140
      %p142 = scmp.ne.s32.totalorder %s134, %s136
      %p143 = scmp.eq.s32.totalorder %s37, 1
      %p144 = por %p142, %p143
      %p145 = scmp.ne.s32.totalorder %s136, %s137
      %p146 = scmp.eq.s32.totalorder %s37, 0
      %p147 = por %p145, %p146
      %p148 = scmp.ne.s32.totalorder %s136, %s137
      %p149 = scmp.eq.s32.totalorder %s38, 1
      %p150 = por %p148, %p149
      %p152 = scmp.ne.s32.totalorder %s137, %s151
      %p153 = scmp.eq.s32.totalorder %s38, 0
      %p154 = por %p152, %p153
      %s156 = sadd.s32 %s155, 1
      %p159 = scmp.eq.s32.totalorder %s32, 1
      %p160 = scmp.ne.s32.totalorder %s155, %s157
      %p161 = scmp.eq.s32.totalorder %s32, 0
      %p162 = por %p160, %p161
      %p163 = scmp.ne.s32.totalorder %s155, %s157
      %p164 = scmp.eq.s32.totalorder %s37, 1
      %p165 = por %p163, %p164
      %p166 = scmp.ne.s32.totalorder %s157, %s158
      %p167 = scmp.eq.s32.totalorder %s37, 0
      %p168 = por %p166, %p167
      %p169 = scmp.ne.s32.totalorder %s157, %s158
      %p170 = scmp.eq.s32.totalorder %s38, 1
      %p171 = por %p169, %p170
      %p173 = scmp.ne.s32.totalorder %s158, %s172
      %p174 = scmp.eq.s32.totalorder %s38, 0
      %p175 = por %p173, %p174
      %s177 = sadd.s32 %s176, 1
      %p180 = scmp.eq.s32.totalorder %s32, 1
      %p181 = scmp.ne.s32.totalorder %s176, %s178
      %p182 = scmp.eq.s32.totalorder %s32, 0
      %p183 = por %p181, %p182
      %p184 = scmp.ne.s32.totalorder %s176, %s178
      %p185 = scmp.eq.s32.totalorder %s37, 1
      %p186 = por %p184, %p185
      %p187 = scmp.ne.s32.totalorder %s178, %s179
      %p188 = scmp.eq.s32.totalorder %s37, 0
      %p189 = por %p187, %p188
      %p190 = scmp.ne.s32.totalorder %s178, %s179
      %p191 = scmp.eq.s32.totalorder %s38, 1
      %p192 = por %p190, %p191
      %p194 = scmp.ne.s32.totalorder %s179, %s193
      %p195 = scmp.eq.s32.totalorder %s38, 0
      %p196 = por %p194, %p195
      %s198 = sadd.s32 %s197, 1
      %p201 = scmp.eq.s32.totalorder %s32, 1
      %p202 = scmp.ne.s32.totalorder %s197, %s199
      %p203 = scmp.eq.s32.totalorder %s32, 0
      %p204 = por %p202, %p203
      %p205 = scmp.ne.s32.totalorder %s197, %s199
      %p206 = scmp.eq.s32.totalorder %s37, 1
      %p207 = por %p205, %p206
      %p208 = scmp.ne.s32.totalorder %s199, %s200
      %p209 = scmp.eq.s32.totalorder %s37, 0
      %p210 = por %p208, %p209
      %p211 = scmp.ne.s32.totalorder %s199, %s200
      %p212 = scmp.eq.s32.totalorder %s38, 1
      %p213 = por %p211, %p212
      %p215 = scmp.ne.s32.totalorder %s200, %s214
      %p216 = scmp.eq.s32.totalorder %s38, 0
      %p217 = por %p215, %p216
      %s219 = sadd.s32 %s218, 1
      %p222 = scmp.eq.s32.totalorder %s32, 1
      %p223 = scmp.ne.s32.totalorder %s218, %s220
      %p224 = scmp.eq.s32.totalorder %s32, 0
      %p225 = por %p223, %p224
      %p226 = scmp.ne.s32.totalorder %s218, %s220
      %p227 = scmp.eq.s32.totalorder %s37, 1
      %p228 = por %p226, %p227
      %p229 = scmp.ne.s32.totalorder %s220, %s221
      %p230 = scmp.eq.s32.totalorder %s37, 0
      %p231 = por %p229, %p230
      %p232 = scmp.ne.s32.totalorder %s220, %s221
      %p233 = scmp.eq.s32.totalorder %s38, 1
      %p234 = por %p232, %p233
      %p236 = scmp.ne.s32.totalorder %s221, %s235
      %p237 = scmp.eq.s32.totalorder %s38, 0
      %p238 = por %p236, %p237
      %s240 = sadd.s32 %s239, 1
      %p243 = scmp.eq.s32.totalorder %s32, 1
      %p244 = scmp.ne.s32.totalorder %s239, %s241
      %p245 = scmp.eq.s32.totalorder %s32, 0
      %p246 = por %p244, %p245
      %p247 = scmp.ne.s32.totalorder %s239, %s241
      %p248 = scmp.eq.s32.totalorder %s37, 1
      %p249 = por %p247, %p248
      %p250 = scmp.ne.s32.totalorder %s241, %s242
      %p251 = scmp.eq.s32.totalorder %s37, 0
      %p252 = por %p250, %p251
      %p253 = scmp.ne.s32.totalorder %s241, %s242
      %p254 = scmp.eq.s32.totalorder %s38, 1
      %p255 = por %p253, %p254
      %p257 = scmp.ne.s32.totalorder %s242, %s256
      %p258 = scmp.eq.s32.totalorder %s38, 0
      %p259 = por %p257, %p258
      %s261 = sadd.s32 %s260, 1
      %p264 = scmp.eq.s32.totalorder %s32, 1
      %p265 = scmp.ne.s32.totalorder %s260, %s262
      %p266 = scmp.eq.s32.totalorder %s32, 0
      %p267 = por %p265, %p266
      %p268 = scmp.ne.s32.totalorder %s260, %s262
      %p269 = scmp.eq.s32.totalorder %s37, 1
      %p270 = por %p268, %p269
      %p271 = scmp.ne.s32.totalorder %s262, %s263
      %p272 = scmp.eq.s32.totalorder %s37, 0
      %p273 = por %p271, %p272
      %p274 = scmp.ne.s32.totalorder %s262, %s263
      %p275 = scmp.eq.s32.totalorder %s38, 1
      %p276 = por %p274, %p275
      %p278 = scmp.ne.s32.totalorder %s263, %s277
      %p279 = scmp.eq.s32.totalorder %s38, 0
      %p280 = por %p278, %p279
      %s282 = sadd.s32 %s281, 1
      %p285 = scmp.eq.s32.totalorder %s32, 1
      %p286 = scmp.ne.s32.totalorder %s281, %s283
      %p287 = scmp.eq.s32.totalorder %s32, 0
      %p288 = por %p286, %p287
      %p289 = scmp.ne.s32.totalorder %s281, %s283
      %p290 = scmp.eq.s32.totalorder %s37, 1
      %p291 = por %p289, %p290
      %p292 = scmp.ne.s32.totalorder %s283, %s284
      %p293 = scmp.eq.s32.totalorder %s37, 0
      %p294 = por %p292, %p293
      %p295 = scmp.ne.s32.totalorder %s283, %s284
      %p296 = scmp.eq.s32.totalorder %s38, 1
      %p297 = por %p295, %p296
      %p299 = scmp.ne.s32.totalorder %s284, %s298
      %p300 = scmp.eq.s32.totalorder %s38, 0
      %p301 = por %p299, %p300
      %s303 = sadd.s32 %s302, 1
      %p306 = scmp.eq.s32.totalorder %s32, 1
      %p307 = scmp.ne.s32.totalorder %s302, %s304
      %p308 = scmp.eq.s32.totalorder %s32, 0
      %p309 = por %p307, %p308
      %p310 = scmp.ne.s32.totalorder %s302, %s304
      %p311 = scmp.eq.s32.totalorder %s37, 1
      %p312 = por %p310, %p311
      %p313 = scmp.ne.s32.totalorder %s304, %s305
      %p314 = scmp.eq.s32.totalorder %s37, 0
      %p315 = por %p313, %p314
      %p316 = scmp.ne.s32.totalorder %s304, %s305
      %p317 = scmp.eq.s32.totalorder %s38, 1
      %p318 = por %p316, %p317
      %p320 = scmp.ne.s32.totalorder %s305, %s319
      %p321 = scmp.eq.s32.totalorder %s38, 0
      %p322 = por %p320, %p321
      %s324 = sadd.s32 %s323, 1
      %p327 = scmp.eq.s32.totalorder %s32, 1
      %p328 = scmp.ne.s32.totalorder %s323, %s325
      %p329 = scmp.eq.s32.totalorder %s32, 0
      %p330 = por %p328, %p329
      %p331 = scmp.ne.s32.totalorder %s323, %s325
      %p332 = scmp.eq.s32.totalorder %s37, 1
      %p333 = por %p331, %p332
      %p334 = scmp.ne.s32.totalorder %s325, %s326
      %p335 = scmp.eq.s32.totalorder %s37, 0
      %p336 = por %p334, %p335
      %p337 = scmp.ne.s32.totalorder %s325, %s326
      %p338 = scmp.eq.s32.totalorder %s38, 1
      %p339 = por %p337, %p338
      %p341 = scmp.ne.s32.totalorder %s326, %s340
      %p342 = scmp.eq.s32.totalorder %s38, 0
      %p343 = por %p341, %p342
      %s345 = sadd.s32 %s344, 1
      %p348 = scmp.eq.s32.totalorder %s32, 1
      %p349 = scmp.ne.s32.totalorder %s344, %s346
      %p350 = scmp.eq.s32.totalorder %s32, 0
      %p351 = por %p349, %p350
      %p352 = scmp.ne.s32.totalorder %s344, %s346
      %p353 = scmp.eq.s32.totalorder %s37, 1
      %p354 = por %p352, %p353
      %p355 = scmp.ne.s32.totalorder %s346, %s347
      %p356 = scmp.eq.s32.totalorder %s37, 0
      %p357 = por %p355, %p356
      %p358 = scmp.ne.s32.totalorder %s346, %s347
      %p359 = scmp.eq.s32.totalorder %s38, 1
      %p360 = por %p358, %p359
      %p362 = scmp.ne.s32.totalorder %s347, %s361
      %p363 = scmp.eq.s32.totalorder %s38, 0
      %p364 = por %p362, %p363
      %s366 = sadd.s32 %s365, 1
      %p369 = scmp.eq.s32.totalorder %s32, 1
      %p370 = scmp.ne.s32.totalorder %s365, %s367
      %p371 = scmp.eq.s32.totalorder %s32, 0
      %p372 = por %p370, %p371
      %p373 = scmp.ne.s32.totalorder %s365, %s367
      %p374 = scmp.eq.s32.totalorder %s37, 1
      %p375 = por %p373, %p374
      %p376 = scmp.ne.s32.totalorder %s367, %s368
      %p377 = scmp.eq.s32.totalorder %s37, 0
      %p378 = por %p376, %p377
      %p379 = scmp.ne.s32.totalorder %s367, %s368
      %p380 = scmp.eq.s32.totalorder %s38, 1
      %p381 = por %p379, %p380
      %p383 = scmp.ne.s32.totalorder %s368, %s382
      %p384 = scmp.eq.s32.totalorder %s38, 0
      %p385 = por %p383, %p384
      %s387 = sadd.s32 %s386, 1
      %p390 = scmp.eq.s32.totalorder %s32, 1
      %p391 = scmp.ne.s32.totalorder %s386, %s388
      %p392 = scmp.eq.s32.totalorder %s32, 0
      %p393 = por %p391, %p392
      %p394 = scmp.ne.s32.totalorder %s386, %s388
      %p395 = scmp.eq.s32.totalorder %s37, 1
      %p396 = por %p394, %p395
      %p397 = scmp.ne.s32.totalorder %s388, %s389
      %p398 = scmp.eq.s32.totalorder %s37, 0
      %p399 = por %p397, %p398
      %p400 = scmp.ne.s32.totalorder %s388, %s389
      %p401 = scmp.eq.s32.totalorder %s38, 1
      %p402 = por %p400, %p401
      %p404 = scmp.ne.s32.totalorder %s389, %s403
      %p405 = scmp.eq.s32.totalorder %s38, 0
      %p406 = por %p404, %p405
      %s408 = sadd.s32 %s407, 1
      %p411 = scmp.eq.s32.totalorder %s32, 1
      %p412 = scmp.ne.s32.totalorder %s407, %s409
      %p413 = scmp.eq.s32.totalorder %s32, 0
      %p414 = por %p412, %p413
      %p415 = scmp.ne.s32.totalorder %s407, %s409
      %p416 = scmp.eq.s32.totalorder %s37, 1
      %p417 = por %p415, %p416
      %p418 = scmp.ne.s32.totalorder %s409, %s410
      %p419 = scmp.eq.s32.totalorder %s37, 0
      %p420 = por %p418, %p419
      %p421 = scmp.ne.s32.totalorder %s409, %s410
      %p422 = scmp.eq.s32.totalorder %s38, 1
      %p423 = por %p421, %p422
      %p425 = scmp.ne.s32.totalorder %s410, %s424
      %p426 = scmp.eq.s32.totalorder %s38, 0
      %p427 = por %p425, %p426
      %s429 = sadd.s32 %s428, 1
      %p432 = scmp.eq.s32.totalorder %s32, 1
      %p433 = scmp.ne.s32.totalorder %s428, %s430
      %p434 = scmp.eq.s32.totalorder %s32, 0
      %p435 = por %p433, %p434
      %p436 = scmp.ne.s32.totalorder %s428, %s430
      %p437 = scmp.eq.s32.totalorder %s37, 1
      %p438 = por %p436, %p437
      %p439 = scmp.ne.s32.totalorder %s430, %s431
      %p440 = scmp.eq.s32.totalorder %s37, 0
      %p441 = por %p439, %p440
      %p442 = scmp.ne.s32.totalorder %s430, %s431
      %p443 = scmp.eq.s32.totalorder %s38, 1
      %p444 = por %p442, %p443
      %p446 = scmp.ne.s32.totalorder %s431, %s445
      %p447 = scmp.eq.s32.totalorder %s38, 0
      %p448 = por %p446, %p447
      %s450 = sadd.s32 %s449, 1
      %p453 = scmp.eq.s32.totalorder %s32, 1
      %p454 = scmp.ne.s32.totalorder %s449, %s451
      %p455 = scmp.eq.s32.totalorder %s32, 0
      %p456 = por %p454, %p455
      %p457 = scmp.ne.s32.totalorder %s449, %s451
      %p458 = scmp.eq.s32.totalorder %s37, 1
      %p459 = por %p457, %p458
      %p460 = scmp.ne.s32.totalorder %s451, %s452
      %p461 = scmp.eq.s32.totalorder %s37, 0
      %p462 = por %p460, %p461
      %p463 = scmp.ne.s32.totalorder %s451, %s452
      %p464 = scmp.eq.s32.totalorder %s38, 1
      %p465 = por %p463, %p464
      %p467 = scmp.ne.s32.totalorder %s452, %s466
      %p468 = scmp.eq.s32.totalorder %s38, 0
      %p469 = por %p467, %p468
      %s471 = sadd.s32 %s470, 1
      %p474 = scmp.eq.s32.totalorder %s32, 1
      %p475 = scmp.ne.s32.totalorder %s470, %s472
      %p476 = scmp.eq.s32.totalorder %s32, 0
      %p477 = por %p475, %p476
      %p478 = scmp.ne.s32.totalorder %s470, %s472
      %p479 = scmp.eq.s32.totalorder %s37, 1
      %p480 = por %p478, %p479
      %p481 = scmp.ne.s32.totalorder %s472, %s473
      %p482 = scmp.eq.s32.totalorder %s37, 0
      %p483 = por %p481, %p482
      %p484 = scmp.ne.s32.totalorder %s472, %s473
      %p485 = scmp.eq.s32.totalorder %s38, 1
      %p486 = por %p484, %p485
      %p488 = scmp.ne.s32.totalorder %s473, %s487
      %p489 = scmp.eq.s32.totalorder %s38, 0
      %p490 = por %p488, %p489
      %s491 = ssub.s32 %s32, %s39
      %p492 = scmp.eq.s32.totalorder %s491, 0
      %s494 = sadd.s32 %s493, 1
      %s495 = scalar_select %p492, %s493, %s494
      %p498 = pneg %p492
      %p499 = scmp.eq.s32.totalorder %s32, 1
      %p500 = por %p498, %p499
      %p501 = scmp.ne.s32.totalorder %s493, %s496
      %p502 = scmp.eq.s32.totalorder %s32, 0
      %p503 = por %p501, %p502
      %p504 = scmp.ne.s32.totalorder %s493, %s496
      %p505 = scmp.eq.s32.totalorder %s37, 1
      %p506 = por %p504, %p505
      %p507 = scmp.ne.s32.totalorder %s496, %s497
      %p508 = scmp.eq.s32.totalorder %s37, 0
      %p509 = por %p507, %p508
      %p510 = scmp.ne.s32.totalorder %s496, %s497
      %p511 = scmp.eq.s32.totalorder %s38, 1
      %p512 = por %p510, %p511
      %p514 = scmp.ne.s32.totalorder %s497, %s513
      %p515 = scmp.eq.s32.totalorder %s38, 0
      %p516 = por %p514, %p515
      %s517 = ssub.s32 %s32, %s39
      %p518 = scmp.eq.s32.totalorder %s517, 0
      %s520 = sadd.s32 %s519, 1
      %s521 = scalar_select %p518, %s519, %s520
      %p524 = pneg %p518
      %p525 = scmp.eq.s32.totalorder %s32, 1
      %p526 = por %p524, %p525
      %p527 = scmp.ne.s32.totalorder %s519, %s522
      %p528 = scmp.eq.s32.totalorder %s32, 0
      %p529 = por %p527, %p528
      %p530 = scmp.ne.s32.totalorder %s519, %s522
      %p531 = scmp.eq.s32.totalorder %s37, 1
      %p532 = por %p530, %p531
      %p533 = scmp.ne.s32.totalorder %s522, %s523
      %p534 = scmp.eq.s32.totalorder %s37, 0
      %p535 = por %p533, %p534
      %p536 = scmp.ne.s32.totalorder %s522, %s523
      %p537 = scmp.eq.s32.totalorder %s38, 1
      %p538 = por %p536, %p537
      %p540 = scmp.ne.s32.totalorder %s523, %s539
      %p541 = scmp.eq.s32.totalorder %s38, 0
      %p542 = por %p540, %p541
      %p543 = scmp.le.s32.totalorder 1, %s32
      %p544 = scmp.lt.s32.totalorder %s32, 3
      %p545 = pnand %p543, %p544
      %p546 = pneg %p545
      // Predicated region
      $region9: #{multiview_vilt_forward.3} parent=5 // pred_check
        _
      $region10: #{multiview_vilt_forward.3} parent=5 // pred_check_branch
        %548 = sbr.rel (%p545) target = $region12
      $region11: #{multiview_vilt_forward.3} parent=5 // pred_region
        %s549 = ssub.s32 %s32, 1
        // Predicated region
        $region13: #{multiview_vilt_forward.3} parent=11 // pred_check
          %p550 = pneg %p105
        $region14: #{multiview_vilt_forward.3} parent=11 // pred_check_branch
          %552 = sbr.rel (%p550) target = $region16
        $region15: #{multiview_vilt_forward.3} parent=11 // pred_region
          _
        $region16: #{multiview_vilt_forward.3} parent=11 // pred_fallthru
          _
        // Predicated region
        $region17: #{multiview_vilt_forward.3} parent=11 // pred_check
          %p553 = pneg %p126
        $region18: #{multiview_vilt_forward.3} parent=11 // pred_check_branch
          %555 = sbr.rel (%p553) target = $region20
        $region19: #{multiview_vilt_forward.3} parent=11 // pred_region
          _
        $region20: #{multiview_vilt_forward.3} parent=11 // pred_fallthru
          _
        // Predicated region
        $region21: #{multiview_vilt_forward.3} parent=11 // pred_check
          %p556 = pneg %p147
        $region22: #{multiview_vilt_forward.3} parent=11 // pred_check_branch
          %558 = sbr.rel (%p556) target = $region24
        $region23: #{multiview_vilt_forward.3} parent=11 // pred_region
          _
        $region24: #{multiview_vilt_forward.3} parent=11 // pred_fallthru
          _
        // Predicated region
        $region25: #{multiview_vilt_forward.3} parent=11 // pred_check
          %p559 = pneg %p168
        $region26: #{multiview_vilt_forward.3} parent=11 // pred_check_branch
          %561 = sbr.rel (%p559) target = $region28
        $region27: #{multiview_vilt_forward.3} parent=11 // pred_region
          _
        $region28: #{multiview_vilt_forward.3} parent=11 // pred_fallthru
          _
        // Predicated region
        $region29: #{multiview_vilt_forward.3} parent=11 // pred_check
          %p562 = pneg %p189
        $region30: #{multiview_vilt_forward.3} parent=11 // pred_check_branch
          %564 = sbr.rel (%p562) target = $region32
        $region31: #{multiview_vilt_forward.3} parent=11 // pred_region
          _
        $region32: #{multiview_vilt_forward.3} parent=11 // pred_fallthru
          _
        // Predicated region
        $region33: #{multiview_vilt_forward.3} parent=11 // pred_check
          %p565 = pneg %p210
        $region34: #{multiview_vilt_forward.3} parent=11 // pred_check_branch
          %567 = sbr.rel (%p565) target = $region36
        $region35: #{multiview_vilt_forward.3} parent=11 // pred_region
          _
        $region36: #{multiview_vilt_forward.3} parent=11 // pred_fallthru
          _
        // Predicated region
        $region37: #{multiview_vilt_forward.3} parent=11 // pred_check
          %p568 = pneg %p231
        $region38: #{multiview_vilt_forward.3} parent=11 // pred_check_branch
          %570 = sbr.rel (%p568) target = $region40
        $region39: #{multiview_vilt_forward.3} parent=11 // pred_region
          _
        $region40: #{multiview_vilt_forward.3} parent=11 // pred_fallthru
          _
        // Predicated region
        $region41: #{multiview_vilt_forward.3} parent=11 // pred_check
          %p571 = pneg %p252
        $region42: #{multiview_vilt_forward.3} parent=11 // pred_check_branch
          %573 = sbr.rel (%p571) target = $region44
        $region43: #{multiview_vilt_forward.3} parent=11 // pred_region
          _
        $region44: #{multiview_vilt_forward.3} parent=11 // pred_fallthru
          _
        // Predicated region
        $region45: #{multiview_vilt_forward.3} parent=11 // pred_check
          %p574 = pneg %p273
        $region46: #{multiview_vilt_forward.3} parent=11 // pred_check_branch
          %576 = sbr.rel (%p574) target = $region48
        $region47: #{multiview_vilt_forward.3} parent=11 // pred_region
          _
        $region48: #{multiview_vilt_forward.3} parent=11 // pred_fallthru
          _
        // Predicated region
        $region49: #{multiview_vilt_forward.3} parent=11 // pred_check
          %p577 = pneg %p294
        $region50: #{multiview_vilt_forward.3} parent=11 // pred_check_branch
          %579 = sbr.rel (%p577) target = $region52
        $region51: #{multiview_vilt_forward.3} parent=11 // pred_region
          _
        $region52: #{multiview_vilt_forward.3} parent=11 // pred_fallthru
          _
        // Predicated region
        $region53: #{multiview_vilt_forward.3} parent=11 // pred_check
          %p580 = pneg %p315
        $region54: #{multiview_vilt_forward.3} parent=11 // pred_check_branch
          %582 = sbr.rel (%p580) target = $region56
        $region55: #{multiview_vilt_forward.3} parent=11 // pred_region
          _
        $region56: #{multiview_vilt_forward.3} parent=11 // pred_fallthru
          _
        // Predicated region
        $region57: #{multiview_vilt_forward.3} parent=11 // pred_check
          %p583 = pneg %p336
        $region58: #{multiview_vilt_forward.3} parent=11 // pred_check_branch
          %585 = sbr.rel (%p583) target = $region60
        $region59: #{multiview_vilt_forward.3} parent=11 // pred_region
          _
        $region60: #{multiview_vilt_forward.3} parent=11 // pred_fallthru
          _
        // Predicated region
        $region61: #{multiview_vilt_forward.3} parent=11 // pred_check
          %p586 = pneg %p357
        $region62: #{multiview_vilt_forward.3} parent=11 // pred_check_branch
          %588 = sbr.rel (%p586) target = $region64
        $region63: #{multiview_vilt_forward.3} parent=11 // pred_region
          _
        $region64: #{multiview_vilt_forward.3} parent=11 // pred_fallthru
          _
        // Predicated region
        $region65: #{multiview_vilt_forward.3} parent=11 // pred_check
          %p589 = pneg %p378
        $region66: #{multiview_vilt_forward.3} parent=11 // pred_check_branch
          %591 = sbr.rel (%p589) target = $region68
        $region67: #{multiview_vilt_forward.3} parent=11 // pred_region
          _
        $region68: #{multiview_vilt_forward.3} parent=11 // pred_fallthru
          _
        // Predicated region
        $region69: #{multiview_vilt_forward.3} parent=11 // pred_check
          %p592 = pneg %p399
        $region70: #{multiview_vilt_forward.3} parent=11 // pred_check_branch
          %594 = sbr.rel (%p592) target = $region72
        $region71: #{multiview_vilt_forward.3} parent=11 // pred_region
          _
        $region72: #{multiview_vilt_forward.3} parent=11 // pred_fallthru
          _
        // Predicated region
        $region73: #{multiview_vilt_forward.3} parent=11 // pred_check
          %p595 = pneg %p420
        $region74: #{multiview_vilt_forward.3} parent=11 // pred_check_branch
          %597 = sbr.rel (%p595) target = $region76
        $region75: #{multiview_vilt_forward.3} parent=11 // pred_region
          _
        $region76: #{multiview_vilt_forward.3} parent=11 // pred_fallthru
          _
        // Predicated region
        $region77: #{multiview_vilt_forward.3} parent=11 // pred_check
          %p598 = pneg %p441
        $region78: #{multiview_vilt_forward.3} parent=11 // pred_check_branch
          %600 = sbr.rel (%p598) target = $region80
        $region79: #{multiview_vilt_forward.3} parent=11 // pred_region
          _
        $region80: #{multiview_vilt_forward.3} parent=11 // pred_fallthru
          _
        // Predicated region
        $region81: #{multiview_vilt_forward.3} parent=11 // pred_check
          %p601 = pneg %p462
        $region82: #{multiview_vilt_forward.3} parent=11 // pred_check_branch
          %603 = sbr.rel (%p601) target = $region84
        $region83: #{multiview_vilt_forward.3} parent=11 // pred_region
          _
        $region84: #{multiview_vilt_forward.3} parent=11 // pred_fallthru
          _
        // Predicated region
        $region85: #{multiview_vilt_forward.3} parent=11 // pred_check
          %p604 = pneg %p483
        $region86: #{multiview_vilt_forward.3} parent=11 // pred_check_branch
          %606 = sbr.rel (%p604) target = $region88
        $region87: #{multiview_vilt_forward.3} parent=11 // pred_region
          _
        $region88: #{multiview_vilt_forward.3} parent=11 // pred_fallthru
          _
      $region12: #{multiview_vilt_forward.3} parent=5 // pred_fallthru
        _
      %p607 = scmp.lt.s32.totalorder %s32, 2
      // Predicated region
      $region89: #{multiview_vilt_forward.3} parent=5 // pred_check
        %p608 = pneg %p607
      $region90: #{multiview_vilt_forward.3} parent=5 // pred_check_branch
        %610 = sbr.rel (%p608) target = $region92
      $region91: #{multiview_vilt_forward.3} parent=5 // pred_region
        // Predicated region
        $region93: #{multiview_vilt_forward.3} parent=91 // pred_check
          %p611 = pneg %p52
        $region94: #{multiview_vilt_forward.3} parent=91 // pred_check_branch
          %613 = sbr.rel (%p611) target = $region96
        $region95: #{multiview_vilt_forward.3} parent=91 // pred_region
          %p614 = scmp.lt.s32.totalorder %s32, 1
          %s615 = scalar_select %p614, %s32, 1
          %s616 = smul.addr %s615, 3
          %s617 = smul.addr %s616, 8
          %s618 = scalar_lea.vmem %s0, %s617
        $region96: #{multiview_vilt_forward.3} parent=91 // pred_fallthru
          _
        // Predicated region
        $region97: #{multiview_vilt_forward.3} parent=91 // pred_check
          %p619 = pneg %p78
        $region98: #{multiview_vilt_forward.3} parent=91 // pred_check_branch
          %621 = sbr.rel (%p619) target = $region100
        $region99: #{multiview_vilt_forward.3} parent=91 // pred_region
          %p622 = scmp.lt.s32.totalorder %s32, 1
          %s623 = scalar_select %p622, %s32, 1
          %s624 = scalar_lea.vmem %s1, %s623
        $region100: #{multiview_vilt_forward.3} parent=91 // pred_fallthru
          _
      $region92: #{multiview_vilt_forward.3} parent=5 // pred_fallthru
        _
      %p625 = scmp.le.s32.totalorder 1, %s32
      %p626 = scmp.lt.s32.totalorder %s32, 3
      %p627 = pnand %p625, %p626
      %p628 = pneg %p627
      // Predicated region
      $region101: #{multiview_vilt_forward.3} parent=5 // pred_check
        _
      $region102: #{multiview_vilt_forward.3} parent=5 // pred_check_branch
        %630 = sbr.rel (%p627) target = $region104
      $region103: #{multiview_vilt_forward.3} parent=5 // pred_region
        %s631 = ssub.s32 %s32, 1
        %p632 = scmp.lt.s32.totalorder %s37, 1
        %s633 = scalar_select %p632, %s37, 1
        %s634 = smul.addr %s633, 3
        %s635 = smul.addr %s634, 8
        %s636 = scalar_lea.vmem %s0, %s635
        %p637 = pneg %p58
        %p638 = pneg %p55
        %p639 = scmp.lt.s32.totalorder %s37, 1
        %s640 = scalar_select %p639, %s37, 1
        %s641 = scalar_lea.vmem %s1, %s640
        %p642 = pneg %p84
        %p643 = pneg %p81
        %p644 = pneg %p105
        %p645 = pneg %p102
        %p646 = pneg %p126
        %p647 = pneg %p123
        %p648 = pneg %p147
        %p649 = pneg %p144
        %p650 = pneg %p168
        %p651 = pneg %p165
        %p652 = pneg %p189
        %p653 = pneg %p186
        %p654 = pneg %p210
        %p655 = pneg %p207
        %p656 = pneg %p231
        %p657 = pneg %p228
        %p658 = pneg %p252
        %p659 = pneg %p249
        %p660 = pneg %p273
        %p661 = pneg %p270
        %p662 = pneg %p294
        %p663 = pneg %p291
        %p664 = pneg %p315
        %p665 = pneg %p312
        %p666 = pneg %p336
        %p667 = pneg %p333
        %p668 = pneg %p357
        %p669 = pneg %p354
        %p670 = pneg %p378
        %p671 = pneg %p375
        %p672 = pneg %p399
        %p673 = pneg %p396
        %p674 = pneg %p420
        %p675 = pneg %p417
        %p676 = pneg %p441
        %p677 = pneg %p438
        %p678 = pneg %p462
        %p679 = pneg %p459
        %p680 = pneg %p483
        %p681 = pneg %p480
        %p682 = pneg %p509
        %p683 = pneg %p506
        %p684 = scmp.lt.s32.totalorder %s37, 1
        %s685 = scalar_select %p684, %s37, 1
        %s686 = smul.addr %s685, 3
        %s687 = smul.addr %s686, 8
        %s688 = scalar_lea.vmem %s21, %s687
        %p689 = pneg %p535
        %p690 = pneg %p532
        %s691 = sand.u32 %s522, 1
        %s692 = scalar_lea.sflag [#allocation3], %s691
        %s693 = sand.u32 %s522, 1
        %s694 = scalar_lea.vmem [#allocation2], %s693
        %p695 = scmp.lt.s32.totalorder %s37, 1
        %s696 = scalar_select %p695, %s37, 1
        %s697 = smul.addr %s696, 3
        %s698 = smul.addr %s697, 8
        %s699 = scalar_lea.vmem %s0, %s698
        %p700 = scmp.lt.s32.totalorder %s37, 1
        %s701 = scalar_select %p700, %s37, 1
        %s702 = scalar_lea.vmem %s1, %s701
        %p703 = scmp.lt.s32.totalorder %s37, 1
        %s704 = scalar_select %p703, %s37, 1
        %s705 = smul.addr %s704, 3
        %s706 = smul.addr %s705, 8
        %s707 = scalar_lea.vmem %s21, %s706
        %v709 = vld [vmem:[%s699] sm:$0xff]
        %v710 = vld [vmem:[%s699 + $0x8] sm:$0xff]
        %v711 = vld [vmem:[%s699 + $0x10] sm:$0xff]
        %v712 = vld [vmem:[%s702] sm:$0x1]
        %v713 = vld [vmem:[%s2] sm:$0x1]
        %v714 = vld [vmem:[%s3] sm:$0x1]
        %vm715 = vcmask 261120
        %v716 = vsel %vm715, %v709, 0.0
        %717 = vadd.xlane.f32.xlu0 %v716
        %v718 = vpop.xlane.xlu0 %717
        %v719 = vrcp.pop 32.0
        %v720 = vmul.f32 %v718, %v719
        %v721 = vsub.f32 %v709, %v720
        %v722 = vmul.f32 %v721, %v721
        %v723 = vsel %vm715, %v722, 0.0
        %724 = vadd.xlane.f32.xlu0 %v723
        %v725 = vpop.xlane.xlu0 %724
        %v726 = vmul.f32 %v725, %v719
        %v727 = vadd.f32 %v726, 1e-12
        %v728 = vrsqrt.pop %v727
        %v729 = vmul.f32 %v721, %v728
        %v731 = vlaneseq
        %v732 = vshrl.u32 %v731, 7
        %v733 = vsub.s32 0, %v732
        %v734 = vrot.slane %v713, %v733
        %v736 = vmul.f32 %v729, %v734
        %v738 = vlaneseq
        %v739 = vshrl.u32 %v738, 7
        %v740 = vsub.s32 0, %v739
        %v741 = vrot.slane %v714, %v740
        %v743 = vadd.f32 %v736, %v741
        %v744 = vld [vmem:[%s4] sm:$0x1]
        %v746 = vlaneseq
        %v747 = vshrl.u32 %v746, 7
        %v748 = vsub.s32 0, %v747
        %v749 = vrot.slane %v744, %v748
        %v751 = vadd.f32 %v743, %v749
        %v752 = vld [vmem:[%s5] sm:$0x1]
        %v753 = vld [vmem:[%s6] sm:$0x1]
        %v754 = vsel %vm715, %v751, 0.0
        %755 = vadd.xlane.f32.xlu0 %v754
        %v756 = vpop.xlane.xlu0 %755
        %v757 = vsel %vm715, %v710, 0.0
        %758 = vadd.xlane.f32.xlu0 %v757
        %v759 = vpop.xlane.xlu0 %758
        %v760 = vsel %vm715, %v711, 0.0
        %761 = vadd.xlane.f32.xlu0 %v760
        %v762 = vpop.xlane.xlu0 %761
        %v763 = vmul.f32 %v756, %v719
        %v764 = vmul.f32 %v759, %v719
        %v765 = vmul.f32 %v762, %v719
        %v766 = vsub.f32 %v751, %v763
        %v767 = vsub.f32 %v710, %v764
        %v768 = vsub.f32 %v711, %v765
        %v769 = vmul.f32 %v766, %v766
        %v770 = vmul.f32 %v767, %v767
        %v771 = vmul.f32 %v768, %v768
        %v772 = vsel %vm715, %v769, 0.0
        %773 = vadd.xlane.f32.xlu0 %v772
        %v774 = vpop.xlane.xlu0 %773
        %v775 = vsel %vm715, %v770, 0.0
        %776 = vadd.xlane.f32.xlu0 %v775
        %v777 = vpop.xlane.xlu0 %776
        %v778 = vsel %vm715, %v771, 0.0
        %779 = vadd.xlane.f32.xlu0 %v778
        %v780 = vpop.xlane.xlu0 %779
        %v781 = vmul.f32 %v774, %v719
        %v782 = vmul.f32 %v777, %v719
        %v783 = vmul.f32 %v780, %v719
        %v784 = vadd.f32 %v781, 1e-12
        %v785 = vadd.f32 %v782, 1e-12
        %v786 = vadd.f32 %v783, 1e-12
        %v787 = vrsqrt.pop %v784
        %v788 = vrsqrt.pop %v785
        %v789 = vrsqrt.pop %v786
        %v790 = vmul.f32 %v766, %v787
        %v791 = vmul.f32 %v767, %v788
        %v792 = vmul.f32 %v768, %v789
        %v794 = vlaneseq
        %v795 = vshrl.u32 %v794, 7
        %v796 = vsub.s32 0, %v795
        %v797 = vrot.slane %v752, %v796
        %v799 = vmul.f32 %v790, %v797
        %v800 = vmul.f32 %v791, %v797
        %v801 = vmul.f32 %v792, %v797
        %v803 = vlaneseq
        %v804 = vshrl.u32 %v803, 7
        %v805 = vsub.s32 0, %v804
        %v806 = vrot.slane %v753, %v805
        %v808 = vadd.f32 %v799, %v806
        %v809 = vadd.f32 %v800, %v806
        %v810 = vadd.f32 %v801, %v806
        %v811 = vld [vmem:[%s7] sm:$0xf]
        %v812 = vld [vmem:[%s7 + $0x4] sm:$0xf]
        %v813 = vld [vmem:[%s7 + $0x8] sm:$0xf]
        %v814 = vld [vmem:[%s7 + $0xc] sm:$0xf]
        %v815 = vpack.c.bf16 %v809, %v808
        %v816 = vpack.c.bf16 %v810, %v810
        %v817 = vld [vmem:[%s8] sm:$0x1]
        %v819 = vlaneseq
        %v820 = vshrl.u32 %v819, 7
        %v821 = vsub.s32 0, %v820
        %v822 = vrot.slane %v817, %v821
        %v828 = vunpack.c.l.b16 %v811
        %v829 = vunpack.c.l.b16 %v812
        %v830 = vunpack.c.l.b16 %v813
        %v831 = vunpack.c.l.b16 %v814
        %v832 = vpack.c.b16 %v829, %v828
        %v833 = vpack.c.b16 %v831, %v830
        %v837 = vsel %vm715, %v815, 0
        %v840 = vsel %vm715, %v816, 0
        %842 = vmatprep.subr.bf16.mxu0 0
        %843 = vmatpush1.bf16.msra.mxu0 0
        %844 = vmatprep.subr.bf16.mxu0 0
        %845 = vmatpush1.bf16.msra.mxu0 0
        %846 = vmatprep.subr.bf16.mxu0 0
        %847 = vmatpush1.bf16.msra.mxu0 0
        %848 = vmatprep.subr.bf16.mxu0 0
        %849 = vmatpush1.bf16.msra.mxu0 0
        %850 = vmatprep.subr.bf16.mxu0 0
        %851 = vmatpush1.bf16.msra.mxu0 0
        %852 = vmatprep.subr.bf16.mxu0 0
        %853 = vmatpush1.bf16.msra.mxu0 0
        %854 = vmatprep.subr.bf16.mxu0 0
        %855 = vmatpush1.bf16.msra.mxu0 %v833
        %856 = vmatprep.subr.bf16.mxu0 0
        %857 = vmatpush1.bf16.msra.mxu0 %v832
        %858 = vmatprep.subr.bf16.mxu0 0
        %859 = vmatpush2.bf16.msra.mxu0 0
        %860 = vmatprep.subr.bf16.mxu0 0
        %861 = vmatpush2.bf16.msra.mxu0 0
        %862 = vmatprep.subr.bf16.mxu0 0
        %863 = vmatpush2.bf16.msra.mxu0 0
        %864 = vmatprep.subr.bf16.mxu0 0
        %865 = vmatpush2.bf16.msra.mxu0 0
        %866 = vmatprep.subr.bf16.mxu0 0
        %867 = vmatpush2.bf16.msra.mxu0 0
        %868 = vmatprep.subr.bf16.mxu0 0
        %869 = vmatpush2.bf16.msra.mxu0 0
        %870 = vmatprep.subr.bf16.mxu0 0
        %871 = vmatpush2.bf16.msra.mxu0 0
        %872 = vmatprep.subr.bf16.mxu0 0
        %873 = vmatpush2.bf16.msra.mxu0 0
        %874 = vmatprep.mubr.bf16.mxu0 0
        %875 = vmatmul.mubr.bf16.gmra.mxu0 %v837
        %v876 = vpop.f32.mrf.mxu0
        %v877 = vadd.f32 %v822, %v876
        %v878 = vpop.f32.mrf.mxu0
        %v879 = vpop.f32.mrf.mxu0
        %v880 = vadd.f32 %v822, %v879
        %v881 = vpop.f32.mrf.mxu0
        %882 = vmatprep.mubr.bf16.mxu0 0
        %883 = vmatmul.mubr.bf16.gmra.mxu0 %v840
        %v884 = vpop.f32.mrf.mxu0
        %v885 = vadd.f32 %v822, %v884
        %v886 = vpop.f32.mrf.mxu0
        %v887 = vpop.f32.mrf.mxu0
        %v888 = vpop.f32.mrf.mxu0
        %889 = vdwg.mxu0
        %v890 = vpack.c.bf16 %v880, %v877
        %v891 = vpack.c.bf16 %v885, %v885
        %894 = vrot.lane.b32.xlu0 %v890, 96
        %v895 = vpop.permute.xlu0 %894
        %896 = vrot.lane.b32.xlu0 %v891, 96
        %v897 = vpop.permute.xlu0 %896
        %vm898 = vcmask 130048
        %v900 = vsel %vm898, %v890, 0
        %v903 = vsel %vm898, %v891, 0
        %v906 = vsel %vm898, %v895, 0
        %v909 = vsel %vm898, %v897, 0
        %911 = vmatprep.subr.bf16.mxu0 0
        %912 = vmatpush1.bf16.xpose.msra.mxu0 0
        %913 = vmatprep.subr.bf16.mxu0 0
        %914 = vmatpush1.bf16.xpose.msra.mxu0 0
        %915 = vmatprep.subr.bf16.mxu0 0
        %916 = vmatpush1.bf16.xpose.msra.mxu0 0
        %917 = vmatprep.subr.bf16.mxu0 0
        %918 = vmatpush1.bf16.xpose.msra.mxu0 0
        %919 = vmatprep.subr.bf16.mxu0 0
        %920 = vmatpush1.bf16.xpose.msra.mxu0 0
        %921 = vmatprep.subr.bf16.mxu0 0
        %922 = vmatpush1.bf16.xpose.msra.mxu0 0
        %923 = vmatprep.subr.bf16.mxu0 0
        %924 = vmatpush1.bf16.xpose.msra.mxu0 %v909
        %925 = vmatprep.subr.bf16.mxu0 0
        %926 = vmatpush1.bf16.xpose.msra.mxu0 %v906
        %927 = vmatprep.subr.bf16.mxu0 0
        %928 = vmatpush2.bf16.xpose.msra.mxu0 0
        %929 = vmatprep.subr.bf16.mxu0 0
        %930 = vmatpush2.bf16.xpose.msra.mxu0 0
        %931 = vmatprep.subr.bf16.mxu0 0
        %932 = vmatpush2.bf16.xpose.msra.mxu0 0
        %933 = vmatprep.subr.bf16.mxu0 0
        %934 = vmatpush2.bf16.xpose.msra.mxu0 0
        %935 = vmatprep.subr.bf16.mxu0 0
        %936 = vmatpush2.bf16.xpose.msra.mxu0 0
        %937 = vmatprep.subr.bf16.mxu0 0
        %938 = vmatpush2.bf16.xpose.msra.mxu0 0
        %939 = vmatprep.subr.bf16.mxu0 0
        %940 = vmatpush2.bf16.xpose.msra.mxu0 0
        %941 = vmatprep.subr.bf16.mxu0 0
        %942 = vmatpush2.bf16.xpose.msra.mxu0 0
        %943 = vmatprep.mubr.bf16.mxu0 0
        %944 = vmatmul.mubr.bf16.gmra.mxu0 %v900
        %v945 = vpop.f32.mrf.mxu0
        %v946 = vadd.f32 0.0, %v945
        %v947 = vpop.f32.mrf.mxu0
        %v948 = vpop.f32.mrf.mxu0
        %v949 = vadd.f32 0.0, %v948
        %v950 = vpop.f32.mrf.mxu0
        %951 = vmatprep.mubr.bf16.mxu0 0
        %952 = vmatmul.mubr.bf16.gmra.mxu0 %v903
        %v953 = vpop.f32.mrf.mxu0
        %v954 = vadd.f32 0.0, %v953
        %v955 = vpop.f32.mrf.mxu0
        %v956 = vpop.f32.mrf.mxu0
        %v957 = vpop.f32.mrf.mxu0
        %958 = vdwg.mxu0
        %v959 = vmul.f32 %v946, 0.25
        %v960 = vmul.f32 %v949, 0.25
        %v961 = vmul.f32 %v954, 0.25
        %v963 = vlaneseq
        %v964 = vshrl.u32 %v963, 7
        %v965 = vsub.s32 0, %v964
        %v966 = vrot.slane %v712, %v965
        %v968 = vadd.f32 %v959, %v966
        %v969 = vadd.f32 %v960, %v966
        %v970 = vadd.f32 %v961, %v966
        %vm971 = vcmask 195584
        %v972 = vsel %vm971, %v968, -inf
        %973 = vmax.xlane.f32.xlu0 %v972
        %v974 = vpop.xlane.xlu0 %973
        %v975 = vsel %vm971, %v969, -inf
        %976 = vmax.xlane.f32.xlu0 %v975
        %v977 = vpop.xlane.xlu0 %976
        %v978 = vsel %vm971, %v970, -inf
        %979 = vmax.xlane.f32.xlu0 %v978
        %v980 = vpop.xlane.xlu0 %979
        %v981 = vsub.f32 %v968, %v974
        %v982 = vsub.f32 %v969, %v977
        %v983 = vsub.f32 %v970, %v980
        %v984 = vmul.f32 %v981, 1.442695
        %v985 = vpow.pop %v984
        %v986 = vmul.f32 %v982, 1.442695
        %v987 = vpow.pop %v986
        %v988 = vmul.f32 %v983, 1.442695
        %v989 = vpow.pop %v988
        %v990 = vsel %vm971, %v985, 0.0
        %991 = vadd.xlane.f32.xlu0 %v990
        %v992 = vpop.xlane.xlu0 %991
        %v993 = vsel %vm971, %v987, 0.0
        %994 = vadd.xlane.f32.xlu0 %v993
        %v995 = vpop.xlane.xlu0 %994
        %v996 = vsel %vm971, %v989, 0.0
        %997 = vadd.xlane.f32.xlu0 %v996
        %v998 = vpop.xlane.xlu0 %997
        %v999 = vrcp.pop %v992
        %v1000 = vrcp.pop %v995
        %v1001 = vrcp.pop %v998
        %v1002 = vmul.f32 %v985, %v999
        %v1003 = vmul.f32 %v987, %v1000
        %v1004 = vmul.f32 %v989, %v1001
        %v1005 = vpack.c.bf16 %v1003, %v1002
        %v1006 = vpack.c.bf16 %v1004, %v1004
        %1007 = vrot.lane.b32.xlu0 %v890, 64
        %v1008 = vpop.permute.xlu0 %1007
        %1009 = vrot.lane.b32.xlu0 %v891, 64
        %v1010 = vpop.permute.xlu0 %1009
        %v1013 = vsel %vm971, %v1005, 0
        %v1016 = vsel %vm971, %v1006, 0
        %vm1018 = vcmask 1043456
        %v1020 = vsel %vm1018, %v1010, 0
        %1022 = vmatprep.subr.bf16.mxu0 0
        %1023 = vmatpush1.bf16.msra.mxu0 0
        %1024 = vmatprep.subr.bf16.mxu0 0
        %1025 = vmatpush1.bf16.msra.mxu0 0
        %1026 = vmatprep.subr.bf16.mxu0 0
        %1027 = vmatpush1.bf16.msra.mxu0 0
        %1028 = vmatprep.subr.bf16.mxu0 0
        %1029 = vmatpush1.bf16.msra.mxu0 0
        %1030 = vmatprep.subr.bf16.mxu0 0
        %1031 = vmatpush1.bf16.msra.mxu0 0
        %1032 = vmatprep.subr.bf16.mxu0 0
        %1033 = vmatpush1.bf16.msra.mxu0 0
        %1034 = vmatprep.subr.bf16.mxu0 0
        %1035 = vmatpush1.bf16.msra.mxu0 %v1020
        %1036 = vmatprep.subr.bf16.mxu0 0
        %1037 = vmatpush1.bf16.msra.mxu0 %v1008
        %1038 = vmatprep.subr.bf16.mxu0 0
        %1039 = vmatpush2.bf16.msra.mxu0 0
        %1040 = vmatprep.subr.bf16.mxu0 0
        %1041 = vmatpush2.bf16.msra.mxu0 0
        %1042 = vmatprep.subr.bf16.mxu0 0
        %1043 = vmatpush2.bf16.msra.mxu0 0
        %1044 = vmatprep.subr.bf16.mxu0 0
        %1045 = vmatpush2.bf16.msra.mxu0 0
        %1046 = vmatprep.subr.bf16.mxu0 0
        %1047 = vmatpush2.bf16.msra.mxu0 0
        %1048 = vmatprep.subr.bf16.mxu0 0
        %1049 = vmatpush2.bf16.msra.mxu0 0
        %1050 = vmatprep.subr.bf16.mxu0 0
        %1051 = vmatpush2.bf16.msra.mxu0 0
        %1052 = vmatprep.subr.bf16.mxu0 0
        %1053 = vmatpush2.bf16.msra.mxu0 0
        %1054 = vmatprep.mubr.bf16.mxu0 0
        %1055 = vmatmul.mubr.bf16.gmra.mxu0 %v1013
        %v1056 = vpop.f32.mrf.mxu0
        %v1057 = vadd.f32 0.0, %v1056
        %v1058 = vpop.f32.mrf.mxu0
        %v1059 = vpop.f32.mrf.mxu0
        %v1060 = vadd.f32 0.0, %v1059
        %v1061 = vpop.f32.mrf.mxu0
        %1062 = vmatprep.mubr.bf16.mxu0 0
        %1063 = vmatmul.mubr.bf16.gmra.mxu0 %v1016
        %v1064 = vpop.f32.mrf.mxu0
        %v1065 = vadd.f32 0.0, %v1064
        %v1066 = vpop.f32.mrf.mxu0
        %v1067 = vpop.f32.mrf.mxu0
        %v1068 = vpop.f32.mrf.mxu0
        %1069 = vdwg.mxu0
        %1070 = vrot.lane.b32.xlu0 %v890, 112
        %v1071 = vpop.permute.xlu0 %1070
        %1072 = vrot.lane.b32.xlu0 %v891, 112
        %v1073 = vpop.permute.xlu0 %1072
        %1074 = vrot.lane.b32.xlu0 %v890, 80
        %v1075 = vpop.permute.xlu0 %1074
        %1076 = vrot.lane.b32.xlu0 %v891, 80
        %v1077 = vpop.permute.xlu0 %1076
        %v1079 = vsel %vm898, %v1071, 0
        %v1082 = vsel %vm898, %v1073, 0
        %v1085 = vsel %vm898, %v1075, 0
        %v1088 = vsel %vm898, %v1077, 0
        %1090 = vmatprep.subr.bf16.mxu0 0
        %1091 = vmatpush1.bf16.xpose.msra.mxu0 0
        %1092 = vmatprep.subr.bf16.mxu0 0
        %1093 = vmatpush1.bf16.xpose.msra.mxu0 0
        %1094 = vmatprep.subr.bf16.mxu0 0
        %1095 = vmatpush1.bf16.xpose.msra.mxu0 0
        %1096 = vmatprep.subr.bf16.mxu0 0
        %1097 = vmatpush1.bf16.xpose.msra.mxu0 0
        %1098 = vmatprep.subr.bf16.mxu0 0
        %1099 = vmatpush1.bf16.xpose.msra.mxu0 0
        %1100 = vmatprep.subr.bf16.mxu0 0
        %1101 = vmatpush1.bf16.xpose.msra.mxu0 0
        %1102 = vmatprep.subr.bf16.mxu0 0
        %1103 = vmatpush1.bf16.xpose.msra.mxu0 %v1088
        %1104 = vmatprep.subr.bf16.mxu0 0
        %1105 = vmatpush1.bf16.xpose.msra.mxu0 %v1085
        %1106 = vmatprep.subr.bf16.mxu0 0
        %1107 = vmatpush2.bf16.xpose.msra.mxu0 0
        %1108 = vmatprep.subr.bf16.mxu0 0
        %1109 = vmatpush2.bf16.xpose.msra.mxu0 0
        %1110 = vmatprep.subr.bf16.mxu0 0
        %1111 = vmatpush2.bf16.xpose.msra.mxu0 0
        %1112 = vmatprep.subr.bf16.mxu0 0
        %1113 = vmatpush2.bf16.xpose.msra.mxu0 0
        %1114 = vmatprep.subr.bf16.mxu0 0
        %1115 = vmatpush2.bf16.xpose.msra.mxu0 0
        %1116 = vmatprep.subr.bf16.mxu0 0
        %1117 = vmatpush2.bf16.xpose.msra.mxu0 0
        %1118 = vmatprep.subr.bf16.mxu0 0
        %1119 = vmatpush2.bf16.xpose.msra.mxu0 0
        %1120 = vmatprep.subr.bf16.mxu0 0
        %1121 = vmatpush2.bf16.xpose.msra.mxu0 0
        %1122 = vmatprep.mubr.bf16.mxu0 0
        %1123 = vmatmul.mubr.bf16.gmra.mxu0 %v1079
        %v1124 = vpop.f32.mrf.mxu0
        %v1125 = vadd.f32 0.0, %v1124
        %v1126 = vpop.f32.mrf.mxu0
        %v1127 = vpop.f32.mrf.mxu0
        %v1128 = vadd.f32 0.0, %v1127
        %v1129 = vpop.f32.mrf.mxu0
        %1130 = vmatprep.mubr.bf16.mxu0 0
        %1131 = vmatmul.mubr.bf16.gmra.mxu0 %v1082
        %v1132 = vpop.f32.mrf.mxu0
        %v1133 = vadd.f32 0.0, %v1132
        %v1134 = vpop.f32.mrf.mxu0
        %v1135 = vpop.f32.mrf.mxu0
        %v1136 = vpop.f32.mrf.mxu0
        %1137 = vdwg.mxu0
        %v1138 = vmul.f32 %v1125, 0.25
        %v1139 = vmul.f32 %v1128, 0.25
        %v1140 = vmul.f32 %v1133, 0.25
        %v1141 = vadd.f32 %v1138, %v966
        %v1142 = vadd.f32 %v1139, %v966
        %v1143 = vadd.f32 %v1140, %v966
        %v1144 = vsel %vm971, %v1141, -inf
        %1145 = vmax.xlane.f32.xlu0 %v1144
        %v1146 = vpop.xlane.xlu0 %1145
        %v1147 = vsel %vm971, %v1142, -inf
        %1148 = vmax.xlane.f32.xlu0 %v1147
        %v1149 = vpop.xlane.xlu0 %1148
        %v1150 = vsel %vm971, %v1143, -inf
        %1151 = vmax.xlane.f32.xlu0 %v1150
        %v1152 = vpop.xlane.xlu0 %1151
        %v1153 = vsub.f32 %v1141, %v1146
        %v1154 = vsub.f32 %v1142, %v1149
        %v1155 = vsub.f32 %v1143, %v1152
        %v1156 = vmul.f32 %v1153, 1.442695
        %v1157 = vpow.pop %v1156
        %v1158 = vmul.f32 %v1154, 1.442695
        %v1159 = vpow.pop %v1158
        %v1160 = vmul.f32 %v1155, 1.442695
        %v1161 = vpow.pop %v1160
        %v1162 = vsel %vm971, %v1157, 0.0
        %1163 = vadd.xlane.f32.xlu0 %v1162
        %v1164 = vpop.xlane.xlu0 %1163
        %v1165 = vsel %vm971, %v1159, 0.0
        %1166 = vadd.xlane.f32.xlu0 %v1165
        %v1167 = vpop.xlane.xlu0 %1166
        %v1168 = vsel %vm971, %v1161, 0.0
        %1169 = vadd.xlane.f32.xlu0 %v1168
        %v1170 = vpop.xlane.xlu0 %1169
        %v1171 = vrcp.pop %v1164
        %v1172 = vrcp.pop %v1167
        %v1173 = vrcp.pop %v1170
        %v1174 = vmul.f32 %v1157, %v1171
        %v1175 = vmul.f32 %v1159, %v1172
        %v1176 = vmul.f32 %v1161, %v1173
        %v1177 = vpack.c.bf16 %v1175, %v1174
        %v1178 = vpack.c.bf16 %v1176, %v1176
        %1179 = vrot.lane.b32.xlu0 %v890, 48
        %v1180 = vpop.permute.xlu0 %1179
        %1181 = vrot.lane.b32.xlu0 %v891, 48
        %v1182 = vpop.permute.xlu0 %1181
        %v1185 = vsel %vm971, %v1177, 0
        %v1188 = vsel %vm971, %v1178, 0
        %v1191 = vsel %vm1018, %v1182, 0
        %1193 = vmatprep.subr.bf16.mxu0 0
        %1194 = vmatpush1.bf16.msra.mxu0 0
        %1195 = vmatprep.subr.bf16.mxu0 0
        %1196 = vmatpush1.bf16.msra.mxu0 0
        %1197 = vmatprep.subr.bf16.mxu0 0
        %1198 = vmatpush1.bf16.msra.mxu0 0
        %1199 = vmatprep.subr.bf16.mxu0 0
        %1200 = vmatpush1.bf16.msra.mxu0 0
        %1201 = vmatprep.subr.bf16.mxu0 0
        %1202 = vmatpush1.bf16.msra.mxu0 0
        %1203 = vmatprep.subr.bf16.mxu0 0
        %1204 = vmatpush1.bf16.msra.mxu0 0
        %1205 = vmatprep.subr.bf16.mxu0 0
        %1206 = vmatpush1.bf16.msra.mxu0 %v1191
        %1207 = vmatprep.subr.bf16.mxu0 0
        %1208 = vmatpush1.bf16.msra.mxu0 %v1180
        %1209 = vmatprep.subr.bf16.mxu0 0
        %1210 = vmatpush2.bf16.msra.mxu0 0
        %1211 = vmatprep.subr.bf16.mxu0 0
        %1212 = vmatpush2.bf16.msra.mxu0 0
        %1213 = vmatprep.subr.bf16.mxu0 0
        %1214 = vmatpush2.bf16.msra.mxu0 0
        %1215 = vmatprep.subr.bf16.mxu0 0
        %1216 = vmatpush2.bf16.msra.mxu0 0
        %1217 = vmatprep.subr.bf16.mxu0 0
        %1218 = vmatpush2.bf16.msra.mxu0 0
        %1219 = vmatprep.subr.bf16.mxu0 0
        %1220 = vmatpush2.bf16.msra.mxu0 0
        %1221 = vmatprep.subr.bf16.mxu0 0
        %1222 = vmatpush2.bf16.msra.mxu0 0
        %1223 = vmatprep.subr.bf16.mxu0 0
        %1224 = vmatpush2.bf16.msra.mxu0 0
        %1225 = vmatprep.mubr.bf16.mxu0 0
        %1226 = vmatmul.mubr.bf16.gmra.mxu0 %v1185
        %v1227 = vpop.f32.mrf.mxu0
        %v1228 = vadd.f32 0.0, %v1227
        %v1229 = vpop.f32.mrf.mxu0
        %v1230 = vpop.f32.mrf.mxu0
        %v1231 = vadd.f32 0.0, %v1230
        %v1232 = vpop.f32.mrf.mxu0
        %1233 = vmatprep.mubr.bf16.mxu0 0
        %1234 = vmatmul.mubr.bf16.gmra.mxu0 %v1188
        %v1235 = vpop.f32.mrf.mxu0
        %v1236 = vadd.f32 0.0, %v1235
        %v1237 = vpop.f32.mrf.mxu0
        %v1238 = vpop.f32.mrf.mxu0
        %v1239 = vpop.f32.mrf.mxu0
        %1240 = vdwg.mxu0
        %1244 = vrot.lane.b32.xlu0 %v1228, 16
        %v1245 = vpop.permute.xlu0 %1244
        %1246 = vrot.lane.b32.xlu0 %v1231, 16
        %v1247 = vpop.permute.xlu0 %1246
        %1248 = vrot.lane.b32.xlu0 %v1236, 16
        %v1249 = vpop.permute.xlu0 %1248
        %v1253 = vsel %vm898, %v1057, %v1245
        %v1254 = vsel %vm898, %v1060, %v1247
        %v1255 = vsel %vm898, %v1065, %v1249
        %v1256 = vld [vmem:[%s9] sm:$0xf]
        %v1257 = vld [vmem:[%s9 + $0x4] sm:$0xf]
        %v1258 = vld [vmem:[%s9 + $0x8] sm:$0xf]
        %v1259 = vld [vmem:[%s9 + $0xc] sm:$0xf]
        %v1260 = vpack.c.bf16 %v1254, %v1253
        %v1261 = vpack.c.bf16 %v1255, %v1255
        %v1266 = vunpack.c.l.b16 %v1256
        %v1267 = vunpack.c.l.b16 %v1257
        %v1268 = vunpack.c.l.b16 %v1258
        %v1269 = vunpack.c.l.b16 %v1259
        %v1270 = vpack.c.b16 %v1267, %v1266
        %v1271 = vpack.c.b16 %v1269, %v1268
        %v1275 = vsel %vm715, %v1260, 0
        %v1278 = vsel %vm715, %v1261, 0
        %1280 = vmatprep.subr.bf16.mxu0 0
        %1281 = vmatpush1.bf16.msra.mxu0 0
        %1282 = vmatprep.subr.bf16.mxu0 0
        %1283 = vmatpush1.bf16.msra.mxu0 0
        %1284 = vmatprep.subr.bf16.mxu0 0
        %1285 = vmatpush1.bf16.msra.mxu0 0
        %1286 = vmatprep.subr.bf16.mxu0 0
        %1287 = vmatpush1.bf16.msra.mxu0 0
        %1288 = vmatprep.subr.bf16.mxu0 0
        %1289 = vmatpush1.bf16.msra.mxu0 0
        %1290 = vmatprep.subr.bf16.mxu0 0
        %1291 = vmatpush1.bf16.msra.mxu0 0
        %1292 = vmatprep.subr.bf16.mxu0 0
        %1293 = vmatpush1.bf16.msra.mxu0 %v1271
        %1294 = vmatprep.subr.bf16.mxu0 0
        %1295 = vmatpush1.bf16.msra.mxu0 %v1270
        %1296 = vmatprep.subr.bf16.mxu0 0
        %1297 = vmatpush2.bf16.msra.mxu0 0
        %1298 = vmatprep.subr.bf16.mxu0 0
        %1299 = vmatpush2.bf16.msra.mxu0 0
        %1300 = vmatprep.subr.bf16.mxu0 0
        %1301 = vmatpush2.bf16.msra.mxu0 0
        %1302 = vmatprep.subr.bf16.mxu0 0
        %1303 = vmatpush2.bf16.msra.mxu0 0
        %1304 = vmatprep.subr.bf16.mxu0 0
        %1305 = vmatpush2.bf16.msra.mxu0 0
        %1306 = vmatprep.subr.bf16.mxu0 0
        %1307 = vmatpush2.bf16.msra.mxu0 0
        %1308 = vmatprep.subr.bf16.mxu0 0
        %1309 = vmatpush2.bf16.msra.mxu0 0
        %1310 = vmatprep.subr.bf16.mxu0 0
        %1311 = vmatpush2.bf16.msra.mxu0 0
        %1312 = vmatprep.mubr.bf16.mxu0 0
        %1313 = vmatmul.mubr.bf16.gmra.mxu0 %v1275
        %v1314 = vpop.f32.mrf.mxu0
        %v1315 = vadd.f32 0.0, %v1314
        %v1316 = vpop.f32.mrf.mxu0
        %v1317 = vpop.f32.mrf.mxu0
        %v1318 = vadd.f32 0.0, %v1317
        %v1319 = vpop.f32.mrf.mxu0
        %1320 = vmatprep.mubr.bf16.mxu0 0
        %1321 = vmatmul.mubr.bf16.gmra.mxu0 %v1278
        %v1322 = vpop.f32.mrf.mxu0
        %v1323 = vadd.f32 0.0, %v1322
        %v1324 = vpop.f32.mrf.mxu0
        %v1325 = vpop.f32.mrf.mxu0
        %v1326 = vpop.f32.mrf.mxu0
        %1327 = vdwg.mxu0
        %v1328 = vadd.f32 %v751, %v1315
        %v1329 = vadd.f32 %v710, %v1318
        %v1330 = vadd.f32 %v711, %v1323
        %v1331 = vld [vmem:[%s10] sm:$0x1]
        %v1333 = vlaneseq
        %v1334 = vshrl.u32 %v1333, 7
        %v1335 = vsub.s32 0, %v1334
        %v1336 = vrot.slane %v1331, %v1335
        %v1338 = vadd.f32 %v1328, %v1336
        %v1339 = vadd.f32 %v1329, %v1336
        %v1340 = vadd.f32 %v1330, %v1336
        %v1341 = vld [vmem:[%s11] sm:$0x1]
        %v1342 = vld [vmem:[%s12] sm:$0x1]
        %v1343 = vsel %vm715, %v1338, 0.0
        %1344 = vadd.xlane.f32.xlu0 %v1343
        %v1345 = vpop.xlane.xlu0 %1344
        %v1346 = vsel %vm715, %v1339, 0.0
        %1347 = vadd.xlane.f32.xlu0 %v1346
        %v1348 = vpop.xlane.xlu0 %1347
        %v1349 = vsel %vm715, %v1340, 0.0
        %1350 = vadd.xlane.f32.xlu0 %v1349
        %v1351 = vpop.xlane.xlu0 %1350
        %v1352 = vmul.f32 %v1345, %v719
        %v1353 = vmul.f32 %v1348, %v719
        %v1354 = vmul.f32 %v1351, %v719
        %v1355 = vsub.f32 %v1338, %v1352
        %v1356 = vsub.f32 %v1339, %v1353
        %v1357 = vsub.f32 %v1340, %v1354
        %v1358 = vmul.f32 %v1355, %v1355
        %v1359 = vmul.f32 %v1356, %v1356
        %v1360 = vmul.f32 %v1357, %v1357
        %v1361 = vsel %vm715, %v1358, 0.0
        %1362 = vadd.xlane.f32.xlu0 %v1361
        %v1363 = vpop.xlane.xlu0 %1362
        %v1364 = vsel %vm715, %v1359, 0.0
        %1365 = vadd.xlane.f32.xlu0 %v1364
        %v1366 = vpop.xlane.xlu0 %1365
        %v1367 = vsel %vm715, %v1360, 0.0
        %1368 = vadd.xlane.f32.xlu0 %v1367
        %v1369 = vpop.xlane.xlu0 %1368
        %v1370 = vmul.f32 %v1363, %v719
        %v1371 = vmul.f32 %v1366, %v719
        %v1372 = vmul.f32 %v1369, %v719
        %v1373 = vadd.f32 %v1370, 1e-12
        %v1374 = vadd.f32 %v1371, 1e-12
        %v1375 = vadd.f32 %v1372, 1e-12
        %v1376 = vrsqrt.pop %v1373
        %v1377 = vrsqrt.pop %v1374
        %v1378 = vrsqrt.pop %v1375
        %v1379 = vmul.f32 %v1355, %v1376
        %v1380 = vmul.f32 %v1356, %v1377
        %v1381 = vmul.f32 %v1357, %v1378
        %v1383 = vlaneseq
        %v1384 = vshrl.u32 %v1383, 7
        %v1385 = vsub.s32 0, %v1384
        %v1386 = vrot.slane %v1341, %v1385
        %v1388 = vmul.f32 %v1379, %v1386
        %v1389 = vmul.f32 %v1380, %v1386
        %v1390 = vmul.f32 %v1381, %v1386
        %v1392 = vlaneseq
        %v1393 = vshrl.u32 %v1392, 7
        %v1394 = vsub.s32 0, %v1393
        %v1395 = vrot.slane %v1342, %v1394
        %v1397 = vadd.f32 %v1388, %v1395
        %v1398 = vadd.f32 %v1389, %v1395
        %v1399 = vadd.f32 %v1390, %v1395
        %v1400 = vld [vmem:[%s13] sm:$0xf]
        %v1401 = vld [vmem:[%s13 + $0x4] sm:$0xf]
        %v1402 = vld [vmem:[%s13 + $0x8] sm:$0xf]
        %v1403 = vld [vmem:[%s13 + $0xc] sm:$0xf]
        %v1404 = vpack.c.bf16 %v1398, %v1397
        %v1405 = vpack.c.bf16 %v1399, %v1399
        %v1406 = vld [vmem:[%s14] sm:$0x1]
        %v1408 = vlaneseq
        %v1409 = vshrl.u32 %v1408, 7
        %v1410 = vsub.s32 0, %v1409
        %v1411 = vrot.slane %v1406, %v1410
        %v1417 = vunpack.c.l.b16 %v1400
        %v1418 = vunpack.c.l.b16 %v1401
        %v1419 = vunpack.c.l.b16 %v1402
        %v1420 = vunpack.c.l.b16 %v1403
        %v1421 = vpack.c.b16 %v1418, %v1417
        %v1422 = vpack.c.b16 %v1420, %v1419
        %v1426 = vsel %vm715, %v1404, 0
        %v1429 = vsel %vm715, %v1405, 0
        %1431 = vmatprep.subr.bf16.mxu0 0
        %1432 = vmatpush1.bf16.msra.mxu0 0
        %1433 = vmatprep.subr.bf16.mxu0 0
        %1434 = vmatpush1.bf16.msra.mxu0 0
        %1435 = vmatprep.subr.bf16.mxu0 0
        %1436 = vmatpush1.bf16.msra.mxu0 0
        %1437 = vmatprep.subr.bf16.mxu0 0
        %1438 = vmatpush1.bf16.msra.mxu0 0
        %1439 = vmatprep.subr.bf16.mxu0 0
        %1440 = vmatpush1.bf16.msra.mxu0 0
        %1441 = vmatprep.subr.bf16.mxu0 0
        %1442 = vmatpush1.bf16.msra.mxu0 0
        %1443 = vmatprep.subr.bf16.mxu0 0
        %1444 = vmatpush1.bf16.msra.mxu0 %v1422
        %1445 = vmatprep.subr.bf16.mxu0 0
        %1446 = vmatpush1.bf16.msra.mxu0 %v1421
        %1447 = vmatprep.subr.bf16.mxu0 0
        %1448 = vmatpush2.bf16.msra.mxu0 0
        %1449 = vmatprep.subr.bf16.mxu0 0
        %1450 = vmatpush2.bf16.msra.mxu0 0
        %1451 = vmatprep.subr.bf16.mxu0 0
        %1452 = vmatpush2.bf16.msra.mxu0 0
        %1453 = vmatprep.subr.bf16.mxu0 0
        %1454 = vmatpush2.bf16.msra.mxu0 0
        %1455 = vmatprep.subr.bf16.mxu0 0
        %1456 = vmatpush2.bf16.msra.mxu0 0
        %1457 = vmatprep.subr.bf16.mxu0 0
        %1458 = vmatpush2.bf16.msra.mxu0 0
        %1459 = vmatprep.subr.bf16.mxu0 0
        %1460 = vmatpush2.bf16.msra.mxu0 0
        %1461 = vmatprep.subr.bf16.mxu0 0
        %1462 = vmatpush2.bf16.msra.mxu0 0
        %1463 = vmatprep.mubr.bf16.mxu0 0
        %1464 = vmatmul.mubr.bf16.gmra.mxu0 %v1426
        %v1465 = vpop.f32.mrf.mxu0
        %v1466 = vadd.f32 %v1411, %v1465
        %v1467 = vpop.f32.mrf.mxu0
        %v1468 = vpop.f32.mrf.mxu0
        %v1469 = vadd.f32 %v1411, %v1468
        %v1470 = vpop.f32.mrf.mxu0
        %1471 = vmatprep.mubr.bf16.mxu0 0
        %1472 = vmatmul.mubr.bf16.gmra.mxu0 %v1429
        %v1473 = vpop.f32.mrf.mxu0
        %v1474 = vadd.f32 %v1411, %v1473
        %v1475 = vpop.f32.mrf.mxu0
        %v1476 = vpop.f32.mrf.mxu0
        %v1477 = vpop.f32.mrf.mxu0
        %1478 = vdwg.mxu0
        %v1479 = vmul.f32 %v1466, 0.5
        %v1480 = vmul.f32 %v1469, 0.5
        %v1481 = vmul.f32 %v1474, 0.5
        %v1482 = vmul.f32 %v1466, 0.044715
        %v1483 = vmul.f32 %v1469, 0.044715
        %v1484 = vmul.f32 %v1474, 0.044715
        %v1485 = vmul.f32 %v1482, %v1466
        %v1486 = vmul.f32 %v1483, %v1469
        %v1487 = vmul.f32 %v1484, %v1474
        %v1488 = vmul.f32 %v1485, %v1466
        %v1489 = vmul.f32 %v1486, %v1469
        %v1490 = vmul.f32 %v1487, %v1474
        %v1491 = vadd.f32 %v1466, %v1488
        %v1492 = vadd.f32 %v1469, %v1489
        %v1493 = vadd.f32 %v1474, %v1490
        %v1494 = vmul.f32 %v1491, 0.7978846
        %v1495 = vmul.f32 %v1492, 0.7978846
        %v1496 = vmul.f32 %v1493, 0.7978846
        %v1497 = vtanh.pop %v1494
        %v1498 = vtanh.pop %v1495
        %v1499 = vtanh.pop %v1496
        %v1500 = vadd.f32 %v1497, 1.0
        %v1501 = vadd.f32 %v1498, 1.0
        %v1502 = vadd.f32 %v1499, 1.0
        %v1503 = vmul.f32 %v1479, %v1500
        %v1504 = vmul.f32 %v1480, %v1501
        %v1505 = vmul.f32 %v1481, %v1502
        %v1506 = vld [vmem:[%s15] sm:$0xf]
        %v1507 = vld [vmem:[%s15 + $0x4] sm:$0xf]
        %v1508 = vld [vmem:[%s15 + $0x8] sm:$0xf]
        %v1509 = vld [vmem:[%s15 + $0xc] sm:$0xf]
        %v1510 = vld [vmem:[%s15 + $0x10] sm:$0xf]
        %v1511 = vld [vmem:[%s15 + $0x14] sm:$0xf]
        %v1512 = vld [vmem:[%s15 + $0x18] sm:$0xf]
        %v1513 = vld [vmem:[%s15 + $0x1c] sm:$0xf]
        %v1514 = vpack.c.bf16 %v1504, %v1503
        %v1515 = vpack.c.bf16 %v1505, %v1505
        %v1524 = vunpack.c.l.b16 %v1506
        %v1525 = vunpack.c.l.b16 %v1507
        %v1526 = vunpack.c.l.b16 %v1508
        %v1527 = vunpack.c.l.b16 %v1509
        %v1528 = vunpack.c.l.b16 %v1510
        %v1529 = vunpack.c.l.b16 %v1511
        %v1530 = vunpack.c.l.b16 %v1512
        %v1531 = vunpack.c.l.b16 %v1513
        %v1532 = vpack.c.b16 %v1525, %v1524
        %v1533 = vpack.c.b16 %v1527, %v1526
        %v1534 = vpack.c.b16 %v1529, %v1528
        %v1535 = vpack.c.b16 %v1531, %v1530
        %vm1540 = vcmask 523264
        %v1542 = vsel %vm1540, %v1514, 0
        %v1545 = vsel %vm1540, %v1515, 0
        %1547 = vmatprep.subr.bf16.mxu0 0
        %1548 = vmatpush1.bf16.msra.mxu0 0
        %1549 = vmatprep.subr.bf16.mxu0 0
        %1550 = vmatpush1.bf16.msra.mxu0 0
        %1551 = vmatprep.subr.bf16.mxu0 0
        %1552 = vmatpush1.bf16.msra.mxu0 0
        %1553 = vmatprep.subr.bf16.mxu0 0
        %1554 = vmatpush1.bf16.msra.mxu0 0
        %1555 = vmatprep.subr.bf16.mxu0 0
        %1556 = vmatpush1.bf16.msra.mxu0 %v1535
        %1557 = vmatprep.subr.bf16.mxu0 0
        %1558 = vmatpush1.bf16.msra.mxu0 %v1534
        %1559 = vmatprep.subr.bf16.mxu0 0
        %1560 = vmatpush1.bf16.msra.mxu0 %v1533
        %1561 = vmatprep.subr.bf16.mxu0 0
        %1562 = vmatpush1.bf16.msra.mxu0 %v1532
        %1563 = vmatprep.subr.bf16.mxu0 0
        %1564 = vmatpush2.bf16.msra.mxu0 0
        %1565 = vmatprep.subr.bf16.mxu0 0
        %1566 = vmatpush2.bf16.msra.mxu0 0
        %1567 = vmatprep.subr.bf16.mxu0 0
        %1568 = vmatpush2.bf16.msra.mxu0 0
        %1569 = vmatprep.subr.bf16.mxu0 0
        %1570 = vmatpush2.bf16.msra.mxu0 0
        %1571 = vmatprep.subr.bf16.mxu0 0
        %1572 = vmatpush2.bf16.msra.mxu0 0
        %1573 = vmatprep.subr.bf16.mxu0 0
        %1574 = vmatpush2.bf16.msra.mxu0 0
        %1575 = vmatprep.subr.bf16.mxu0 0
        %1576 = vmatpush2.bf16.msra.mxu0 0
        %1577 = vmatprep.subr.bf16.mxu0 0
        %1578 = vmatpush2.bf16.msra.mxu0 0
        %1579 = vmatprep.mubr.bf16.mxu0 0
        %1580 = vmatmul.mubr.bf16.gmra.mxu0 %v1542
        %v1581 = vpop.f32.mrf.mxu0
        %v1582 = vadd.f32 0.0, %v1581
        %v1583 = vpop.f32.mrf.mxu0
        %v1584 = vpop.f32.mrf.mxu0
        %v1585 = vadd.f32 0.0, %v1584
        %v1586 = vpop.f32.mrf.mxu0
        %1587 = vmatprep.mubr.bf16.mxu0 0
        %1588 = vmatmul.mubr.bf16.gmra.mxu0 %v1545
        %v1589 = vpop.f32.mrf.mxu0
        %v1590 = vadd.f32 0.0, %v1589
        %v1591 = vpop.f32.mrf.mxu0
        %v1592 = vpop.f32.mrf.mxu0
        %v1593 = vpop.f32.mrf.mxu0
        %1594 = vdwg.mxu0
        %v1595 = vadd.f32 %v1338, %v1582
        %v1596 = vadd.f32 %v1339, %v1585
        %v1597 = vadd.f32 %v1340, %v1590
        %v1598 = vld [vmem:[%s16] sm:$0x1]
        %v1600 = vlaneseq
        %v1601 = vshrl.u32 %v1600, 7
        %v1602 = vsub.s32 0, %v1601
        %v1603 = vrot.slane %v1598, %v1602
        %v1605 = vadd.f32 %v1595, %v1603
        %v1606 = vadd.f32 %v1596, %v1603
        %v1607 = vadd.f32 %v1597, %v1603
        %s1608 = scalar_lea.vmem %s5, 1
        %v1609 = vld [vmem:[%s1608] sm:$0x1]
        %s1610 = scalar_lea.vmem %s6, 1
        %v1611 = vld [vmem:[%s1610] sm:$0x1]
        %v1612 = vsel %vm715, %v1605, 0.0
        %1613 = vadd.xlane.f32.xlu0 %v1612
        %v1614 = vpop.xlane.xlu0 %1613
        %v1615 = vsel %vm715, %v1606, 0.0
        %1616 = vadd.xlane.f32.xlu0 %v1615
        %v1617 = vpop.xlane.xlu0 %1616
        %v1618 = vsel %vm715, %v1607, 0.0
        %1619 = vadd.xlane.f32.xlu0 %v1618
        %v1620 = vpop.xlane.xlu0 %1619
        %v1621 = vmul.f32 %v1614, %v719
        %v1622 = vmul.f32 %v1617, %v719
        %v1623 = vmul.f32 %v1620, %v719
        %v1624 = vsub.f32 %v1605, %v1621
        %v1625 = vsub.f32 %v1606, %v1622
        %v1626 = vsub.f32 %v1607, %v1623
        %v1627 = vmul.f32 %v1624, %v1624
        %v1628 = vmul.f32 %v1625, %v1625
        %v1629 = vmul.f32 %v1626, %v1626
        %v1630 = vsel %vm715, %v1627, 0.0
        %1631 = vadd.xlane.f32.xlu0 %v1630
        %v1632 = vpop.xlane.xlu0 %1631
        %v1633 = vsel %vm715, %v1628, 0.0
        %1634 = vadd.xlane.f32.xlu0 %v1633
        %v1635 = vpop.xlane.xlu0 %1634
        %v1636 = vsel %vm715, %v1629, 0.0
        %1637 = vadd.xlane.f32.xlu0 %v1636
        %v1638 = vpop.xlane.xlu0 %1637
        %v1639 = vmul.f32 %v1632, %v719
        %v1640 = vmul.f32 %v1635, %v719
        %v1641 = vmul.f32 %v1638, %v719
        %v1642 = vadd.f32 %v1639, 1e-12
        %v1643 = vadd.f32 %v1640, 1e-12
        %v1644 = vadd.f32 %v1641, 1e-12
        %v1645 = vrsqrt.pop %v1642
        %v1646 = vrsqrt.pop %v1643
        %v1647 = vrsqrt.pop %v1644
        %v1648 = vmul.f32 %v1624, %v1645
        %v1649 = vmul.f32 %v1625, %v1646
        %v1650 = vmul.f32 %v1626, %v1647
        %v1652 = vlaneseq
        %v1653 = vshrl.u32 %v1652, 7
        %v1654 = vsub.s32 0, %v1653
        %v1655 = vrot.slane %v1609, %v1654
        %v1657 = vmul.f32 %v1648, %v1655
        %v1658 = vmul.f32 %v1649, %v1655
        %v1659 = vmul.f32 %v1650, %v1655
        %v1661 = vlaneseq
        %v1662 = vshrl.u32 %v1661, 7
        %v1663 = vsub.s32 0, %v1662
        %v1664 = vrot.slane %v1611, %v1663
        %v1666 = vadd.f32 %v1657, %v1664
        %v1667 = vadd.f32 %v1658, %v1664
        %v1668 = vadd.f32 %v1659, %v1664
        %s1669 = scalar_lea.vmem %s7, 16
        %v1670 = vld [vmem:[%s1669] sm:$0xf]
        %v1671 = vld [vmem:[%s1669 + $0x4] sm:$0xf]
        %v1672 = vld [vmem:[%s1669 + $0x8] sm:$0xf]
        %v1673 = vld [vmem:[%s1669 + $0xc] sm:$0xf]
        %v1674 = vpack.c.bf16 %v1667, %v1666
        %v1675 = vpack.c.bf16 %v1668, %v1668
        %s1676 = scalar_lea.vmem %s8, 1
        %v1677 = vld [vmem:[%s1676] sm:$0x1]
        %v1679 = vlaneseq
        %v1680 = vshrl.u32 %v1679, 7
        %v1681 = vsub.s32 0, %v1680
        %v1682 = vrot.slane %v1677, %v1681
        %v1688 = vunpack.c.l.b16 %v1670
        %v1689 = vunpack.c.l.b16 %v1671
        %v1690 = vunpack.c.l.b16 %v1672
        %v1691 = vunpack.c.l.b16 %v1673
        %v1692 = vpack.c.b16 %v1689, %v1688
        %v1693 = vpack.c.b16 %v1691, %v1690
        %v1697 = vsel %vm715, %v1674, 0
        %v1700 = vsel %vm715, %v1675, 0
        %1702 = vmatprep.subr.bf16.mxu0 0
        %1703 = vmatpush1.bf16.msra.mxu0 0
        %1704 = vmatprep.subr.bf16.mxu0 0
        %1705 = vmatpush1.bf16.msra.mxu0 0
        %1706 = vmatprep.subr.bf16.mxu0 0
        %1707 = vmatpush1.bf16.msra.mxu0 0
        %1708 = vmatprep.subr.bf16.mxu0 0
        %1709 = vmatpush1.bf16.msra.mxu0 0
        %1710 = vmatprep.subr.bf16.mxu0 0
        %1711 = vmatpush1.bf16.msra.mxu0 0
        %1712 = vmatprep.subr.bf16.mxu0 0
        %1713 = vmatpush1.bf16.msra.mxu0 0
        %1714 = vmatprep.subr.bf16.mxu0 0
        %1715 = vmatpush1.bf16.msra.mxu0 %v1693
        %1716 = vmatprep.subr.bf16.mxu0 0
        %1717 = vmatpush1.bf16.msra.mxu0 %v1692
        %1718 = vmatprep.subr.bf16.mxu0 0
        %1719 = vmatpush2.bf16.msra.mxu0 0
        %1720 = vmatprep.subr.bf16.mxu0 0
        %1721 = vmatpush2.bf16.msra.mxu0 0
        %1722 = vmatprep.subr.bf16.mxu0 0
        %1723 = vmatpush2.bf16.msra.mxu0 0
        %1724 = vmatprep.subr.bf16.mxu0 0
        %1725 = vmatpush2.bf16.msra.mxu0 0
        %1726 = vmatprep.subr.bf16.mxu0 0
        %1727 = vmatpush2.bf16.msra.mxu0 0
        %1728 = vmatprep.subr.bf16.mxu0 0
        %1729 = vmatpush2.bf16.msra.mxu0 0
        %1730 = vmatprep.subr.bf16.mxu0 0
        %1731 = vmatpush2.bf16.msra.mxu0 0
        %1732 = vmatprep.subr.bf16.mxu0 0
        %1733 = vmatpush2.bf16.msra.mxu0 0
        %1734 = vmatprep.mubr.bf16.mxu0 0
        %1735 = vmatmul.mubr.bf16.gmra.mxu0 %v1697
        %v1736 = vpop.f32.mrf.mxu0
        %v1737 = vadd.f32 %v1682, %v1736
        %v1738 = vpop.f32.mrf.mxu0
        %v1739 = vpop.f32.mrf.mxu0
        %v1740 = vadd.f32 %v1682, %v1739
        %v1741 = vpop.f32.mrf.mxu0
        %1742 = vmatprep.mubr.bf16.mxu0 0
        %1743 = vmatmul.mubr.bf16.gmra.mxu0 %v1700
        %v1744 = vpop.f32.mrf.mxu0
        %v1745 = vadd.f32 %v1682, %v1744
        %v1746 = vpop.f32.mrf.mxu0
        %v1747 = vpop.f32.mrf.mxu0
        %v1748 = vpop.f32.mrf.mxu0
        %1749 = vdwg.mxu0
        %v1750 = vpack.c.bf16 %v1740, %v1737
        %v1751 = vpack.c.bf16 %v1745, %v1745
        %1754 = vrot.lane.b32.xlu0 %v1750, 96
        %v1755 = vpop.permute.xlu0 %1754
        %1756 = vrot.lane.b32.xlu0 %v1751, 96
        %v1757 = vpop.permute.xlu0 %1756
        %v1759 = vsel %vm898, %v1750, 0
        %v1762 = vsel %vm898, %v1751, 0
        %v1765 = vsel %vm898, %v1755, 0
        %v1768 = vsel %vm898, %v1757, 0
        %1770 = vmatprep.subr.bf16.mxu0 0
        %1771 = vmatpush1.bf16.xpose.msra.mxu0 0
        %1772 = vmatprep.subr.bf16.mxu0 0
        %1773 = vmatpush1.bf16.xpose.msra.mxu0 0
        %1774 = vmatprep.subr.bf16.mxu0 0
        %1775 = vmatpush1.bf16.xpose.msra.mxu0 0
        %1776 = vmatprep.subr.bf16.mxu0 0
        %1777 = vmatpush1.bf16.xpose.msra.mxu0 0
        %1778 = vmatprep.subr.bf16.mxu0 0
        %1779 = vmatpush1.bf16.xpose.msra.mxu0 0
        %1780 = vmatprep.subr.bf16.mxu0 0
        %1781 = vmatpush1.bf16.xpose.msra.mxu0 0
        %1782 = vmatprep.subr.bf16.mxu0 0
        %1783 = vmatpush1.bf16.xpose.msra.mxu0 %v1768
        %1784 = vmatprep.subr.bf16.mxu0 0
        %1785 = vmatpush1.bf16.xpose.msra.mxu0 %v1765
        %1786 = vmatprep.subr.bf16.mxu0 0
        %1787 = vmatpush2.bf16.xpose.msra.mxu0 0
        %1788 = vmatprep.subr.bf16.mxu0 0
        %1789 = vmatpush2.bf16.xpose.msra.mxu0 0
        %1790 = vmatprep.subr.bf16.mxu0 0
        %1791 = vmatpush2.bf16.xpose.msra.mxu0 0
        %1792 = vmatprep.subr.bf16.mxu0 0
        %1793 = vmatpush2.bf16.xpose.msra.mxu0 0
        %1794 = vmatprep.subr.bf16.mxu0 0
        %1795 = vmatpush2.bf16.xpose.msra.mxu0 0
        %1796 = vmatprep.subr.bf16.mxu0 0
        %1797 = vmatpush2.bf16.xpose.msra.mxu0 0
        %1798 = vmatprep.subr.bf16.mxu0 0
        %1799 = vmatpush2.bf16.xpose.msra.mxu0 0
        %1800 = vmatprep.subr.bf16.mxu0 0
        %1801 = vmatpush2.bf16.xpose.msra.mxu0 0
        %1802 = vmatprep.mubr.bf16.mxu0 0
        %1803 = vmatmul.mubr.bf16.gmra.mxu0 %v1759
        %v1804 = vpop.f32.mrf.mxu0
        %v1805 = vadd.f32 0.0, %v1804
        %v1806 = vpop.f32.mrf.mxu0
        %v1807 = vpop.f32.mrf.mxu0
        %v1808 = vadd.f32 0.0, %v1807
        %v1809 = vpop.f32.mrf.mxu0
        %1810 = vmatprep.mubr.bf16.mxu0 0
        %1811 = vmatmul.mubr.bf16.gmra.mxu0 %v1762
        %v1812 = vpop.f32.mrf.mxu0
        %v1813 = vadd.f32 0.0, %v1812
        %v1814 = vpop.f32.mrf.mxu0
        %v1815 = vpop.f32.mrf.mxu0
        %v1816 = vpop.f32.mrf.mxu0
        %1817 = vdwg.mxu0
        %v1818 = vmul.f32 %v1805, 0.25
        %v1819 = vmul.f32 %v1808, 0.25
        %v1820 = vmul.f32 %v1813, 0.25
        %v1821 = vadd.f32 %v1818, %v966
        %v1822 = vadd.f32 %v1819, %v966
        %v1823 = vadd.f32 %v1820, %v966
        %v1824 = vsel %vm971, %v1821, -inf
        %1825 = vmax.xlane.f32.xlu0 %v1824
        %v1826 = vpop.xlane.xlu0 %1825
        %v1827 = vsel %vm971, %v1822, -inf
        %1828 = vmax.xlane.f32.xlu0 %v1827
        %v1829 = vpop.xlane.xlu0 %1828
        %v1830 = vsel %vm971, %v1823, -inf
        %1831 = vmax.xlane.f32.xlu0 %v1830
        %v1832 = vpop.xlane.xlu0 %1831
        %v1833 = vsub.f32 %v1821, %v1826
        %v1834 = vsub.f32 %v1822, %v1829
        %v1835 = vsub.f32 %v1823, %v1832
        %v1836 = vmul.f32 %v1833, 1.442695
        %v1837 = vpow.pop %v1836
        %v1838 = vmul.f32 %v1834, 1.442695
        %v1839 = vpow.pop %v1838
        %v1840 = vmul.f32 %v1835, 1.442695
        %v1841 = vpow.pop %v1840
        %v1842 = vsel %vm971, %v1837, 0.0
        %1843 = vadd.xlane.f32.xlu0 %v1842
        %v1844 = vpop.xlane.xlu0 %1843
        %v1845 = vsel %vm971, %v1839, 0.0
        %1846 = vadd.xlane.f32.xlu0 %v1845
        %v1847 = vpop.xlane.xlu0 %1846
        %v1848 = vsel %vm971, %v1841, 0.0
        %1849 = vadd.xlane.f32.xlu0 %v1848
        %v1850 = vpop.xlane.xlu0 %1849
        %v1851 = vrcp.pop %v1844
        %v1852 = vrcp.pop %v1847
        %v1853 = vrcp.pop %v1850
        %v1854 = vmul.f32 %v1837, %v1851
        %v1855 = vmul.f32 %v1839, %v1852
        %v1856 = vmul.f32 %v1841, %v1853
        %v1857 = vpack.c.bf16 %v1855, %v1854
        %v1858 = vpack.c.bf16 %v1856, %v1856
        %1859 = vrot.lane.b32.xlu0 %v1750, 64
        %v1860 = vpop.permute.xlu0 %1859
        %1861 = vrot.lane.b32.xlu0 %v1751, 64
        %v1862 = vpop.permute.xlu0 %1861
        %v1865 = vsel %vm971, %v1857, 0
        %v1868 = vsel %vm971, %v1858, 0
        %v1871 = vsel %vm1018, %v1862, 0
        %1873 = vmatprep.subr.bf16.mxu0 0
        %1874 = vmatpush1.bf16.msra.mxu0 0
        %1875 = vmatprep.subr.bf16.mxu0 0
        %1876 = vmatpush1.bf16.msra.mxu0 0
        %1877 = vmatprep.subr.bf16.mxu0 0
        %1878 = vmatpush1.bf16.msra.mxu0 0
        %1879 = vmatprep.subr.bf16.mxu0 0
        %1880 = vmatpush1.bf16.msra.mxu0 0
        %1881 = vmatprep.subr.bf16.mxu0 0
        %1882 = vmatpush1.bf16.msra.mxu0 0
        %1883 = vmatprep.subr.bf16.mxu0 0
        %1884 = vmatpush1.bf16.msra.mxu0 0
        %1885 = vmatprep.subr.bf16.mxu0 0
        %1886 = vmatpush1.bf16.msra.mxu0 %v1871
        %1887 = vmatprep.subr.bf16.mxu0 0
        %1888 = vmatpush1.bf16.msra.mxu0 %v1860
        %1889 = vmatprep.subr.bf16.mxu0 0
        %1890 = vmatpush2.bf16.msra.mxu0 0
        %1891 = vmatprep.subr.bf16.mxu0 0
        %1892 = vmatpush2.bf16.msra.mxu0 0
        %1893 = vmatprep.subr.bf16.mxu0 0
        %1894 = vmatpush2.bf16.msra.mxu0 0
        %1895 = vmatprep.subr.bf16.mxu0 0
        %1896 = vmatpush2.bf16.msra.mxu0 0
        %1897 = vmatprep.subr.bf16.mxu0 0
        %1898 = vmatpush2.bf16.msra.mxu0 0
        %1899 = vmatprep.subr.bf16.mxu0 0
        %1900 = vmatpush2.bf16.msra.mxu0 0
        %1901 = vmatprep.subr.bf16.mxu0 0
        %1902 = vmatpush2.bf16.msra.mxu0 0
        %1903 = vmatprep.subr.bf16.mxu0 0
        %1904 = vmatpush2.bf16.msra.mxu0 0
        %1905 = vmatprep.mubr.bf16.mxu0 0
        %1906 = vmatmul.mubr.bf16.gmra.mxu0 %v1865
        %v1907 = vpop.f32.mrf.mxu0
        %v1908 = vadd.f32 0.0, %v1907
        %v1909 = vpop.f32.mrf.mxu0
        %v1910 = vpop.f32.mrf.mxu0
        %v1911 = vadd.f32 0.0, %v1910
        %v1912 = vpop.f32.mrf.mxu0
        %1913 = vmatprep.mubr.bf16.mxu0 0
        %1914 = vmatmul.mubr.bf16.gmra.mxu0 %v1868
        %v1915 = vpop.f32.mrf.mxu0
        %v1916 = vadd.f32 0.0, %v1915
        %v1917 = vpop.f32.mrf.mxu0
        %v1918 = vpop.f32.mrf.mxu0
        %v1919 = vpop.f32.mrf.mxu0
        %1920 = vdwg.mxu0
        %1921 = vrot.lane.b32.xlu0 %v1750, 112
        %v1922 = vpop.permute.xlu0 %1921
        %1923 = vrot.lane.b32.xlu0 %v1751, 112
        %v1924 = vpop.permute.xlu0 %1923
        %1925 = vrot.lane.b32.xlu0 %v1750, 80
        %v1926 = vpop.permute.xlu0 %1925
        %1927 = vrot.lane.b32.xlu0 %v1751, 80
        %v1928 = vpop.permute.xlu0 %1927
        %v1930 = vsel %vm898, %v1922, 0
        %v1933 = vsel %vm898, %v1924, 0
        %v1936 = vsel %vm898, %v1926, 0
        %v1939 = vsel %vm898, %v1928, 0
        %1941 = vmatprep.subr.bf16.mxu0 0
        %1942 = vmatpush1.bf16.xpose.msra.mxu0 0
        %1943 = vmatprep.subr.bf16.mxu0 0
        %1944 = vmatpush1.bf16.xpose.msra.mxu0 0
        %1945 = vmatprep.subr.bf16.mxu0 0
        %1946 = vmatpush1.bf16.xpose.msra.mxu0 0
        %1947 = vmatprep.subr.bf16.mxu0 0
        %1948 = vmatpush1.bf16.xpose.msra.mxu0 0
        %1949 = vmatprep.subr.bf16.mxu0 0
        %1950 = vmatpush1.bf16.xpose.msra.mxu0 0
        %1951 = vmatprep.subr.bf16.mxu0 0
        %1952 = vmatpush1.bf16.xpose.msra.mxu0 0
        %1953 = vmatprep.subr.bf16.mxu0 0
        %1954 = vmatpush1.bf16.xpose.msra.mxu0 %v1939
        %1955 = vmatprep.subr.bf16.mxu0 0
        %1956 = vmatpush1.bf16.xpose.msra.mxu0 %v1936
        %1957 = vmatprep.subr.bf16.mxu0 0
        %1958 = vmatpush2.bf16.xpose.msra.mxu0 0
        %1959 = vmatprep.subr.bf16.mxu0 0
        %1960 = vmatpush2.bf16.xpose.msra.mxu0 0
        %1961 = vmatprep.subr.bf16.mxu0 0
        %1962 = vmatpush2.bf16.xpose.msra.mxu0 0
        %1963 = vmatprep.subr.bf16.mxu0 0
        %1964 = vmatpush2.bf16.xpose.msra.mxu0 0
        %1965 = vmatprep.subr.bf16.mxu0 0
        %1966 = vmatpush2.bf16.xpose.msra.mxu0 0
        %1967 = vmatprep.subr.bf16.mxu0 0
        %1968 = vmatpush2.bf16.xpose.msra.mxu0 0
        %1969 = vmatprep.subr.bf16.mxu0 0
        %1970 = vmatpush2.bf16.xpose.msra.mxu0 0
        %1971 = vmatprep.subr.bf16.mxu0 0
        %1972 = vmatpush2.bf16.xpose.msra.mxu0 0
        %1973 = vmatprep.mubr.bf16.mxu0 0
        %1974 = vmatmul.mubr.bf16.gmra.mxu0 %v1930
        %v1975 = vpop.f32.mrf.mxu0
        %v1976 = vadd.f32 0.0, %v1975
        %v1977 = vpop.f32.mrf.mxu0
        %v1978 = vpop.f32.mrf.mxu0
        %v1979 = vadd.f32 0.0, %v1978
        %v1980 = vpop.f32.mrf.mxu0
        %1981 = vmatprep.mubr.bf16.mxu0 0
        %1982 = vmatmul.mubr.bf16.gmra.mxu0 %v1933
        %v1983 = vpop.f32.mrf.mxu0
        %v1984 = vadd.f32 0.0, %v1983
        %v1985 = vpop.f32.mrf.mxu0
        %v1986 = vpop.f32.mrf.mxu0
        %v1987 = vpop.f32.mrf.mxu0
        %1988 = vdwg.mxu0
        %v1989 = vmul.f32 %v1976, 0.25
        %v1990 = vmul.f32 %v1979, 0.25
        %v1991 = vmul.f32 %v1984, 0.25
        %v1992 = vadd.f32 %v1989, %v966
        %v1993 = vadd.f32 %v1990, %v966
        %v1994 = vadd.f32 %v1991, %v966
        %v1995 = vsel %vm971, %v1992, -inf
        %1996 = vmax.xlane.f32.xlu0 %v1995
        %v1997 = vpop.xlane.xlu0 %1996
        %v1998 = vsel %vm971, %v1993, -inf
        %1999 = vmax.xlane.f32.xlu0 %v1998
        %v2000 = vpop.xlane.xlu0 %1999
        %v2001 = vsel %vm971, %v1994, -inf
        %2002 = vmax.xlane.f32.xlu0 %v2001
        %v2003 = vpop.xlane.xlu0 %2002
        %v2004 = vsub.f32 %v1992, %v1997
        %v2005 = vsub.f32 %v1993, %v2000
        %v2006 = vsub.f32 %v1994, %v2003
        %v2007 = vmul.f32 %v2004, 1.442695
        %v2008 = vpow.pop %v2007
        %v2009 = vmul.f32 %v2005, 1.442695
        %v2010 = vpow.pop %v2009
        %v2011 = vmul.f32 %v2006, 1.442695
        %v2012 = vpow.pop %v2011
        %v2013 = vsel %vm971, %v2008, 0.0
        %2014 = vadd.xlane.f32.xlu0 %v2013
        %v2015 = vpop.xlane.xlu0 %2014
        %v2016 = vsel %vm971, %v2010, 0.0
        %2017 = vadd.xlane.f32.xlu0 %v2016
        %v2018 = vpop.xlane.xlu0 %2017
        %v2019 = vsel %vm971, %v2012, 0.0
        %2020 = vadd.xlane.f32.xlu0 %v2019
        %v2021 = vpop.xlane.xlu0 %2020
        %v2022 = vrcp.pop %v2015
        %v2023 = vrcp.pop %v2018
        %v2024 = vrcp.pop %v2021
        %v2025 = vmul.f32 %v2008, %v2022
        %v2026 = vmul.f32 %v2010, %v2023
        %v2027 = vmul.f32 %v2012, %v2024
        %v2028 = vpack.c.bf16 %v2026, %v2025
        %v2029 = vpack.c.bf16 %v2027, %v2027
        %2030 = vrot.lane.b32.xlu0 %v1750, 48
        %v2031 = vpop.permute.xlu0 %2030
        %2032 = vrot.lane.b32.xlu0 %v1751, 48
        %v2033 = vpop.permute.xlu0 %2032
        %v2036 = vsel %vm971, %v2028, 0
        %v2039 = vsel %vm971, %v2029, 0
        %v2042 = vsel %vm1018, %v2033, 0
        %2044 = vmatprep.subr.bf16.mxu0 0
        %2045 = vmatpush1.bf16.msra.mxu0 0
        %2046 = vmatprep.subr.bf16.mxu0 0
        %2047 = vmatpush1.bf16.msra.mxu0 0
        %2048 = vmatprep.subr.bf16.mxu0 0
        %2049 = vmatpush1.bf16.msra.mxu0 0
        %2050 = vmatprep.subr.bf16.mxu0 0
        %2051 = vmatpush1.bf16.msra.mxu0 0
        %2052 = vmatprep.subr.bf16.mxu0 0
        %2053 = vmatpush1.bf16.msra.mxu0 0
        %2054 = vmatprep.subr.bf16.mxu0 0
        %2055 = vmatpush1.bf16.msra.mxu0 0
        %2056 = vmatprep.subr.bf16.mxu0 0
        %2057 = vmatpush1.bf16.msra.mxu0 %v2042
        %2058 = vmatprep.subr.bf16.mxu0 0
        %2059 = vmatpush1.bf16.msra.mxu0 %v2031
        %2060 = vmatprep.subr.bf16.mxu0 0
        %2061 = vmatpush2.bf16.msra.mxu0 0
        %2062 = vmatprep.subr.bf16.mxu0 0
        %2063 = vmatpush2.bf16.msra.mxu0 0
        %2064 = vmatprep.subr.bf16.mxu0 0
        %2065 = vmatpush2.bf16.msra.mxu0 0
        %2066 = vmatprep.subr.bf16.mxu0 0
        %2067 = vmatpush2.bf16.msra.mxu0 0
        %2068 = vmatprep.subr.bf16.mxu0 0
        %2069 = vmatpush2.bf16.msra.mxu0 0
        %2070 = vmatprep.subr.bf16.mxu0 0
        %2071 = vmatpush2.bf16.msra.mxu0 0
        %2072 = vmatprep.subr.bf16.mxu0 0
        %2073 = vmatpush2.bf16.msra.mxu0 0
        %2074 = vmatprep.subr.bf16.mxu0 0
        %2075 = vmatpush2.bf16.msra.mxu0 0
        %2076 = vmatprep.mubr.bf16.mxu0 0
        %2077 = vmatmul.mubr.bf16.gmra.mxu0 %v2036
        %v2078 = vpop.f32.mrf.mxu0
        %v2079 = vadd.f32 0.0, %v2078
        %v2080 = vpop.f32.mrf.mxu0
        %v2081 = vpop.f32.mrf.mxu0
        %v2082 = vadd.f32 0.0, %v2081
        %v2083 = vpop.f32.mrf.mxu0
        %2084 = vmatprep.mubr.bf16.mxu0 0
        %2085 = vmatmul.mubr.bf16.gmra.mxu0 %v2039
        %v2086 = vpop.f32.mrf.mxu0
        %v2087 = vadd.f32 0.0, %v2086
        %v2088 = vpop.f32.mrf.mxu0
        %v2089 = vpop.f32.mrf.mxu0
        %v2090 = vpop.f32.mrf.mxu0
        %2091 = vdwg.mxu0
        %2095 = vrot.lane.b32.xlu0 %v2079, 16
        %v2096 = vpop.permute.xlu0 %2095
        %2097 = vrot.lane.b32.xlu0 %v2082, 16
        %v2098 = vpop.permute.xlu0 %2097
        %2099 = vrot.lane.b32.xlu0 %v2087, 16
        %v2100 = vpop.permute.xlu0 %2099
        %v2104 = vsel %vm898, %v1908, %v2096
        %v2105 = vsel %vm898, %v1911, %v2098
        %v2106 = vsel %vm898, %v1916, %v2100
        %s2107 = scalar_lea.vmem %s9, 16
        %v2108 = vld [vmem:[%s2107] sm:$0xf]
        %v2109 = vld [vmem:[%s2107 + $0x4] sm:$0xf]
        %v2110 = vld [vmem:[%s2107 + $0x8] sm:$0xf]
        %v2111 = vld [vmem:[%s2107 + $0xc] sm:$0xf]
        %v2112 = vpack.c.bf16 %v2105, %v2104
        %v2113 = vpack.c.bf16 %v2106, %v2106
        %v2118 = vunpack.c.l.b16 %v2108
        %v2119 = vunpack.c.l.b16 %v2109
        %v2120 = vunpack.c.l.b16 %v2110
        %v2121 = vunpack.c.l.b16 %v2111
        %v2122 = vpack.c.b16 %v2119, %v2118
        %v2123 = vpack.c.b16 %v2121, %v2120
        %v2127 = vsel %vm715, %v2112, 0
        %v2130 = vsel %vm715, %v2113, 0
        %2132 = vmatprep.subr.bf16.mxu0 0
        %2133 = vmatpush1.bf16.msra.mxu0 0
        %2134 = vmatprep.subr.bf16.mxu0 0
        %2135 = vmatpush1.bf16.msra.mxu0 0
        %2136 = vmatprep.subr.bf16.mxu0 0
        %2137 = vmatpush1.bf16.msra.mxu0 0
        %2138 = vmatprep.subr.bf16.mxu0 0
        %2139 = vmatpush1.bf16.msra.mxu0 0
        %2140 = vmatprep.subr.bf16.mxu0 0
        %2141 = vmatpush1.bf16.msra.mxu0 0
        %2142 = vmatprep.subr.bf16.mxu0 0
        %2143 = vmatpush1.bf16.msra.mxu0 0
        %2144 = vmatprep.subr.bf16.mxu0 0
        %2145 = vmatpush1.bf16.msra.mxu0 %v2123
        %2146 = vmatprep.subr.bf16.mxu0 0
        %2147 = vmatpush1.bf16.msra.mxu0 %v2122
        %2148 = vmatprep.subr.bf16.mxu0 0
        %2149 = vmatpush2.bf16.msra.mxu0 0
        %2150 = vmatprep.subr.bf16.mxu0 0
        %2151 = vmatpush2.bf16.msra.mxu0 0
        %2152 = vmatprep.subr.bf16.mxu0 0
        %2153 = vmatpush2.bf16.msra.mxu0 0
        %2154 = vmatprep.subr.bf16.mxu0 0
        %2155 = vmatpush2.bf16.msra.mxu0 0
        %2156 = vmatprep.subr.bf16.mxu0 0
        %2157 = vmatpush2.bf16.msra.mxu0 0
        %2158 = vmatprep.subr.bf16.mxu0 0
        %2159 = vmatpush2.bf16.msra.mxu0 0
        %2160 = vmatprep.subr.bf16.mxu0 0
        %2161 = vmatpush2.bf16.msra.mxu0 0
        %2162 = vmatprep.subr.bf16.mxu0 0
        %2163 = vmatpush2.bf16.msra.mxu0 0
        %2164 = vmatprep.mubr.bf16.mxu0 0
        %2165 = vmatmul.mubr.bf16.gmra.mxu0 %v2127
        %v2166 = vpop.f32.mrf.mxu0
        %v2167 = vadd.f32 0.0, %v2166
        %v2168 = vpop.f32.mrf.mxu0
        %v2169 = vpop.f32.mrf.mxu0
        %v2170 = vadd.f32 0.0, %v2169
        %v2171 = vpop.f32.mrf.mxu0
        %2172 = vmatprep.mubr.bf16.mxu0 0
        %2173 = vmatmul.mubr.bf16.gmra.mxu0 %v2130
        %v2174 = vpop.f32.mrf.mxu0
        %v2175 = vadd.f32 0.0, %v2174
        %v2176 = vpop.f32.mrf.mxu0
        %v2177 = vpop.f32.mrf.mxu0
        %v2178 = vpop.f32.mrf.mxu0
        %2179 = vdwg.mxu0
        %v2180 = vadd.f32 %v1605, %v2167
        %v2181 = vadd.f32 %v1606, %v2170
        %v2182 = vadd.f32 %v1607, %v2175
        %s2183 = scalar_lea.vmem %s10, 1
        %v2184 = vld [vmem:[%s2183] sm:$0x1]
        %v2186 = vlaneseq
        %v2187 = vshrl.u32 %v2186, 7
        %v2188 = vsub.s32 0, %v2187
        %v2189 = vrot.slane %v2184, %v2188
        %v2191 = vadd.f32 %v2180, %v2189
        %v2192 = vadd.f32 %v2181, %v2189
        %v2193 = vadd.f32 %v2182, %v2189
        %s2194 = scalar_lea.vmem %s11, 1
        %v2195 = vld [vmem:[%s2194] sm:$0x1]
        %s2196 = scalar_lea.vmem %s12, 1
        %v2197 = vld [vmem:[%s2196] sm:$0x1]
        %v2198 = vsel %vm715, %v2191, 0.0
        %2199 = vadd.xlane.f32.xlu0 %v2198
        %v2200 = vpop.xlane.xlu0 %2199
        %v2201 = vsel %vm715, %v2192, 0.0
        %2202 = vadd.xlane.f32.xlu0 %v2201
        %v2203 = vpop.xlane.xlu0 %2202
        %v2204 = vsel %vm715, %v2193, 0.0
        %2205 = vadd.xlane.f32.xlu0 %v2204
        %v2206 = vpop.xlane.xlu0 %2205
        %v2207 = vmul.f32 %v2200, %v719
        %v2208 = vmul.f32 %v2203, %v719
        %v2209 = vmul.f32 %v2206, %v719
        %v2210 = vsub.f32 %v2191, %v2207
        %v2211 = vsub.f32 %v2192, %v2208
        %v2212 = vsub.f32 %v2193, %v2209
        %v2213 = vmul.f32 %v2210, %v2210
        %v2214 = vmul.f32 %v2211, %v2211
        %v2215 = vmul.f32 %v2212, %v2212
        %v2216 = vsel %vm715, %v2213, 0.0
        %2217 = vadd.xlane.f32.xlu0 %v2216
        %v2218 = vpop.xlane.xlu0 %2217
        %v2219 = vsel %vm715, %v2214, 0.0
        %2220 = vadd.xlane.f32.xlu0 %v2219
        %v2221 = vpop.xlane.xlu0 %2220
        %v2222 = vsel %vm715, %v2215, 0.0
        %2223 = vadd.xlane.f32.xlu0 %v2222
        %v2224 = vpop.xlane.xlu0 %2223
        %v2225 = vmul.f32 %v2218, %v719
        %v2226 = vmul.f32 %v2221, %v719
        %v2227 = vmul.f32 %v2224, %v719
        %v2228 = vadd.f32 %v2225, 1e-12
        %v2229 = vadd.f32 %v2226, 1e-12
        %v2230 = vadd.f32 %v2227, 1e-12
        %v2231 = vrsqrt.pop %v2228
        %v2232 = vrsqrt.pop %v2229
        %v2233 = vrsqrt.pop %v2230
        %v2234 = vmul.f32 %v2210, %v2231
        %v2235 = vmul.f32 %v2211, %v2232
        %v2236 = vmul.f32 %v2212, %v2233
        %v2238 = vlaneseq
        %v2239 = vshrl.u32 %v2238, 7
        %v2240 = vsub.s32 0, %v2239
        %v2241 = vrot.slane %v2195, %v2240
        %v2243 = vmul.f32 %v2234, %v2241
        %v2244 = vmul.f32 %v2235, %v2241
        %v2245 = vmul.f32 %v2236, %v2241
        %v2247 = vlaneseq
        %v2248 = vshrl.u32 %v2247, 7
        %v2249 = vsub.s32 0, %v2248
        %v2250 = vrot.slane %v2197, %v2249
        %v2252 = vadd.f32 %v2243, %v2250
        %v2253 = vadd.f32 %v2244, %v2250
        %v2254 = vadd.f32 %v2245, %v2250
        %s2255 = scalar_lea.vmem %s13, 16
        %v2256 = vld [vmem:[%s2255] sm:$0xf]
        %v2257 = vld [vmem:[%s2255 + $0x4] sm:$0xf]
        %v2258 = vld [vmem:[%s2255 + $0x8] sm:$0xf]
        %v2259 = vld [vmem:[%s2255 + $0xc] sm:$0xf]
        %v2260 = vpack.c.bf16 %v2253, %v2252
        %v2261 = vpack.c.bf16 %v2254, %v2254
        %s2262 = scalar_lea.vmem %s14, 1
        %v2263 = vld [vmem:[%s2262] sm:$0x1]
        %v2265 = vlaneseq
        %v2266 = vshrl.u32 %v2265, 7
        %v2267 = vsub.s32 0, %v2266
        %v2268 = vrot.slane %v2263, %v2267
        %v2274 = vunpack.c.l.b16 %v2256
        %v2275 = vunpack.c.l.b16 %v2257
        %v2276 = vunpack.c.l.b16 %v2258
        %v2277 = vunpack.c.l.b16 %v2259
        %v2278 = vpack.c.b16 %v2275, %v2274
        %v2279 = vpack.c.b16 %v2277, %v2276
        %v2283 = vsel %vm715, %v2260, 0
        %v2286 = vsel %vm715, %v2261, 0
        %2288 = vmatprep.subr.bf16.mxu0 0
        %2289 = vmatpush1.bf16.msra.mxu0 0
        %2290 = vmatprep.subr.bf16.mxu0 0
        %2291 = vmatpush1.bf16.msra.mxu0 0
        %2292 = vmatprep.subr.bf16.mxu0 0
        %2293 = vmatpush1.bf16.msra.mxu0 0
        %2294 = vmatprep.subr.bf16.mxu0 0
        %2295 = vmatpush1.bf16.msra.mxu0 0
        %2296 = vmatprep.subr.bf16.mxu0 0
        %2297 = vmatpush1.bf16.msra.mxu0 0
        %2298 = vmatprep.subr.bf16.mxu0 0
        %2299 = vmatpush1.bf16.msra.mxu0 0
        %2300 = vmatprep.subr.bf16.mxu0 0
        %2301 = vmatpush1.bf16.msra.mxu0 %v2279
        %2302 = vmatprep.subr.bf16.mxu0 0
        %2303 = vmatpush1.bf16.msra.mxu0 %v2278
        %2304 = vmatprep.subr.bf16.mxu0 0
        %2305 = vmatpush2.bf16.msra.mxu0 0
        %2306 = vmatprep.subr.bf16.mxu0 0
        %2307 = vmatpush2.bf16.msra.mxu0 0
        %2308 = vmatprep.subr.bf16.mxu0 0
        %2309 = vmatpush2.bf16.msra.mxu0 0
        %2310 = vmatprep.subr.bf16.mxu0 0
        %2311 = vmatpush2.bf16.msra.mxu0 0
        %2312 = vmatprep.subr.bf16.mxu0 0
        %2313 = vmatpush2.bf16.msra.mxu0 0
        %2314 = vmatprep.subr.bf16.mxu0 0
        %2315 = vmatpush2.bf16.msra.mxu0 0
        %2316 = vmatprep.subr.bf16.mxu0 0
        %2317 = vmatpush2.bf16.msra.mxu0 0
        %2318 = vmatprep.subr.bf16.mxu0 0
        %2319 = vmatpush2.bf16.msra.mxu0 0
        %2320 = vmatprep.mubr.bf16.mxu0 0
        %2321 = vmatmul.mubr.bf16.gmra.mxu0 %v2283
        %v2322 = vpop.f32.mrf.mxu0
        %v2323 = vadd.f32 %v2268, %v2322
        %v2324 = vpop.f32.mrf.mxu0
        %v2325 = vpop.f32.mrf.mxu0
        %v2326 = vadd.f32 %v2268, %v2325
        %v2327 = vpop.f32.mrf.mxu0
        %2328 = vmatprep.mubr.bf16.mxu0 0
        %2329 = vmatmul.mubr.bf16.gmra.mxu0 %v2286
        %v2330 = vpop.f32.mrf.mxu0
        %v2331 = vadd.f32 %v2268, %v2330
        %v2332 = vpop.f32.mrf.mxu0
        %v2333 = vpop.f32.mrf.mxu0
        %v2334 = vpop.f32.mrf.mxu0
        %2335 = vdwg.mxu0
        %v2336 = vmul.f32 %v2323, 0.5
        %v2337 = vmul.f32 %v2326, 0.5
        %v2338 = vmul.f32 %v2331, 0.5
        %v2339 = vmul.f32 %v2323, 0.044715
        %v2340 = vmul.f32 %v2326, 0.044715
        %v2341 = vmul.f32 %v2331, 0.044715
        %v2342 = vmul.f32 %v2339, %v2323
        %v2343 = vmul.f32 %v2340, %v2326
        %v2344 = vmul.f32 %v2341, %v2331
        %v2345 = vmul.f32 %v2342, %v2323
        %v2346 = vmul.f32 %v2343, %v2326
        %v2347 = vmul.f32 %v2344, %v2331
        %v2348 = vadd.f32 %v2323, %v2345
        %v2349 = vadd.f32 %v2326, %v2346
        %v2350 = vadd.f32 %v2331, %v2347
        %v2351 = vmul.f32 %v2348, 0.7978846
        %v2352 = vmul.f32 %v2349, 0.7978846
        %v2353 = vmul.f32 %v2350, 0.7978846
        %v2354 = vtanh.pop %v2351
        %v2355 = vtanh.pop %v2352
        %v2356 = vtanh.pop %v2353
        %v2357 = vadd.f32 %v2354, 1.0
        %v2358 = vadd.f32 %v2355, 1.0
        %v2359 = vadd.f32 %v2356, 1.0
        %v2360 = vmul.f32 %v2336, %v2357
        %v2361 = vmul.f32 %v2337, %v2358
        %v2362 = vmul.f32 %v2338, %v2359
        %s2363 = scalar_lea.vmem %s15, 32
        %v2364 = vld [vmem:[%s2363] sm:$0xf]
        %v2365 = vld [vmem:[%s2363 + $0x4] sm:$0xf]
        %v2366 = vld [vmem:[%s2363 + $0x8] sm:$0xf]
        %v2367 = vld [vmem:[%s2363 + $0xc] sm:$0xf]
        %v2368 = vld [vmem:[%s2363 + $0x10] sm:$0xf]
        %v2369 = vld [vmem:[%s2363 + $0x14] sm:$0xf]
        %v2370 = vld [vmem:[%s2363 + $0x18] sm:$0xf]
        %v2371 = vld [vmem:[%s2363 + $0x1c] sm:$0xf]
        %v2372 = vpack.c.bf16 %v2361, %v2360
        %v2373 = vpack.c.bf16 %v2362, %v2362
        %v2382 = vunpack.c.l.b16 %v2364
        %v2383 = vunpack.c.l.b16 %v2365
        %v2384 = vunpack.c.l.b16 %v2366
        %v2385 = vunpack.c.l.b16 %v2367
        %v2386 = vunpack.c.l.b16 %v2368
        %v2387 = vunpack.c.l.b16 %v2369
        %v2388 = vunpack.c.l.b16 %v2370
        %v2389 = vunpack.c.l.b16 %v2371
        %v2390 = vpack.c.b16 %v2383, %v2382
        %v2391 = vpack.c.b16 %v2385, %v2384
        %v2392 = vpack.c.b16 %v2387, %v2386
        %v2393 = vpack.c.b16 %v2389, %v2388
        %v2399 = vsel %vm1540, %v2372, 0
        %v2402 = vsel %vm1540, %v2373, 0
        %2404 = vmatprep.subr.bf16.mxu0 0
        %2405 = vmatpush1.bf16.msra.mxu0 0
        %2406 = vmatprep.subr.bf16.mxu0 0
        %2407 = vmatpush1.bf16.msra.mxu0 0
        %2408 = vmatprep.subr.bf16.mxu0 0
        %2409 = vmatpush1.bf16.msra.mxu0 0
        %2410 = vmatprep.subr.bf16.mxu0 0
        %2411 = vmatpush1.bf16.msra.mxu0 0
        %2412 = vmatprep.subr.bf16.mxu0 0
        %2413 = vmatpush1.bf16.msra.mxu0 %v2393
        %2414 = vmatprep.subr.bf16.mxu0 0
        %2415 = vmatpush1.bf16.msra.mxu0 %v2392
        %2416 = vmatprep.subr.bf16.mxu0 0
        %2417 = vmatpush1.bf16.msra.mxu0 %v2391
        %2418 = vmatprep.subr.bf16.mxu0 0
        %2419 = vmatpush1.bf16.msra.mxu0 %v2390
        %2420 = vmatprep.subr.bf16.mxu0 0
        %2421 = vmatpush2.bf16.msra.mxu0 0
        %2422 = vmatprep.subr.bf16.mxu0 0
        %2423 = vmatpush2.bf16.msra.mxu0 0
        %2424 = vmatprep.subr.bf16.mxu0 0
        %2425 = vmatpush2.bf16.msra.mxu0 0
        %2426 = vmatprep.subr.bf16.mxu0 0
        %2427 = vmatpush2.bf16.msra.mxu0 0
        %2428 = vmatprep.subr.bf16.mxu0 0
        %2429 = vmatpush2.bf16.msra.mxu0 0
        %2430 = vmatprep.subr.bf16.mxu0 0
        %2431 = vmatpush2.bf16.msra.mxu0 0
        %2432 = vmatprep.subr.bf16.mxu0 0
        %2433 = vmatpush2.bf16.msra.mxu0 0
        %2434 = vmatprep.subr.bf16.mxu0 0
        %2435 = vmatpush2.bf16.msra.mxu0 0
        %2436 = vmatprep.mubr.bf16.mxu0 0
        %2437 = vmatmul.mubr.bf16.gmra.mxu0 %v2399
        %v2438 = vpop.f32.mrf.mxu0
        %v2439 = vadd.f32 0.0, %v2438
        %v2440 = vpop.f32.mrf.mxu0
        %v2441 = vpop.f32.mrf.mxu0
        %v2442 = vadd.f32 0.0, %v2441
        %v2443 = vpop.f32.mrf.mxu0
        %2444 = vmatprep.mubr.bf16.mxu0 0
        %2445 = vmatmul.mubr.bf16.gmra.mxu0 %v2402
        %v2446 = vpop.f32.mrf.mxu0
        %v2447 = vadd.f32 0.0, %v2446
        %v2448 = vpop.f32.mrf.mxu0
        %v2449 = vpop.f32.mrf.mxu0
        %v2450 = vpop.f32.mrf.mxu0
        %2451 = vdwg.mxu0
        %v2452 = vadd.f32 %v2191, %v2439
        %v2453 = vadd.f32 %v2192, %v2442
        %v2454 = vadd.f32 %v2193, %v2447
        %s2455 = scalar_lea.vmem %s16, 1
        %v2456 = vld [vmem:[%s2455] sm:$0x1]
        %v2458 = vlaneseq
        %v2459 = vshrl.u32 %v2458, 7
        %v2460 = vsub.s32 0, %v2459
        %v2461 = vrot.slane %v2456, %v2460
        %v2463 = vadd.f32 %v2452, %v2461
        %v2464 = vadd.f32 %v2453, %v2461
        %v2465 = vadd.f32 %v2454, %v2461
        %v2466 = vld [vmem:[%s17] sm:$0x1]
        %v2467 = vld [vmem:[%s18] sm:$0x1]
        %v2468 = vsel %vm715, %v2463, 0.0
        %2469 = vadd.xlane.f32.xlu0 %v2468
        %v2470 = vpop.xlane.xlu0 %2469
        %v2471 = vsel %vm715, %v2464, 0.0
        %2472 = vadd.xlane.f32.xlu0 %v2471
        %v2473 = vpop.xlane.xlu0 %2472
        %v2474 = vsel %vm715, %v2465, 0.0
        %2475 = vadd.xlane.f32.xlu0 %v2474
        %v2476 = vpop.xlane.xlu0 %2475
        %v2477 = vmul.f32 %v2470, %v719
        %v2478 = vmul.f32 %v2473, %v719
        %v2479 = vmul.f32 %v2476, %v719
        %v2480 = vsub.f32 %v2463, %v2477
        %v2481 = vsub.f32 %v2464, %v2478
        %v2482 = vsub.f32 %v2465, %v2479
        %v2483 = vmul.f32 %v2480, %v2480
        %v2484 = vmul.f32 %v2481, %v2481
        %v2485 = vmul.f32 %v2482, %v2482
        %v2486 = vsel %vm715, %v2483, 0.0
        %2487 = vadd.xlane.f32.xlu0 %v2486
        %v2488 = vpop.xlane.xlu0 %2487
        %v2489 = vsel %vm715, %v2484, 0.0
        %2490 = vadd.xlane.f32.xlu0 %v2489
        %v2491 = vpop.xlane.xlu0 %2490
        %v2492 = vsel %vm715, %v2485, 0.0
        %2493 = vadd.xlane.f32.xlu0 %v2492
        %v2494 = vpop.xlane.xlu0 %2493
        %v2495 = vmul.f32 %v2488, %v719
        %v2496 = vmul.f32 %v2491, %v719
        %v2497 = vmul.f32 %v2494, %v719
        %v2498 = vadd.f32 %v2495, 1e-12
        %v2499 = vadd.f32 %v2496, 1e-12
        %v2500 = vadd.f32 %v2497, 1e-12
        %v2501 = vrsqrt.pop %v2498
        %v2502 = vrsqrt.pop %v2499
        %v2503 = vrsqrt.pop %v2500
        %v2504 = vmul.f32 %v2480, %v2501
        %v2505 = vmul.f32 %v2481, %v2502
        %v2506 = vmul.f32 %v2482, %v2503
        %v2508 = vlaneseq
        %v2509 = vshrl.u32 %v2508, 7
        %v2510 = vsub.s32 0, %v2509
        %v2511 = vrot.slane %v2466, %v2510
        %v2513 = vmul.f32 %v2504, %v2511
        %v2514 = vmul.f32 %v2505, %v2511
        %v2515 = vmul.f32 %v2506, %v2511
        %v2517 = vlaneseq
        %v2518 = vshrl.u32 %v2517, 7
        %v2519 = vsub.s32 0, %v2518
        %v2520 = vrot.slane %v2467, %v2519
        %v2522 = vadd.f32 %v2513, %v2520
        %v2523 = vadd.f32 %v2514, %v2520
        %v2524 = vadd.f32 %v2515, %v2520
        %2525 = vst.msk [vmem:[%s707] sm:$0xff] %vm715, %v2522
        %2526 = vst.msk [vmem:[%s707 + $0x8] sm:$0xff] %vm715, %v2523
        %2527 = vst.msk [vmem:[%s707 + $0x10] sm:$0xff] %vm715, %v2524
        %v2528 = vld [vmem:[%s19] sm:$0xff]
        %v2529 = vld [vmem:[%s19 + $0x8] sm:$0xff]
        %v2530 = vld [vmem:[%s19 + $0x10] sm:$0xff]
        %v2531 = vld [vmem:[%s19 + $0x18] sm:$0xff]
        %v2532 = vld [vmem:[%s20] sm:$0x1]
        %v2534 = vsel %vm715, %v2522, 0
        %2536 = vmatprep.subr.mxu0 0.0
        %2537 = vmatpush1.msra.mxu0 0.0
        %2538 = vmatprep.subr.mxu0 0.0
        %2539 = vmatpush1.msra.mxu0 0.0
        %2540 = vmatprep.subr.mxu0 0.0
        %2541 = vmatpush1.msra.mxu0 0.0
        %2542 = vmatprep.subr.mxu0 0.0
        %2543 = vmatpush1.msra.mxu0 0.0
        %2544 = vmatprep.subr.mxu0 0.0
        %2545 = vmatpush1.msra.mxu0 0.0
        %2546 = vmatprep.subr.mxu0 0.0
        %2547 = vmatpush1.msra.mxu0 0.0
        %2548 = vmatprep.subr.mxu0 0.0
        %2549 = vmatpush1.msra.mxu0 0.0
        %2550 = vmatprep.subr.mxu0 0.0
        %2551 = vmatpush1.msra.mxu0 0.0
        %2552 = vmatprep.subr.mxu0 0.0
        %2553 = vmatpush1.msra.mxu0 0.0
        %2554 = vmatprep.subr.mxu0 0.0
        %2555 = vmatpush1.msra.mxu0 0.0
        %2556 = vmatprep.subr.mxu0 0.0
        %2557 = vmatpush1.msra.mxu0 0.0
        %2558 = vmatprep.subr.mxu0 0.0
        %2559 = vmatpush1.msra.mxu0 0.0
        %2560 = vmatprep.subr.mxu0 0.0
        %2561 = vmatpush1.msra.mxu0 %v2531
        %2562 = vmatprep.subr.mxu0 0.0
        %2563 = vmatpush1.msra.mxu0 %v2530
        %2564 = vmatprep.subr.mxu0 0.0
        %2565 = vmatpush1.msra.mxu0 %v2529
        %2566 = vmatprep.subr.mxu0 0.0
        %2567 = vmatpush1.msra.mxu0 %v2528
        %2568 = vmatprep.subr.mxu0 0.0
        %2569 = vmatpush2.msra.mxu0 0.0
        %2570 = vmatprep.subr.mxu0 0.0
        %2571 = vmatpush2.msra.mxu0 0.0
        %2572 = vmatprep.subr.mxu0 0.0
        %2573 = vmatpush2.msra.mxu0 0.0
        %2574 = vmatprep.subr.mxu0 0.0
        %2575 = vmatpush2.msra.mxu0 0.0
        %2576 = vmatprep.subr.mxu0 0.0
        %2577 = vmatpush2.msra.mxu0 0.0
        %2578 = vmatprep.subr.mxu0 0.0
        %2579 = vmatpush2.msra.mxu0 0.0
        %2580 = vmatprep.subr.mxu0 0.0
        %2581 = vmatpush2.msra.mxu0 0.0
        %2582 = vmatprep.subr.mxu0 0.0
        %2583 = vmatpush2.msra.mxu0 0.0
        %2584 = vmatprep.subr.mxu0 0.0
        %2585 = vmatpush2.msra.mxu0 0.0
        %2586 = vmatprep.subr.mxu0 0.0
        %2587 = vmatpush2.msra.mxu0 0.0
        %2588 = vmatprep.subr.mxu0 0.0
        %2589 = vmatpush2.msra.mxu0 0.0
        %2590 = vmatprep.subr.mxu0 0.0
        %2591 = vmatpush2.msra.mxu0 0.0
        %2592 = vmatprep.subr.mxu0 0.0
        %2593 = vmatpush2.msra.mxu0 0.0
        %2594 = vmatprep.subr.mxu0 0.0
        %2595 = vmatpush2.msra.mxu0 0.0
        %2596 = vmatprep.subr.mxu0 0.0
        %2597 = vmatpush2.msra.mxu0 0.0
        %2598 = vmatprep.subr.mxu0 0.0
        %2599 = vmatpush2.msra.mxu0 0.0
        %2600 = vmatprep.mubr.f32.mxu0 0.0
        %2601 = vmatmul.mubr.f32.gmra.mxu0 %v2534
        %v2602 = vpop.f32.mrf.mxu0
        %v2603 = vadd.f32 %v2532, %v2602
        %v2604 = vpop.f32.mrf.mxu0
        %2605 = vdwg.mxu0
        %v2606 = vtanh.pop %v2603
        %vm2607 = vcmask 253952
        %2608 = vst.msk [vmem:[%s694] sm:$0x1] %vm2607, %v2606
        %p2609 = scmp.lt.s32.totalorder %s37, 1
        %s2610 = scalar_select %p2609, %s37, 1
        %s2611 = smul.addr %s2610, 3
        %s2612 = smul.addr %s2611, 8
        %s2613 = scalar_lea.vmem %s21, %s2612
        %s2614 = sand.u32 %s522, 1
        %s2615 = scalar_lea.sflag [#allocation3], %s2614
        %s2616 = sand.u32 %s522, 1
        %s2617 = scalar_lea.vmem [#allocation2], %s2616
        // Predicated region
        $region105: #{multiview_vilt_forward.3} parent=103 // pred_check
          %p2618 = pneg %p506
        $region106: #{multiview_vilt_forward.3} parent=103 // pred_check_branch
          %2620 = sbr.rel (%p2618) target = $region108
        $region107: #{multiview_vilt_forward.3} parent=103 // pred_region
          _
        $region108: #{multiview_vilt_forward.3} parent=103 // pred_fallthru
          _
        // Predicated region
        $region109: #{multiview_vilt_forward.3} parent=103 // pred_check
          %p2621 = pneg %p532
        $region110: #{multiview_vilt_forward.3} parent=103 // pred_check_branch
          %2623 = sbr.rel (%p2621) target = $region112
        $region111: #{multiview_vilt_forward.3} parent=103 // pred_region
          %s2625 = ssub.s32 16, 16
          %2626 = vsyncadd %s2615, %s2625
          %s2627 = smul.addr %s37, 16
          %s2628 = scalar_lea.hbm %s22, %s2627
          %s2630 = sshll.u32 %s2617, 4
          %s2631 = int_to_ptr.vmem [resolvable:$true] %s2630
          %2633 = dma.vmem_to_hbm [thread:$0]  %s2631, 16, %s2628, %s2615
        $region112: #{multiview_vilt_forward.3} parent=103 // pred_fallthru
          _
      $region104: #{multiview_vilt_forward.3} parent=5 // pred_fallthru
        _
      %p2634 = scmp.le.s32.totalorder 2, %s32
      // Predicated region
      $region113: #{multiview_vilt_forward.3} parent=5 // pred_check
        %p2635 = pneg %p2634
      $region114: #{multiview_vilt_forward.3} parent=5 // pred_check_branch
        %2637 = sbr.rel (%p2635) target = $region116
      $region115: #{multiview_vilt_forward.3} parent=5 // pred_region
        %s2638 = ssub.s32 %s32, 2
        // Predicated region
        $region117: #{multiview_vilt_forward.3} parent=115 // pred_check
          %p2639 = pneg %p512
        $region118: #{multiview_vilt_forward.3} parent=115 // pred_check_branch
          %2641 = sbr.rel (%p2639) target = $region120
        $region119: #{multiview_vilt_forward.3} parent=115 // pred_region
          %p2642 = scmp.lt.s32.totalorder %s38, 1
          %s2643 = scalar_select %p2642, %s38, 1
          %s2644 = smul.addr %s2643, 3
          %s2645 = smul.addr %s2644, 8
          %s2646 = scalar_lea.vmem %s21, %s2645
        $region120: #{multiview_vilt_forward.3} parent=115 // pred_fallthru
          _
        // Predicated region
        $region121: #{multiview_vilt_forward.3} parent=115 // pred_check
          %p2647 = pneg %p538
        $region122: #{multiview_vilt_forward.3} parent=115 // pred_check_branch
          %2649 = sbr.rel (%p2647) target = $region124
        $region123: #{multiview_vilt_forward.3} parent=115 // pred_region
          %s2650 = sand.u32 %s523, 1
          %s2651 = scalar_lea.sflag [#allocation3], %s2650
          %s2652 = sand.u32 %s523, 1
          %s2653 = scalar_lea.vmem [#allocation2], %s2652
          %2654 = dma.done %s2651, 16
        $region124: #{multiview_vilt_forward.3} parent=115 // pred_fallthru
          _
      $region116: #{multiview_vilt_forward.3} parent=5 // pred_fallthru
        _
    $region6: #{multiview_vilt_forward.3} parent=1 // loop_footer
      %s36 = sadd.s32 1, %s32
    $region7: #{multiview_vilt_forward.3} parent=1 // loop_footer_branch
      %31 = sbr.rel target = $region3
    $region8: #{multiview_vilt_forward.3} parent=1 // loop_exit
      _
    %2655 = vsyncpa [#allocation3], 1
    %s2656 = scalar_lea.sflag [#allocation3], 1
    %2657 = vsyncpa %s2656, 1

</llo_original>
